<compile_context>
chip_gen: v7x
topology: tpu7x:2x2x1
jax: 0.10.0
libtpu: 0.0.40
codegen_flags: <defaults>
</compile_context>

<pallas_src>
import numpy as np
import jax
import jax.numpy as jnp
from jax.experimental import pallas as pl
from jax.experimental.pallas import tpu as pltpu

# ----------------------- Plane hyperparameters (from __init__) ---------------
LEVEL_DIM = 2
NUM_LEVELS = 16
LOG2_HASHMAP_SIZE = 19
BASE_RESOLUTION = 16
DESIRED_RESOLUTION = 2048          # self.resolution
OUTPUT_DIM = 8
HIDDEN_DIM = 64
IN_DIM = NUM_LEVELS * LEVEL_DIM    # 32 = encoder output dim
NUM_CORNERS = 4

TILE_N = 2048                      # points per Pallas grid step (lane axis)

_PRIME_Y = np.uint32(2654435761)   # spatial-hash prime for dim 1 (dim 0 prime = 1)


# ----------------------- hash-grid metadata ----------------------------------
def _build_hashgrid_meta():
    per_level_scale = float(
        np.exp2(np.log2(DESIRED_RESOLUTION / BASE_RESOLUTION) / (NUM_LEVELS - 1)))
    max_params = 2 ** LOG2_HASHMAP_SIZE
    offsets, resolutions, scales, sizes = [], [], [], []
    offset = 0
    for l in range(NUM_LEVELS):
        scale = BASE_RESOLUTION * per_level_scale ** l - 1.0
        resolution = int(np.ceil(scale)) + 1
        params_in_level = min(max_params, (resolution + 1) ** 2)   # align_corners=False
        params_in_level = int(np.ceil(params_in_level / 8) * 8)
        offsets.append(offset)
        resolutions.append(resolution)
        scales.append(scale)
        sizes.append(params_in_level)
        offset += params_in_level
    return offsets, resolutions, scales, sizes, offset


OFFSETS, RESOLUTIONS, SCALES, SIZES, TOTAL_PARAMS = _build_hashgrid_meta()


def hashgrid_encode_cm(coords, embeddings):
    """coords: [..., N, 2] in [0, 1] -> channel-major [..., IN_DIM, N] float32.

    JAX re-implementation of the torch-ngp GridEncoder forward.  The two
    feature channels are accumulated as separate [..., N] vectors so the
    channel-major output never needs a large transpose.
    # TODO(synk): bit-exactness vs. the CUDA extension depends on its exact
    # rounding of per-level scale; semantics (hash / tiled index, bilinear
    # weights, level concat) are reproduced.
    """
    feats = []
    for l in range(NUM_LEVELS):
        scale = SCALES[l]
        resolution = RESOLUTIONS[l]
        hashmap_size = SIZES[l]
        base = OFFSETS[l]
        use_hash = (resolution + 1) ** 2 > hashmap_size

        pos = coords * scale + 0.5
        pos_grid = jnp.floor(pos)
        frac = pos - pos_grid
        pg = pos_grid.astype(jnp.uint32)                      # [..., N, 2]

        f0 = jnp.zeros(coords.shape[:-1], jnp.float32)        # [..., N]
        f1 = jnp.zeros(coords.shape[:-1], jnp.float32)
        for dx in (0, 1):
            for dy in (0, 1):
                gx = pg[..., 0] + jnp.uint32(dx)
                gy = pg[..., 1] + jnp.uint32(dy)
                if use_hash:
                    idx = (gx ^ (gy * _PRIME_Y)) % jnp.uint32(hashmap_size)
                else:
                    idx = gx + gy * jnp.uint32(resolution + 1)
                idx = idx.astype(jnp.int32) + base
                wx = frac[..., 0] if dx == 1 else 1.0 - frac[..., 0]
                wy = frac[..., 1] if dy == 1 else 1.0 - frac[..., 1]
                e = embeddings[idx]                            # [..., N, 2]
                w = wx * wy
                f0 = f0 + w * e[..., 0]
                f1 = f1 + w * e[..., 1]
        feats.append(jnp.stack([f0, f1], axis=-2))             # [..., 2, N]
    return jnp.concatenate(feats, axis=-2)                     # [..., IN_DIM, N]


# ----------------------- Pallas kernel: fused 4-corner MLP + bilinear blend ---
def _plane_mlp_blend_kernel(enc_ref, uv_ref, w1b_ref, w2t_ref, o_ref):
    # enc_ref: (4*IN_DIM, TILE_N) bf16   rows grouped per corner [f00|f01|f10|f11]
    # uv_ref:  (2, TILE_N)        f32    row 0 = u, row 1 = v
    # w1b_ref: (4*HIDDEN_DIM, 4*IN_DIM) bf16  block-diag(w1^T x4)
    # w2t_ref: (OUTPUT_DIM, HIDDEN_DIM) bf16  (layer-2 weight, transposed)
    # o_ref:   (OUTPUT_DIM, TILE_N) f32  points on the lane axis (dense stores)

    # One big layer-1 matmul for all 4 corners + ReLU (f32 accumulate).
    h4 = jnp.maximum(
        jnp.dot(w1b_ref[...], enc_ref[...], preferred_element_type=jnp.float32),
        0.0)                                                   # (256, T) f32

    # Bilinear weights computed in-kernel from u,v (VPU, free under MXU/DMA).
    u = uv_ref[0:1, :]                                         # (1, T)
    v = uv_ref[1:2, :]
    w00 = (1.0 - u) * (1.0 - v)
    w01 = (1.0 - u) * v
    w10 = u * (1.0 - v)
    w11 = u * v

    # Blend the hidden activations (layer 2 is linear & bias-free, so this is
    # exact).  Row groups at multiples of 64 -> vreg-aligned VPU adds.
    H = HIDDEN_DIM
    h = (w00 * h4[0 * H:1 * H, :] + w01 * h4[1 * H:2 * H, :]
         + w10 * h4[2 * H:3 * H, :] + w11 * h4[3 * H:4 * H, :])  # (64, T) f32

    # Single second-layer matmul per tile; output stays lane-dense.
    o_ref[...] = jnp.dot(w2t_ref[...], h.astype(jnp.bfloat16),
                         preferred_element_type=jnp.float32)


def mlp_blend_pallas(enc_cm, uv, w1_blk, w2t):
    """enc_cm: [4*IN_DIM, N] bf16, uv: [2, N] f32,
    w1_blk: [4*HIDDEN_DIM, 4*IN_DIM] bf16, w2t: [OUTPUT_DIM, HIDDEN_DIM] bf16
    -> [OUTPUT_DIM, N] f32.  N % TILE_N == 0."""
    n = enc_cm.shape[-1]
    assert n % TILE_N == 0
    grid = (n // TILE_N,)
    return pl.pallas_call(
        _plane_mlp_blend_kernel,
        out_shape=jax.ShapeDtypeStruct((OUTPUT_DIM, n), jnp.float32),
        grid_spec=pltpu.PrefetchScalarGridSpec(
            num_scalar_prefetch=0,
            grid=grid,
            in_specs=[
                pl.BlockSpec((NUM_CORNERS * IN_DIM, TILE_N), lambda i: (0, i)),
                pl.BlockSpec((2, TILE_N), lambda i: (0, i)),
                pl.BlockSpec((NUM_CORNERS * HIDDEN_DIM, NUM_CORNERS * IN_DIM),
                             lambda i: (0, 0)),
                pl.BlockSpec((OUTPUT_DIM, HIDDEN_DIM), lambda i: (0, 0)),
            ],
            out_specs=pl.BlockSpec((OUTPUT_DIM, TILE_N), lambda i: (0, i)),
        ),
        compiler_params=pltpu.CompilerParams(
            dimension_semantics=("parallel",)),
    )(enc_cm, uv, w1_blk, w2t)


# ----------------------- Plane.forward ----------------------------------------
def plane_forward(xy, bound, embeddings, w1, w2):
    """xy: [..., 2] float32, bound: float -> [..., OUTPUT_DIM] float32."""
    lead = xy.shape[:-1]
    xy = xy.reshape(-1, 2).astype(jnp.float32)
    n = xy.shape[0]

    # Pad the (tiny) point stream up-front so no later pass re-pads the large
    # enc tensor.  Padded rows produce valid-but-discarded outputs.
    n_pad = int(np.ceil(n / TILE_N) * TILE_N)
    if n_pad != n:
        xy = jnp.pad(xy, ((0, n_pad - n), (0, 0)))

    R = DESIRED_RESOLUTION
    xy = (xy + bound) / (2.0 * bound)
    coords = jnp.clip(xy * R - 0.5, 0.0, R - 1)
    cx, cy = coords[:, 0], coords[:, 1]
    cx0 = jnp.floor(cx)
    cy0 = jnp.floor(cy)
    cx1 = jnp.clip(cx0 + 1.0, 0.0, R - 1)
    cy1 = jnp.clip(cy0 + 1.0, 0.0, R - 1)
    u = cx - cx0
    v = cy - cy0

    corners = jnp.stack([
        jnp.stack([cx0, cy0], -1),   # f00
        jnp.stack([cx0, cy1], -1),   # f01
        jnp.stack([cx1, cy0], -1),   # f10
        jnp.stack([cx1, cy1], -1),   # f11
    ], axis=0)                       # [4, n_pad, 2]
    corner_pts = (corners + 0.5) / R

    # Channel-major encode -> [4, IN_DIM, n_pad]; the reshape to (128, n_pad)
    # is free (row-major contiguous), no transpose pass over HBM.
    enc_cm = hashgrid_encode_cm(corner_pts, embeddings)
    enc_cm = enc_cm.reshape(NUM_CORNERS * IN_DIM, n_pad).astype(jnp.bfloat16)

    uv = jnp.stack([u, v], axis=0)                              # (2, n_pad) f32

    # Block-diagonal layer-1 weight: blockdiag(w1^T x4) -> (256, 128) bf16.
    w1t = w1.T.astype(jnp.bfloat16)                             # (64, 32)
    w1_blk = jnp.zeros((NUM_CORNERS * HIDDEN_DIM, NUM_CORNERS * IN_DIM),
                       jnp.bfloat16)
    for c in range(NUM_CORNERS):
        w1_blk = w1_blk.at[c * HIDDEN_DIM:(c + 1) * HIDDEN_DIM,
                           c * IN_DIM:(c + 1) * IN_DIM].set(w1t)
    w2t = w2.T.astype(jnp.bfloat16)                             # (8, 64)

    out_t = mlp_blend_pallas(enc_cm, uv, w1_blk, w2t)           # (8, n_pad) f32
    return out_t[:, :n].T.reshape(*lead, OUTPUT_DIM)


# ----------------------- pure-JAX reference (mirrors the torch module) --------
def plane_forward_ref(xy, bound, embeddings, w1, w2):
    lead = xy.shape[:-1]
    xy = xy.reshape(-1, 2).astype(jnp.float32)
    R = DESIRED_RESOLUTION
    xy = (xy + bound) / (2.0 * bound)
    coords = jnp.clip(xy * R - 0.5, 0.0, R - 1)
    cx, cy = coords[:, 0], coords[:, 1]
    cx0, cy0 = jnp.floor(cx), jnp.floor(cy)
    cx1 = jnp.clip(cx0 + 1.0, 0.0, R - 1)
    cy1 = jnp.clip(cy0 + 1.0, 0.0, R - 1)
    u = (cx - cx0)[:, None]
    v = (cy - cy0)[:, None]

    w1f = w1.astype(jnp.bfloat16).astype(jnp.float32)
    w2f = w2.astype(jnp.bfloat16).astype(jnp.float32)

    def enc_mlp(a, b):
        pts = (jnp.stack([a, b], -1) + 0.5) / R                 # [n, 2]
        e = hashgrid_encode_cm(pts, embeddings).T               # [n, IN_DIM]
        e = e.astype(jnp.bfloat16).astype(jnp.float32)
        return jnp.maximum(e @ w1f, 0.0) @ w2f

    f00 = enc_mlp(cx0, cy0)
    f01 = enc_mlp(cx0, cy1)
    f10 = enc_mlp(cx1, cy0)
    f11 = enc_mlp(cx1, cy1)
    f = ((1 - v) * (1 - u) * f00 + (1 - v) * u * f10
         + v * (1 - u) * f01 + v * u * f11)
    return f.reshape(*lead, OUTPUT_DIM)


# ----------------------- demo -------------------------------------------------
if __name__ == "__main__":
    key = jax.random.PRNGKey(0)
    k_emb, k_w1, k_w2, k_x = jax.random.split(key, 4)

    # Deterministic parameter init (shapes from __init__):
    #   hash embeddings ~ U(-1e-4, 1e-4); Linear weights ~ U(-1/sqrt(fan_in), ..)
    embeddings = jax.random.uniform(
        k_emb, (TOTAL_PARAMS, LEVEL_DIM), jnp.float32, -1e-4, 1e-4)
    w1 = jax.random.uniform(
        k_w1, (IN_DIM, HIDDEN_DIM), jnp.float32,
        -1.0 / np.sqrt(IN_DIM), 1.0 / np.sqrt(IN_DIM))
    w2 = jax.random.uniform(
        k_w2, (HIDDEN_DIM, OUTPUT_DIM), jnp.float32,
        -1.0 / np.sqrt(HIDDEN_DIM), 1.0 / np.sqrt(HIDDEN_DIM))

    # Example input: [batch=2, points=2048, 2] in [-bound, bound]
    # (N = 4096 -> grid = 2 even tiles at TILE_N = 2048, so both v7x cores work.)
    xy = jax.random.uniform(k_x, (2, 2048, 2), jnp.float32, -1.0, 1.0)
    bound = 1.0

    out = jax.jit(plane_forward)(xy, bound, embeddings, w1, w2)
    out = jax.block_until_ready(out)
    assert out.shape == (2, 2048, 8), out.shape
    assert bool(jnp.all(jnp.isfinite(out)))

    ref = jax.jit(plane_forward_ref)(xy, bound, embeddings, w1, w2)
    ref = jax.block_until_ready(ref)
    # bf16 matmul operands, f32 accumulation -> small relative drift vs f32 ref.
    assert np.allclose(np.asarray(out), np.asarray(ref), rtol=5e-2, atol=5e-6), \
        float(jnp.max(jnp.abs(out - ref)))

    print("KERNEL_OK")
</pallas_src>

<mosaic_0001>
module attributes {stable_mosaic.version = 11 : i64} {
  func.func private @main(%arg0: i32) attributes {dimension_semantics = [#tpu.dimension_semantics<core_parallel>], iteration_bounds = array<i64: 2>, tpu.core_type = #tpu.core_type<sc_scalar_subcore>, window_params = []} {
    return
  }
}

module attributes {stable_mosaic.version = 11 : i64} {
  func.func private @main(%arg0: i32) attributes {dimension_semantics = [#tpu.dimension_semantics<core_parallel>], iteration_bounds = array<i64: 2>, tpu.core_type = #tpu.core_type<sc_scalar_subcore>, window_params = []} {
    return
  }
}

module attributes {stable_mosaic.version = 11 : i64} {
  func.func @_plane_mlp_blend_kernel(%arg0: i32, %arg1: memref<128x2048xbf16, #tpu.memory_space<vmem>>, %arg2: memref<2x2048xf32, #tpu.memory_space<vmem>>, %arg3: memref<256x128xbf16, #tpu.memory_space<vmem>>, %arg4: memref<8x64xbf16, #tpu.memory_space<vmem>>, %arg5: memref<8x2048xf32, #tpu.memory_space<vmem>>) attributes {dimension_semantics = [#tpu.dimension_semantics<parallel>], iteration_bounds = array<i64: 2>, scalar_prefetch = 0 : i64, scratch_operands = 0 : i64, tpu.core_type = #tpu.core_type<tc>, window_params = [{transform_indices = @transform_0, window_bounds = array<i64: 128, 2048>}, {transform_indices = @transform_1, window_bounds = array<i64: 2, 2048>}, {pipeline_mode = #tpu.pipeline_mode<synchronous>, transform_indices = @transform_2, window_bounds = array<i64: 256, 128>}, {pipeline_mode = #tpu.pipeline_mode<synchronous>, transform_indices = @transform_3, window_bounds = array<i64: 8, 64>}, {transform_indices = @transform_4, window_bounds = array<i64: 8, 2048>}]} {
    %c0 = arith.constant 0 : index
    %c0_0 = arith.constant 0 : index
    %0 = vector.load %arg3[%c0, %c0_0] : memref<256x128xbf16, #tpu.memory_space<vmem>>, vector<256x128xbf16>
    %c0_1 = arith.constant 0 : index
    %c0_2 = arith.constant 0 : index
    %1 = vector.load %arg1[%c0_1, %c0_2] : memref<128x2048xbf16, #tpu.memory_space<vmem>>, vector<128x2048xbf16>
    %cst = arith.constant dense<0.000000e+00> : vector<256x2048xf32>
    %2 = tpu.matmul %0, %1, %cst {dimension_numbers = #tpu.dot_dimension_numbers<[1], [0], [0], [1], [0, 0, 1, 1], [], []>} : vector<256x128xbf16>, vector<128x2048xbf16>, vector<256x2048xf32> -> vector<256x2048xf32>
    %cst_3 = arith.constant 0.000000e+00 : f32
    %3 = vector.broadcast %cst_3 : f32 to vector<256x2048xf32>
    %4 = arith.maximumf %2, %3 : vector<256x2048xf32>
    %c0_4 = arith.constant 0 : index
    %c0_5 = arith.constant 0 : index
    %5 = vector.load %arg2[%c0_4, %c0_5] : memref<2x2048xf32, #tpu.memory_space<vmem>>, vector<1x2048xf32>
    %c1 = arith.constant 1 : index
    %c0_6 = arith.constant 0 : index
    %6 = vector.load %arg2[%c1, %c0_6] : memref<2x2048xf32, #tpu.memory_space<vmem>>, vector<1x2048xf32>
    %cst_7 = arith.constant 1.000000e+00 : f32
    %7 = vector.broadcast %cst_7 : f32 to vector<1x2048xf32>
    %8 = arith.subf %7, %5 : vector<1x2048xf32>
    %cst_8 = arith.constant 1.000000e+00 : f32
    %9 = vector.broadcast %cst_8 : f32 to vector<1x2048xf32>
    %10 = arith.subf %9, %6 : vector<1x2048xf32>
    %11 = arith.mulf %8, %10 : vector<1x2048xf32>
    %cst_9 = arith.constant 1.000000e+00 : f32
    %12 = vector.broadcast %cst_9 : f32 to vector<1x2048xf32>
    %13 = arith.subf %12, %5 : vector<1x2048xf32>
    %14 = arith.mulf %13, %6 : vector<1x2048xf32>
    %cst_10 = arith.constant 1.000000e+00 : f32
    %15 = vector.broadcast %cst_10 : f32 to vector<1x2048xf32>
    %16 = arith.subf %15, %6 : vector<1x2048xf32>
    %17 = arith.mulf %5, %16 : vector<1x2048xf32>
    %18 = arith.mulf %5, %6 : vector<1x2048xf32>
    %19 = vector.extract_strided_slice %4 {offsets = [0, 0], sizes = [64, 2048], strides = [1, 1]} : vector<256x2048xf32> to vector<64x2048xf32>
    %20 = vector.broadcast %11 : vector<1x2048xf32> to vector<64x2048xf32>
    %21 = arith.mulf %20, %19 : vector<64x2048xf32>
    %22 = vector.extract_strided_slice %4 {offsets = [64, 0], sizes = [64, 2048], strides = [1, 1]} : vector<256x2048xf32> to vector<64x2048xf32>
    %23 = vector.broadcast %14 : vector<1x2048xf32> to vector<64x2048xf32>
    %24 = arith.mulf %23, %22 : vector<64x2048xf32>
    %25 = arith.addf %21, %24 : vector<64x2048xf32>
    %26 = vector.extract_strided_slice %4 {offsets = [128, 0], sizes = [64, 2048], strides = [1, 1]} : vector<256x2048xf32> to vector<64x2048xf32>
    %27 = vector.broadcast %17 : vector<1x2048xf32> to vector<64x2048xf32>
    %28 = arith.mulf %27, %26 : vector<64x2048xf32>
    %29 = arith.addf %25, %28 : vector<64x2048xf32>
    %30 = vector.extract_strided_slice %4 {offsets = [192, 0], sizes = [64, 2048], strides = [1, 1]} : vector<256x2048xf32> to vector<64x2048xf32>
    %31 = vector.broadcast %18 : vector<1x2048xf32> to vector<64x2048xf32>
    %32 = arith.mulf %31, %30 : vector<64x2048xf32>
    %33 = arith.addf %29, %32 : vector<64x2048xf32>
    %c0_11 = arith.constant 0 : index
    %c0_12 = arith.constant 0 : index
    %34 = vector.load %arg4[%c0_11, %c0_12] : memref<8x64xbf16, #tpu.memory_space<vmem>>, vector<8x64xbf16>
    %35 = arith.truncf %33 : vector<64x2048xf32> to vector<64x2048xbf16>
    %cst_13 = arith.constant dense<0.000000e+00> : vector<8x2048xf32>
    %36 = tpu.matmul %34, %35, %cst_13 {dimension_numbers = #tpu.dot_dimension_numbers<[1], [0], [0], [1], [0, 0, 1, 1], [], []>} : vector<8x64xbf16>, vector<64x2048xbf16>, vector<8x2048xf32> -> vector<8x2048xf32>
    %c0_14 = arith.constant 0 : index
    %c0_15 = arith.constant 0 : index
    %37 = vector.load %arg5[%c0_14, %c0_15] : memref<8x2048xf32, #tpu.memory_space<vmem>>, vector<8x2048xf32>
    tpu.vector_store %arg5[%c0_14, %c0_15], %36 {strides = array<i32>} : memref<8x2048xf32, #tpu.memory_space<vmem>>, vector<8x2048xf32>,
    return
  }
  func.func @transform_0(%arg0: i32) -> (i32, i32) {
    %c0_i32 = arith.constant 0 : i32
    %c0_i32_0 = arith.constant 0 : i32
    return %c0_i32, %arg0 : i32, i32
  }
  func.func @transform_1(%arg0: i32) -> (i32, i32) {
    %c0_i32 = arith.constant 0 : i32
    %c0_i32_0 = arith.constant 0 : i32
    return %c0_i32, %arg0 : i32, i32
  }
  func.func @transform_2(%arg0: i32) -> (i32, i32) {
    %c0_i32 = arith.constant 0 : i32
    %c0_i32_0 = arith.constant 0 : i32
    %c0_i32_1 = arith.constant 0 : i32
    return %c0_i32, %c0_i32_0 : i32, i32
  }
  func.func @transform_3(%arg0: i32) -> (i32, i32) {
    %c0_i32 = arith.constant 0 : i32
    %c0_i32_0 = arith.constant 0 : i32
    %c0_i32_1 = arith.constant 0 : i32
    return %c0_i32, %c0_i32_0 : i32, i32
  }
  func.func @transform_4(%arg0: i32) -> (i32, i32) {
    %c0_i32 = arith.constant 0 : i32
    %c0_i32_0 = arith.constant 0 : i32
    return %c0_i32, %arg0 : i32, i32
  }
}

</mosaic_0001>

<llo_original>
// kernel: plane_forward.1
$region0: #{plane_forward.1}
  #allocation0 [shape = 'u32[]', space=smem, size = 0x4, offset = 0x4, fixed_abs, tag = 'smem constant byte address 0x4 - core index']
  #allocation1 [shape = 'u32[144,128]{1,0:T(1,128)}', space=vmem, size = 0x12000, scoped, tag = 'internal scratch']
  %s0 = inlined_call_operand.vmem [shape: bf16[128,4096], index: 0, kind: input, shape index: {}]
  %s1 = inlined_call_operand.vmem [shape: f32[2,4096], index: 1, kind: input, shape index: {}]
  %s2 = inlined_call_operand.vmem [shape: bf16[256,128], index: 2, kind: input, shape index: {}]
  %s3 = inlined_call_operand.vmem [shape: bf16[8,64], index: 3, kind: input, shape index: {}]
  %s4 = inlined_call_operand.hbm [shape: f32[8,4096], index: 4, kind: output, shape index: {}]
  %s5 = sld [smem:[#allocation0]]
  $region72: #{plane_forward.1} parent=0
    _
  %s7 = ssub.s32 1, %s5
  %s8 = scalar_select 0, %s7, %s5
  $region1: #{plane_forward.1} parent=0
    #allocation2 [shape = 'u8[1048576]{0}', space=vmem, size = 0x100000, scoped, tag = 'input window, operand 0']
    #allocation3 [shape = 'u8[131072]{0}', space=vmem, size = 0x20000, scoped, tag = 'output window, operand 0']
    #allocation4 [shape = 's32[2]{0}', space=sflag, size = 0x8, scoped, tag = 'scoped memory for plane_forward.1']
    %9 = vsyncpa [#allocation4], 0
    %s10 = scalar_lea.sflag [#allocation4], 1
    %11 = vsyncpa %s10, 0
    loop: start=0, step=1, limit=4
    $region2: #{plane_forward.1} parent=1 // loop_pre_header
      _
    $region3: #{plane_forward.1} parent=1 // loop_header
      %s13 = sphi 0, %s17
      %p14 = scmp.ge.s32.totalorder %s13, 4
      %s23 = sphi 0, %s25
      %s26 = sphi 0, %s23
      %s27 = sphi 0, %s26
      %s43 = sphi 0, %s27
      %s49 = sphi 0, %s51
      %s52 = sphi 0, %s49
      %s53 = sphi 0, %s52
      %s69 = sphi 0, %s53
      %s73 = sphi 0, %s73
      %s75 = sphi 0, %s73
      %s76 = sphi 0, %s75
      %s90 = sphi 0, %s76
      %s94 = sphi 0, %s94
      %s96 = sphi 0, %s94
      %s97 = sphi 0, %s96
      %s111 = sphi 0, %s97
      %s117 = sphi 0, %s119
      %s120 = sphi 0, %s117
      %s121 = sphi 0, %s120
      %s137 = sphi 0, %s121
    $region4: #{plane_forward.1} parent=1 // loop_header_branch
      %16 = sbr.rel (%p14) target = $region8
    $region5: #{plane_forward.1} parent=1 // loop_body
      %s18 = ssub.s32 %s13, 1
      %s19 = ssub.s32 %s13, 2
      %s20 = sadd.s32 %s13, 1
      %s21 = ssub.s32 %s13, %s20
      %p22 = scmp.eq.s32.totalorder %s21, 0
      %s24 = sadd.s32 %s23, 1
      %s25 = scalar_select %p22, %s23, %s24
      %p28 = pneg %p22
      %p29 = scmp.eq.s32.totalorder %s13, 1
      %p30 = por %p28, %p29
      %p31 = scmp.ne.s32.totalorder %s23, %s26
      %p32 = scmp.eq.s32.totalorder %s13, 0
      %p33 = por %p31, %p32
      %p34 = scmp.ne.s32.totalorder %s23, %s26
      %p35 = scmp.eq.s32.totalorder %s18, 1
      %p36 = por %p34, %p35
      %p37 = scmp.ne.s32.totalorder %s26, %s27
      %p38 = scmp.eq.s32.totalorder %s18, 0
      %p39 = por %p37, %p38
      %p40 = scmp.ne.s32.totalorder %s26, %s27
      %p41 = scmp.eq.s32.totalorder %s19, 1
      %p42 = por %p40, %p41
      %p44 = scmp.ne.s32.totalorder %s27, %s43
      %p45 = scmp.eq.s32.totalorder %s19, 0
      %p46 = por %p44, %p45
      %s47 = ssub.s32 %s13, %s20
      %p48 = scmp.eq.s32.totalorder %s47, 0
      %s50 = sadd.s32 %s49, 1
      %s51 = scalar_select %p48, %s49, %s50
      %p54 = pneg %p48
      %p55 = scmp.eq.s32.totalorder %s13, 1
      %p56 = por %p54, %p55
      %p57 = scmp.ne.s32.totalorder %s49, %s52
      %p58 = scmp.eq.s32.totalorder %s13, 0
      %p59 = por %p57, %p58
      %p60 = scmp.ne.s32.totalorder %s49, %s52
      %p61 = scmp.eq.s32.totalorder %s18, 1
      %p62 = por %p60, %p61
      %p63 = scmp.ne.s32.totalorder %s52, %s53
      %p64 = scmp.eq.s32.totalorder %s18, 0
      %p65 = por %p63, %p64
      %p66 = scmp.ne.s32.totalorder %s52, %s53
      %p67 = scmp.eq.s32.totalorder %s19, 1
      %p68 = por %p66, %p67
      %p70 = scmp.ne.s32.totalorder %s53, %s69
      %p71 = scmp.eq.s32.totalorder %s19, 0
      %p72 = por %p70, %p71
      %s74 = sadd.s32 %s73, 1
      %p77 = scmp.eq.s32.totalorder %s13, 1
      %p78 = scmp.ne.s32.totalorder %s73, %s75
      %p79 = scmp.eq.s32.totalorder %s13, 0
      %p80 = por %p78, %p79
      %p81 = scmp.ne.s32.totalorder %s73, %s75
      %p82 = scmp.eq.s32.totalorder %s18, 1
      %p83 = por %p81, %p82
      %p84 = scmp.ne.s32.totalorder %s75, %s76
      %p85 = scmp.eq.s32.totalorder %s18, 0
      %p86 = por %p84, %p85
      %p87 = scmp.ne.s32.totalorder %s75, %s76
      %p88 = scmp.eq.s32.totalorder %s19, 1
      %p89 = por %p87, %p88
      %p91 = scmp.ne.s32.totalorder %s76, %s90
      %p92 = scmp.eq.s32.totalorder %s19, 0
      %p93 = por %p91, %p92
      %s95 = sadd.s32 %s94, 1
      %p98 = scmp.eq.s32.totalorder %s13, 1
      %p99 = scmp.ne.s32.totalorder %s94, %s96
      %p100 = scmp.eq.s32.totalorder %s13, 0
      %p101 = por %p99, %p100
      %p102 = scmp.ne.s32.totalorder %s94, %s96
      %p103 = scmp.eq.s32.totalorder %s18, 1
      %p104 = por %p102, %p103
      %p105 = scmp.ne.s32.totalorder %s96, %s97
      %p106 = scmp.eq.s32.totalorder %s18, 0
      %p107 = por %p105, %p106
      %p108 = scmp.ne.s32.totalorder %s96, %s97
      %p109 = scmp.eq.s32.totalorder %s19, 1
      %p110 = por %p108, %p109
      %p112 = scmp.ne.s32.totalorder %s97, %s111
      %p113 = scmp.eq.s32.totalorder %s19, 0
      %p114 = por %p112, %p113
      %s115 = ssub.s32 %s13, %s20
      %p116 = scmp.eq.s32.totalorder %s115, 0
      %s118 = sadd.s32 %s117, 1
      %s119 = scalar_select %p116, %s117, %s118
      %p122 = pneg %p116
      %p123 = scmp.eq.s32.totalorder %s13, 1
      %p124 = por %p122, %p123
      %p125 = scmp.ne.s32.totalorder %s117, %s120
      %p126 = scmp.eq.s32.totalorder %s13, 0
      %p127 = por %p125, %p126
      %p128 = scmp.ne.s32.totalorder %s117, %s120
      %p129 = scmp.eq.s32.totalorder %s18, 1
      %p130 = por %p128, %p129
      %p131 = scmp.ne.s32.totalorder %s120, %s121
      %p132 = scmp.eq.s32.totalorder %s18, 0
      %p133 = por %p131, %p132
      %p134 = scmp.ne.s32.totalorder %s120, %s121
      %p135 = scmp.eq.s32.totalorder %s19, 1
      %p136 = por %p134, %p135
      %p138 = scmp.ne.s32.totalorder %s121, %s137
      %p139 = scmp.eq.s32.totalorder %s19, 0
      %p140 = por %p138, %p139
      %p141 = scmp.le.s32.totalorder 1, %s13
      %p142 = scmp.lt.s32.totalorder %s13, 3
      %p143 = pnand %p141, %p142
      %p144 = pneg %p143
      // Predicated region
      $region9: #{plane_forward.1} parent=5 // pred_check
        _
      $region10: #{plane_forward.1} parent=5 // pred_check_branch
        %146 = sbr.rel (%p143) target = $region12
      $region11: #{plane_forward.1} parent=5 // pred_region
        %s147 = ssub.s32 %s13, 1
        // Predicated region
        $region13: #{plane_forward.1} parent=11 // pred_check
          %p148 = pneg %p86
        $region14: #{plane_forward.1} parent=11 // pred_check_branch
          %150 = sbr.rel (%p148) target = $region16
        $region15: #{plane_forward.1} parent=11 // pred_region
          _
        $region16: #{plane_forward.1} parent=11 // pred_fallthru
          _
        // Predicated region
        $region17: #{plane_forward.1} parent=11 // pred_check
          %p151 = pneg %p107
        $region18: #{plane_forward.1} parent=11 // pred_check_branch
          %153 = sbr.rel (%p151) target = $region20
        $region19: #{plane_forward.1} parent=11 // pred_region
          _
        $region20: #{plane_forward.1} parent=11 // pred_fallthru
          _
      $region12: #{plane_forward.1} parent=5 // pred_fallthru
        _
      %p154 = scmp.lt.s32.totalorder %s13, 2
      // Predicated region
      $region21: #{plane_forward.1} parent=5 // pred_check
        %p155 = pneg %p154
      $region22: #{plane_forward.1} parent=5 // pred_check_branch
        %157 = sbr.rel (%p155) target = $region24
      $region23: #{plane_forward.1} parent=5 // pred_region
        // Predicated region
        $region25: #{plane_forward.1} parent=23 // pred_check
          %p158 = pneg %p33
        $region26: #{plane_forward.1} parent=23 // pred_check_branch
          %160 = sbr.rel (%p158) target = $region28
        $region27: #{plane_forward.1} parent=23 // pred_region
          %s161 = sand.u32 %s23, 1
          %s162 = sand.u32 %s23, 1
          %s163 = smul.addr %s162, 1024
          %s164 = scalar_lea.vmem [#allocation2], %s163
          %s165 = smul.u32 16, %s13
          %s166 = smul.addr %s165, 4
          %s167 = scalar_lea.vmem %s0, %s166
          // Predicated region
          $region29: #{plane_forward.1} parent=27 // pred_check
            _
          $region30: #{plane_forward.1} parent=27 // pred_check_branch
            %169 = sbr.rel (0) target = $region32
          $region31: #{plane_forward.1} parent=27 // pred_region
            // Predicated region
            $region33: #{plane_forward.1} parent=31 // pred_check
              _
            $region34: #{plane_forward.1} parent=31 // pred_check_branch
              %171 = sbr.rel (0) target = $region36
            $region35: #{plane_forward.1} parent=31 // pred_region
              loop: start=0, step=1, limit=1
              $region37: #{plane_forward.1} parent=35 // loop_pre_header
                _
              $region38: #{plane_forward.1} parent=35 // loop_header
                %s173 = sphi 0, %s177
                %p174 = scmp.ge.s32.totalorder %s173, 1
                %s178 = sphi %s167, %s167
                %s179 = sphi %s164, %s164
              $region39: #{plane_forward.1} parent=35 // loop_header_branch
                %176 = sbr.rel (%p174) target = $region43
              $region40: #{plane_forward.1} parent=35 // loop_body
                %v180 = vld [vmem:[%s178] sm:$0xff]
                %181 = vst [vmem:[%s179] sm:$0xff] %v180
                %v182 = vld [vmem:[%s178 + $0x8] sm:$0xff]
                %183 = vst [vmem:[%s179 + $0x8] sm:$0xff] %v182
                %v184 = vld [vmem:[%s178 + $0x10] sm:$0xff]
                %185 = vst [vmem:[%s179 + $0x10] sm:$0xff] %v184
                %v186 = vld [vmem:[%s178 + $0x18] sm:$0xff]
                %187 = vst [vmem:[%s179 + $0x18] sm:$0xff] %v186
                %v188 = vld [vmem:[%s178 + $0x20] sm:$0xff]
                %189 = vst [vmem:[%s179 + $0x20] sm:$0xff] %v188
                %v190 = vld [vmem:[%s178 + $0x28] sm:$0xff]
                %191 = vst [vmem:[%s179 + $0x28] sm:$0xff] %v190
                %v192 = vld [vmem:[%s178 + $0x30] sm:$0xff]
                %193 = vst [vmem:[%s179 + $0x30] sm:$0xff] %v192
                %v194 = vld [vmem:[%s178 + $0x38] sm:$0xff]
                %195 = vst [vmem:[%s179 + $0x38] sm:$0xff] %v194
                %v196 = vld [vmem:[%s178 + $0x80] sm:$0xff]
                %197 = vst [vmem:[%s179 + $0x40] sm:$0xff] %v196
                %v198 = vld [vmem:[%s178 + $0x88] sm:$0xff]
                %199 = vst [vmem:[%s179 + $0x48] sm:$0xff] %v198
                %v200 = vld [vmem:[%s178 + $0x90] sm:$0xff]
                %201 = vst [vmem:[%s179 + $0x50] sm:$0xff] %v200
                %v202 = vld [vmem:[%s178 + $0x98] sm:$0xff]
                %203 = vst [vmem:[%s179 + $0x58] sm:$0xff] %v202
                %v204 = vld [vmem:[%s178 + $0xa0] sm:$0xff]
                %205 = vst [vmem:[%s179 + $0x60] sm:$0xff] %v204
                %v206 = vld [vmem:[%s178 + $0xa8] sm:$0xff]
                %207 = vst [vmem:[%s179 + $0x68] sm:$0xff] %v206
                %v208 = vld [vmem:[%s178 + $0xb0] sm:$0xff]
                %209 = vst [vmem:[%s179 + $0x70] sm:$0xff] %v208
                %v210 = vld [vmem:[%s178 + $0xb8] sm:$0xff]
                %211 = vst [vmem:[%s179 + $0x78] sm:$0xff] %v210
                %v212 = vld [vmem:[%s178 + $0x100] sm:$0xff]
                %213 = vst [vmem:[%s179 + $0x80] sm:$0xff] %v212
                %v214 = vld [vmem:[%s178 + $0x108] sm:$0xff]
                %215 = vst [vmem:[%s179 + $0x88] sm:$0xff] %v214
                %v216 = vld [vmem:[%s178 + $0x110] sm:$0xff]
                %217 = vst [vmem:[%s179 + $0x90] sm:$0xff] %v216
                %v218 = vld [vmem:[%s178 + $0x118] sm:$0xff]
                %219 = vst [vmem:[%s179 + $0x98] sm:$0xff] %v218
                %v220 = vld [vmem:[%s178 + $0x120] sm:$0xff]
                %221 = vst [vmem:[%s179 + $0xa0] sm:$0xff] %v220
                %v222 = vld [vmem:[%s178 + $0x128] sm:$0xff]
                %223 = vst [vmem:[%s179 + $0xa8] sm:$0xff] %v222
                %v224 = vld [vmem:[%s178 + $0x130] sm:$0xff]
                %225 = vst [vmem:[%s179 + $0xb0] sm:$0xff] %v224
                %v226 = vld [vmem:[%s178 + $0x138] sm:$0xff]
                %227 = vst [vmem:[%s179 + $0xb8] sm:$0xff] %v226
                %v228 = vld [vmem:[%s178 + $0x180] sm:$0xff]
                %229 = vst [vmem:[%s179 + $0xc0] sm:$0xff] %v228
                %v230 = vld [vmem:[%s178 + $0x188] sm:$0xff]
                %231 = vst [vmem:[%s179 + $0xc8] sm:$0xff] %v230
                %v232 = vld [vmem:[%s178 + $0x190] sm:$0xff]
                %233 = vst [vmem:[%s179 + $0xd0] sm:$0xff] %v232
                %v234 = vld [vmem:[%s178 + $0x198] sm:$0xff]
                %235 = vst [vmem:[%s179 + $0xd8] sm:$0xff] %v234
                %v236 = vld [vmem:[%s178 + $0x1a0] sm:$0xff]
                %237 = vst [vmem:[%s179 + $0xe0] sm:$0xff] %v236
                %v238 = vld [vmem:[%s178 + $0x1a8] sm:$0xff]
                %239 = vst [vmem:[%s179 + $0xe8] sm:$0xff] %v238
                %v240 = vld [vmem:[%s178 + $0x1b0] sm:$0xff]
                %241 = vst [vmem:[%s179 + $0xf0] sm:$0xff] %v240
                %v242 = vld [vmem:[%s178 + $0x1b8] sm:$0xff]
                %243 = vst [vmem:[%s179 + $0xf8] sm:$0xff] %v242
                %v244 = vld [vmem:[%s178 + $0x200] sm:$0xff]
                %245 = vst [vmem:[%s179 + $0x100] sm:$0xff] %v244
                %v246 = vld [vmem:[%s178 + $0x208] sm:$0xff]
                %247 = vst [vmem:[%s179 + $0x108] sm:$0xff] %v246
                %v248 = vld [vmem:[%s178 + $0x210] sm:$0xff]
                %249 = vst [vmem:[%s179 + $0x110] sm:$0xff] %v248
                %v250 = vld [vmem:[%s178 + $0x218] sm:$0xff]
                %251 = vst [vmem:[%s179 + $0x118] sm:$0xff] %v250
                %v252 = vld [vmem:[%s178 + $0x220] sm:$0xff]
                %253 = vst [vmem:[%s179 + $0x120] sm:$0xff] %v252
                %v254 = vld [vmem:[%s178 + $0x228] sm:$0xff]
                %255 = vst [vmem:[%s179 + $0x128] sm:$0xff] %v254
                %v256 = vld [vmem:[%s178 + $0x230] sm:$0xff]
                %257 = vst [vmem:[%s179 + $0x130] sm:$0xff] %v256
                %v258 = vld [vmem:[%s178 + $0x238] sm:$0xff]
                %259 = vst [vmem:[%s179 + $0x138] sm:$0xff] %v258
                %v260 = vld [vmem:[%s178 + $0x280] sm:$0xff]
                %261 = vst [vmem:[%s179 + $0x140] sm:$0xff] %v260
                %v262 = vld [vmem:[%s178 + $0x288] sm:$0xff]
                %263 = vst [vmem:[%s179 + $0x148] sm:$0xff] %v262
                %v264 = vld [vmem:[%s178 + $0x290] sm:$0xff]
                %265 = vst [vmem:[%s179 + $0x150] sm:$0xff] %v264
                %v266 = vld [vmem:[%s178 + $0x298] sm:$0xff]
                %267 = vst [vmem:[%s179 + $0x158] sm:$0xff] %v266
                %v268 = vld [vmem:[%s178 + $0x2a0] sm:$0xff]
                %269 = vst [vmem:[%s179 + $0x160] sm:$0xff] %v268
                %v270 = vld [vmem:[%s178 + $0x2a8] sm:$0xff]
                %271 = vst [vmem:[%s179 + $0x168] sm:$0xff] %v270
                %v272 = vld [vmem:[%s178 + $0x2b0] sm:$0xff]
                %273 = vst [vmem:[%s179 + $0x170] sm:$0xff] %v272
                %v274 = vld [vmem:[%s178 + $0x2b8] sm:$0xff]
                %275 = vst [vmem:[%s179 + $0x178] sm:$0xff] %v274
                %v276 = vld [vmem:[%s178 + $0x300] sm:$0xff]
                %277 = vst [vmem:[%s179 + $0x180] sm:$0xff] %v276
                %v278 = vld [vmem:[%s178 + $0x308] sm:$0xff]
                %279 = vst [vmem:[%s179 + $0x188] sm:$0xff] %v278
                %v280 = vld [vmem:[%s178 + $0x310] sm:$0xff]
                %281 = vst [vmem:[%s179 + $0x190] sm:$0xff] %v280
                %v282 = vld [vmem:[%s178 + $0x318] sm:$0xff]
                %283 = vst [vmem:[%s179 + $0x198] sm:$0xff] %v282
                %v284 = vld [vmem:[%s178 + $0x320] sm:$0xff]
                %285 = vst [vmem:[%s179 + $0x1a0] sm:$0xff] %v284
                %v286 = vld [vmem:[%s178 + $0x328] sm:$0xff]
                %287 = vst [vmem:[%s179 + $0x1a8] sm:$0xff] %v286
                %v288 = vld [vmem:[%s178 + $0x330] sm:$0xff]
                %289 = vst [vmem:[%s179 + $0x1b0] sm:$0xff] %v288
                %v290 = vld [vmem:[%s178 + $0x338] sm:$0xff]
                %291 = vst [vmem:[%s179 + $0x1b8] sm:$0xff] %v290
                %v292 = vld [vmem:[%s178 + $0x380] sm:$0xff]
                %293 = vst [vmem:[%s179 + $0x1c0] sm:$0xff] %v292
                %v294 = vld [vmem:[%s178 + $0x388] sm:$0xff]
                %295 = vst [vmem:[%s179 + $0x1c8] sm:$0xff] %v294
                %v296 = vld [vmem:[%s178 + $0x390] sm:$0xff]
                %297 = vst [vmem:[%s179 + $0x1d0] sm:$0xff] %v296
                %v298 = vld [vmem:[%s178 + $0x398] sm:$0xff]
                %299 = vst [vmem:[%s179 + $0x1d8] sm:$0xff] %v298
                %v300 = vld [vmem:[%s178 + $0x3a0] sm:$0xff]
                %301 = vst [vmem:[%s179 + $0x1e0] sm:$0xff] %v300
                %v302 = vld [vmem:[%s178 + $0x3a8] sm:$0xff]
                %303 = vst [vmem:[%s179 + $0x1e8] sm:$0xff] %v302
                %v304 = vld [vmem:[%s178 + $0x3b0] sm:$0xff]
                %305 = vst [vmem:[%s179 + $0x1f0] sm:$0xff] %v304
                %v306 = vld [vmem:[%s178 + $0x3b8] sm:$0xff]
                %307 = vst [vmem:[%s179 + $0x1f8] sm:$0xff] %v306
                %v308 = vld [vmem:[%s178 + $0x400] sm:$0xff]
                %309 = vst [vmem:[%s179 + $0x200] sm:$0xff] %v308
                %v310 = vld [vmem:[%s178 + $0x408] sm:$0xff]
                %311 = vst [vmem:[%s179 + $0x208] sm:$0xff] %v310
                %v312 = vld [vmem:[%s178 + $0x410] sm:$0xff]
                %313 = vst [vmem:[%s179 + $0x210] sm:$0xff] %v312
                %v314 = vld [vmem:[%s178 + $0x418] sm:$0xff]
                %315 = vst [vmem:[%s179 + $0x218] sm:$0xff] %v314
                %v316 = vld [vmem:[%s178 + $0x420] sm:$0xff]
                %317 = vst [vmem:[%s179 + $0x220] sm:$0xff] %v316
                %v318 = vld [vmem:[%s178 + $0x428] sm:$0xff]
                %319 = vst [vmem:[%s179 + $0x228] sm:$0xff] %v318
                %v320 = vld [vmem:[%s178 + $0x430] sm:$0xff]
                %321 = vst [vmem:[%s179 + $0x230] sm:$0xff] %v320
                %v322 = vld [vmem:[%s178 + $0x438] sm:$0xff]
                %323 = vst [vmem:[%s179 + $0x238] sm:$0xff] %v322
                %v324 = vld [vmem:[%s178 + $0x480] sm:$0xff]
                %325 = vst [vmem:[%s179 + $0x240] sm:$0xff] %v324
                %v326 = vld [vmem:[%s178 + $0x488] sm:$0xff]
                %327 = vst [vmem:[%s179 + $0x248] sm:$0xff] %v326
                %v328 = vld [vmem:[%s178 + $0x490] sm:$0xff]
                %329 = vst [vmem:[%s179 + $0x250] sm:$0xff] %v328
                %v330 = vld [vmem:[%s178 + $0x498] sm:$0xff]
                %331 = vst [vmem:[%s179 + $0x258] sm:$0xff] %v330
                %v332 = vld [vmem:[%s178 + $0x4a0] sm:$0xff]
                %333 = vst [vmem:[%s179 + $0x260] sm:$0xff] %v332
                %v334 = vld [vmem:[%s178 + $0x4a8] sm:$0xff]
                %335 = vst [vmem:[%s179 + $0x268] sm:$0xff] %v334
                %v336 = vld [vmem:[%s178 + $0x4b0] sm:$0xff]
                %337 = vst [vmem:[%s179 + $0x270] sm:$0xff] %v336
                %v338 = vld [vmem:[%s178 + $0x4b8] sm:$0xff]
                %339 = vst [vmem:[%s179 + $0x278] sm:$0xff] %v338
                %v340 = vld [vmem:[%s178 + $0x500] sm:$0xff]
                %341 = vst [vmem:[%s179 + $0x280] sm:$0xff] %v340
                %v342 = vld [vmem:[%s178 + $0x508] sm:$0xff]
                %343 = vst [vmem:[%s179 + $0x288] sm:$0xff] %v342
                %v344 = vld [vmem:[%s178 + $0x510] sm:$0xff]
                %345 = vst [vmem:[%s179 + $0x290] sm:$0xff] %v344
                %v346 = vld [vmem:[%s178 + $0x518] sm:$0xff]
                %347 = vst [vmem:[%s179 + $0x298] sm:$0xff] %v346
                %v348 = vld [vmem:[%s178 + $0x520] sm:$0xff]
                %349 = vst [vmem:[%s179 + $0x2a0] sm:$0xff] %v348
                %v350 = vld [vmem:[%s178 + $0x528] sm:$0xff]
                %351 = vst [vmem:[%s179 + $0x2a8] sm:$0xff] %v350
                %v352 = vld [vmem:[%s178 + $0x530] sm:$0xff]
                %353 = vst [vmem:[%s179 + $0x2b0] sm:$0xff] %v352
                %v354 = vld [vmem:[%s178 + $0x538] sm:$0xff]
                %355 = vst [vmem:[%s179 + $0x2b8] sm:$0xff] %v354
                %v356 = vld [vmem:[%s178 + $0x580] sm:$0xff]
                %357 = vst [vmem:[%s179 + $0x2c0] sm:$0xff] %v356
                %v358 = vld [vmem:[%s178 + $0x588] sm:$0xff]
                %359 = vst [vmem:[%s179 + $0x2c8] sm:$0xff] %v358
                %v360 = vld [vmem:[%s178 + $0x590] sm:$0xff]
                %361 = vst [vmem:[%s179 + $0x2d0] sm:$0xff] %v360
                %v362 = vld [vmem:[%s178 + $0x598] sm:$0xff]
                %363 = vst [vmem:[%s179 + $0x2d8] sm:$0xff] %v362
                %v364 = vld [vmem:[%s178 + $0x5a0] sm:$0xff]
                %365 = vst [vmem:[%s179 + $0x2e0] sm:$0xff] %v364
                %v366 = vld [vmem:[%s178 + $0x5a8] sm:$0xff]
                %367 = vst [vmem:[%s179 + $0x2e8] sm:$0xff] %v366
                %v368 = vld [vmem:[%s178 + $0x5b0] sm:$0xff]
                %369 = vst [vmem:[%s179 + $0x2f0] sm:$0xff] %v368
                %v370 = vld [vmem:[%s178 + $0x5b8] sm:$0xff]
                %371 = vst [vmem:[%s179 + $0x2f8] sm:$0xff] %v370
                %v372 = vld [vmem:[%s178 + $0x600] sm:$0xff]
                %373 = vst [vmem:[%s179 + $0x300] sm:$0xff] %v372
                %v374 = vld [vmem:[%s178 + $0x608] sm:$0xff]
                %375 = vst [vmem:[%s179 + $0x308] sm:$0xff] %v374
                %v376 = vld [vmem:[%s178 + $0x610] sm:$0xff]
                %377 = vst [vmem:[%s179 + $0x310] sm:$0xff] %v376
                %v378 = vld [vmem:[%s178 + $0x618] sm:$0xff]
                %379 = vst [vmem:[%s179 + $0x318] sm:$0xff] %v378
                %v380 = vld [vmem:[%s178 + $0x620] sm:$0xff]
                %381 = vst [vmem:[%s179 + $0x320] sm:$0xff] %v380
                %v382 = vld [vmem:[%s178 + $0x628] sm:$0xff]
                %383 = vst [vmem:[%s179 + $0x328] sm:$0xff] %v382
                %v384 = vld [vmem:[%s178 + $0x630] sm:$0xff]
                %385 = vst [vmem:[%s179 + $0x330] sm:$0xff] %v384
                %v386 = vld [vmem:[%s178 + $0x638] sm:$0xff]
                %387 = vst [vmem:[%s179 + $0x338] sm:$0xff] %v386
                %v388 = vld [vmem:[%s178 + $0x680] sm:$0xff]
                %389 = vst [vmem:[%s179 + $0x340] sm:$0xff] %v388
                %v390 = vld [vmem:[%s178 + $0x688] sm:$0xff]
                %391 = vst [vmem:[%s179 + $0x348] sm:$0xff] %v390
                %v392 = vld [vmem:[%s178 + $0x690] sm:$0xff]
                %393 = vst [vmem:[%s179 + $0x350] sm:$0xff] %v392
                %v394 = vld [vmem:[%s178 + $0x698] sm:$0xff]
                %395 = vst [vmem:[%s179 + $0x358] sm:$0xff] %v394
                %v396 = vld [vmem:[%s178 + $0x6a0] sm:$0xff]
                %397 = vst [vmem:[%s179 + $0x360] sm:$0xff] %v396
                %v398 = vld [vmem:[%s178 + $0x6a8] sm:$0xff]
                %399 = vst [vmem:[%s179 + $0x368] sm:$0xff] %v398
                %v400 = vld [vmem:[%s178 + $0x6b0] sm:$0xff]
                %401 = vst [vmem:[%s179 + $0x370] sm:$0xff] %v400
                %v402 = vld [vmem:[%s178 + $0x6b8] sm:$0xff]
                %403 = vst [vmem:[%s179 + $0x378] sm:$0xff] %v402
                %v404 = vld [vmem:[%s178 + $0x700] sm:$0xff]
                %405 = vst [vmem:[%s179 + $0x380] sm:$0xff] %v404
                %v406 = vld [vmem:[%s178 + $0x708] sm:$0xff]
                %407 = vst [vmem:[%s179 + $0x388] sm:$0xff] %v406
                %v408 = vld [vmem:[%s178 + $0x710] sm:$0xff]
                %409 = vst [vmem:[%s179 + $0x390] sm:$0xff] %v408
                %v410 = vld [vmem:[%s178 + $0x718] sm:$0xff]
                %411 = vst [vmem:[%s179 + $0x398] sm:$0xff] %v410
                %v412 = vld [vmem:[%s178 + $0x720] sm:$0xff]
                %413 = vst [vmem:[%s179 + $0x3a0] sm:$0xff] %v412
                %v414 = vld [vmem:[%s178 + $0x728] sm:$0xff]
                %415 = vst [vmem:[%s179 + $0x3a8] sm:$0xff] %v414
                %v416 = vld [vmem:[%s178 + $0x730] sm:$0xff]
                %417 = vst [vmem:[%s179 + $0x3b0] sm:$0xff] %v416
                %v418 = vld [vmem:[%s178 + $0x738] sm:$0xff]
                %419 = vst [vmem:[%s179 + $0x3b8] sm:$0xff] %v418
                %v420 = vld [vmem:[%s178 + $0x780] sm:$0xff]
                %421 = vst [vmem:[%s179 + $0x3c0] sm:$0xff] %v420
                %v422 = vld [vmem:[%s178 + $0x788] sm:$0xff]
                %423 = vst [vmem:[%s179 + $0x3c8] sm:$0xff] %v422
                %v424 = vld [vmem:[%s178 + $0x790] sm:$0xff]
                %425 = vst [vmem:[%s179 + $0x3d0] sm:$0xff] %v424
                %v426 = vld [vmem:[%s178 + $0x798] sm:$0xff]
                %427 = vst [vmem:[%s179 + $0x3d8] sm:$0xff] %v426
                %v428 = vld [vmem:[%s178 + $0x7a0] sm:$0xff]
                %429 = vst [vmem:[%s179 + $0x3e0] sm:$0xff] %v428
                %v430 = vld [vmem:[%s178 + $0x7a8] sm:$0xff]
                %431 = vst [vmem:[%s179 + $0x3e8] sm:$0xff] %v430
                %v432 = vld [vmem:[%s178 + $0x7b0] sm:$0xff]
                %433 = vst [vmem:[%s179 + $0x3f0] sm:$0xff] %v432
                %v434 = vld [vmem:[%s178 + $0x7b8] sm:$0xff]
                %435 = vst [vmem:[%s179 + $0x3f8] sm:$0xff] %v434
              $region41: #{plane_forward.1} parent=35 // loop_footer
                %s177 = sadd.s32 1, %s173
              $region42: #{plane_forward.1} parent=35 // loop_footer_branch
                %172 = sbr.rel target = $region38
              $region43: #{plane_forward.1} parent=35 // loop_exit
                _
            $region36: #{plane_forward.1} parent=31 // pred_fallthru
              _
            // Predicated region
            $region44: #{plane_forward.1} parent=31 // pred_check
              _
            $region45: #{plane_forward.1} parent=31 // pred_check_branch
              %437 = sbr.rel target = $region47
            $region46: #{plane_forward.1} parent=31 // pred_region
              _
            $region47: #{plane_forward.1} parent=31 // pred_fallthru
              _
          $region32: #{plane_forward.1} parent=27 // pred_fallthru
            _
          %438 = vnop
        $region28: #{plane_forward.1} parent=23 // pred_fallthru
          _
        // Predicated region
        $region48: #{plane_forward.1} parent=23 // pred_check
          %p439 = pneg %p59
        $region49: #{plane_forward.1} parent=23 // pred_check_branch
          %441 = sbr.rel (%p439) target = $region51
        $region50: #{plane_forward.1} parent=23 // pred_region
          %s442 = smul.u32 16, %s13
          %p443 = scmp.lt.s32.totalorder %s442, 31
          %s444 = scalar_select %p443, %s442, 31
          %s445 = smul.addr %s444, 2
          %s446 = scalar_lea.vmem %s1, %s445
          %s447 = smul.u32 16, %s13
        $region51: #{plane_forward.1} parent=23 // pred_fallthru
          _
      $region24: #{plane_forward.1} parent=5 // pred_fallthru
        _
      %p448 = scmp.le.s32.totalorder 1, %s13
      %p449 = scmp.lt.s32.totalorder %s13, 3
      %p450 = pnand %p448, %p449
      %p451 = pneg %p450
      // Predicated region
      $region52: #{plane_forward.1} parent=5 // pred_check
        _
      $region53: #{plane_forward.1} parent=5 // pred_check_branch
        %453 = sbr.rel (%p450) target = $region55
      $region54: #{plane_forward.1} parent=5 // pred_region
        %s454 = ssub.s32 %s13, 1
        %s455 = sand.u32 %s26, 1
        %s456 = sand.u32 %s26, 1
        %s457 = smul.addr %s456, 1024
        %s458 = scalar_lea.vmem [#allocation2], %s457
        // Predicated region
        $region56: #{plane_forward.1} parent=54 // pred_check
          %p459 = pneg %p39
        $region57: #{plane_forward.1} parent=54 // pred_check_branch
          %461 = sbr.rel (%p459) target = $region59
        $region58: #{plane_forward.1} parent=54 // pred_region
          _
        $region59: #{plane_forward.1} parent=54 // pred_fallthru
          _
        %s462 = sand.u32 %s26, 1
        %s463 = sand.u32 %s26, 1
        %s464 = smul.addr %s463, 1024
        %s465 = scalar_lea.vmem [#allocation2], %s464
        %p466 = pneg %p39
        %p467 = pneg %p36
        %s468 = smul.u32 16, %s18
        %p469 = scmp.lt.s32.totalorder %s468, 31
        %s470 = scalar_select %p469, %s468, 31
        %s471 = smul.addr %s470, 2
        %s472 = scalar_lea.vmem %s1, %s471
        %p473 = pneg %p65
        %p474 = pneg %p62
        %p475 = pneg %p86
        %p476 = pneg %p83
        %p477 = pneg %p107
        %p478 = pneg %p104
        %p479 = pneg %p133
        %p480 = pneg %p130
        %s481 = sand.u32 %s120, 1
        %s482 = scalar_lea.sflag [#allocation4], %s481
        %s483 = sand.u32 %s120, 1
        %s484 = smul.addr %s483, 128
        %s485 = scalar_lea.vmem [#allocation3], %s484
        %s486 = smul.u32 16, %s18
        %s487 = smul.u32 16, %s18
        %p488 = scmp.lt.s32.totalorder %s487, 31
        %s489 = scalar_select %p488, %s487, 31
        %s490 = smul.addr %s489, 2
        %s491 = scalar_lea.vmem %s1, %s490
        %s492 = smul.u32 16, %s18
        %s493 = smul.u32 16, %s18
        %v495 = vld [vmem:[%s2] sm:$0xf]
        %v496 = vld [vmem:[%s2 + $0x4] sm:$0xf]
        %v497 = vld [vmem:[%s2 + $0x8] sm:$0xf]
        %v498 = vld [vmem:[%s2 + $0xc] sm:$0xf]
        %v499 = vld [vmem:[%s2 + $0x10] sm:$0xf]
        %v500 = vld [vmem:[%s2 + $0x14] sm:$0xf]
        %v501 = vld [vmem:[%s2 + $0x18] sm:$0xf]
        %v502 = vld [vmem:[%s2 + $0x1c] sm:$0xf]
        %v503 = vld [vmem:[%s2 + $0x20] sm:$0xf]
        %v504 = vld [vmem:[%s2 + $0x24] sm:$0xf]
        %v505 = vld [vmem:[%s2 + $0x28] sm:$0xf]
        %v506 = vld [vmem:[%s2 + $0x2c] sm:$0xf]
        %v507 = vld [vmem:[%s2 + $0x30] sm:$0xf]
        %v508 = vld [vmem:[%s2 + $0x34] sm:$0xf]
        %v509 = vld [vmem:[%s2 + $0x38] sm:$0xf]
        %v510 = vld [vmem:[%s2 + $0x3c] sm:$0xf]
        %v511 = vld [vmem:[%s2 + $0x40] sm:$0xf]
        %v512 = vld [vmem:[%s2 + $0x44] sm:$0xf]
        %v513 = vld [vmem:[%s2 + $0x48] sm:$0xf]
        %v514 = vld [vmem:[%s2 + $0x4c] sm:$0xf]
        %v515 = vld [vmem:[%s2 + $0x50] sm:$0xf]
        %v516 = vld [vmem:[%s2 + $0x54] sm:$0xf]
        %v517 = vld [vmem:[%s2 + $0x58] sm:$0xf]
        %v518 = vld [vmem:[%s2 + $0x5c] sm:$0xf]
        %v519 = vld [vmem:[%s2 + $0x60] sm:$0xf]
        %v520 = vld [vmem:[%s2 + $0x64] sm:$0xf]
        %v521 = vld [vmem:[%s2 + $0x68] sm:$0xf]
        %v522 = vld [vmem:[%s2 + $0x6c] sm:$0xf]
        %v523 = vld [vmem:[%s2 + $0x70] sm:$0xf]
        %v524 = vld [vmem:[%s2 + $0x74] sm:$0xf]
        %v525 = vld [vmem:[%s2 + $0x78] sm:$0xf]
        %v526 = vld [vmem:[%s2 + $0x7c] sm:$0xf]
        %v527 = vld [vmem:[%s458] sm:$0xff]
        %v528 = vld [vmem:[%s458 + $0x8] sm:$0xff]
        %v529 = vld [vmem:[%s458 + $0x10] sm:$0xff]
        %v530 = vld [vmem:[%s458 + $0x18] sm:$0xff]
        %v531 = vld [vmem:[%s458 + $0x20] sm:$0xff]
        %v532 = vld [vmem:[%s458 + $0x28] sm:$0xff]
        %v533 = vld [vmem:[%s458 + $0x30] sm:$0xff]
        %v534 = vld [vmem:[%s458 + $0x38] sm:$0xff]
        %v535 = vld [vmem:[%s458 + $0x40] sm:$0xff]
        %v536 = vld [vmem:[%s458 + $0x48] sm:$0xff]
        %v537 = vld [vmem:[%s458 + $0x50] sm:$0xff]
        %v538 = vld [vmem:[%s458 + $0x58] sm:$0xff]
        %v539 = vld [vmem:[%s458 + $0x60] sm:$0xff]
        %v540 = vld [vmem:[%s458 + $0x68] sm:$0xff]
        %v541 = vld [vmem:[%s458 + $0x70] sm:$0xff]
        %v542 = vld [vmem:[%s458 + $0x78] sm:$0xff]
        %v543 = vld [vmem:[%s458 + $0x80] sm:$0xff]
        %v544 = vld [vmem:[%s458 + $0x88] sm:$0xff]
        %v545 = vld [vmem:[%s458 + $0x90] sm:$0xff]
        %v546 = vld [vmem:[%s458 + $0x98] sm:$0xff]
        %v547 = vld [vmem:[%s458 + $0xa0] sm:$0xff]
        %v548 = vld [vmem:[%s458 + $0xa8] sm:$0xff]
        %v549 = vld [vmem:[%s458 + $0xb0] sm:$0xff]
        %v550 = vld [vmem:[%s458 + $0xb8] sm:$0xff]
        %v551 = vld [vmem:[%s458 + $0xc0] sm:$0xff]
        %v552 = vld [vmem:[%s458 + $0xc8] sm:$0xff]
        %v553 = vld [vmem:[%s458 + $0xd0] sm:$0xff]
        %v554 = vld [vmem:[%s458 + $0xd8] sm:$0xff]
        %v555 = vld [vmem:[%s458 + $0xe0] sm:$0xff]
        %v556 = vld [vmem:[%s458 + $0xe8] sm:$0xff]
        %v557 = vld [vmem:[%s458 + $0xf0] sm:$0xff]
        %v558 = vld [vmem:[%s458 + $0xf8] sm:$0xff]
        %v559 = vld [vmem:[%s458 + $0x100] sm:$0xff]
        %v560 = vld [vmem:[%s458 + $0x108] sm:$0xff]
        %v561 = vld [vmem:[%s458 + $0x110] sm:$0xff]
        %v562 = vld [vmem:[%s458 + $0x118] sm:$0xff]
        %v563 = vld [vmem:[%s458 + $0x120] sm:$0xff]
        %v564 = vld [vmem:[%s458 + $0x128] sm:$0xff]
        %v565 = vld [vmem:[%s458 + $0x130] sm:$0xff]
        %v566 = vld [vmem:[%s458 + $0x138] sm:$0xff]
        %v567 = vld [vmem:[%s458 + $0x140] sm:$0xff]
        %v568 = vld [vmem:[%s458 + $0x148] sm:$0xff]
        %v569 = vld [vmem:[%s458 + $0x150] sm:$0xff]
        %v570 = vld [vmem:[%s458 + $0x158] sm:$0xff]
        %v571 = vld [vmem:[%s458 + $0x160] sm:$0xff]
        %v572 = vld [vmem:[%s458 + $0x168] sm:$0xff]
        %v573 = vld [vmem:[%s458 + $0x170] sm:$0xff]
        %v574 = vld [vmem:[%s458 + $0x178] sm:$0xff]
        %v575 = vld [vmem:[%s458 + $0x180] sm:$0xff]
        %v576 = vld [vmem:[%s458 + $0x188] sm:$0xff]
        %v577 = vld [vmem:[%s458 + $0x190] sm:$0xff]
        %v578 = vld [vmem:[%s458 + $0x198] sm:$0xff]
        %v579 = vld [vmem:[%s458 + $0x1a0] sm:$0xff]
        %v580 = vld [vmem:[%s458 + $0x1a8] sm:$0xff]
        %v581 = vld [vmem:[%s458 + $0x1b0] sm:$0xff]
        %v582 = vld [vmem:[%s458 + $0x1b8] sm:$0xff]
        %v583 = vld [vmem:[%s458 + $0x1c0] sm:$0xff]
        %v584 = vld [vmem:[%s458 + $0x1c8] sm:$0xff]
        %v585 = vld [vmem:[%s458 + $0x1d0] sm:$0xff]
        %v586 = vld [vmem:[%s458 + $0x1d8] sm:$0xff]
        %v587 = vld [vmem:[%s458 + $0x1e0] sm:$0xff]
        %v588 = vld [vmem:[%s458 + $0x1e8] sm:$0xff]
        %v589 = vld [vmem:[%s458 + $0x1f0] sm:$0xff]
        %v590 = vld [vmem:[%s458 + $0x1f8] sm:$0xff]
        %v591 = vld [vmem:[%s458 + $0x200] sm:$0xff]
        %v592 = vld [vmem:[%s458 + $0x208] sm:$0xff]
        %v593 = vld [vmem:[%s458 + $0x210] sm:$0xff]
        %v594 = vld [vmem:[%s458 + $0x218] sm:$0xff]
        %v595 = vld [vmem:[%s458 + $0x220] sm:$0xff]
        %v596 = vld [vmem:[%s458 + $0x228] sm:$0xff]
        %v597 = vld [vmem:[%s458 + $0x230] sm:$0xff]
        %v598 = vld [vmem:[%s458 + $0x238] sm:$0xff]
        %v599 = vld [vmem:[%s458 + $0x240] sm:$0xff]
        %v600 = vld [vmem:[%s458 + $0x248] sm:$0xff]
        %v601 = vld [vmem:[%s458 + $0x250] sm:$0xff]
        %v602 = vld [vmem:[%s458 + $0x258] sm:$0xff]
        %v603 = vld [vmem:[%s458 + $0x260] sm:$0xff]
        %v604 = vld [vmem:[%s458 + $0x268] sm:$0xff]
        %v605 = vld [vmem:[%s458 + $0x270] sm:$0xff]
        %v606 = vld [vmem:[%s458 + $0x278] sm:$0xff]
        %v607 = vld [vmem:[%s458 + $0x280] sm:$0xff]
        %v608 = vld [vmem:[%s458 + $0x288] sm:$0xff]
        %v609 = vld [vmem:[%s458 + $0x290] sm:$0xff]
        %v610 = vld [vmem:[%s458 + $0x298] sm:$0xff]
        %v611 = vld [vmem:[%s458 + $0x2a0] sm:$0xff]
        %v612 = vld [vmem:[%s458 + $0x2a8] sm:$0xff]
        %v613 = vld [vmem:[%s458 + $0x2b0] sm:$0xff]
        %v614 = vld [vmem:[%s458 + $0x2b8] sm:$0xff]
        %v615 = vld [vmem:[%s458 + $0x2c0] sm:$0xff]
        %v616 = vld [vmem:[%s458 + $0x2c8] sm:$0xff]
        %v617 = vld [vmem:[%s458 + $0x2d0] sm:$0xff]
        %v618 = vld [vmem:[%s458 + $0x2d8] sm:$0xff]
        %v619 = vld [vmem:[%s458 + $0x2e0] sm:$0xff]
        %v620 = vld [vmem:[%s458 + $0x2e8] sm:$0xff]
        %v621 = vld [vmem:[%s458 + $0x2f0] sm:$0xff]
        %v622 = vld [vmem:[%s458 + $0x2f8] sm:$0xff]
        %v623 = vld [vmem:[%s458 + $0x300] sm:$0xff]
        %v624 = vld [vmem:[%s458 + $0x308] sm:$0xff]
        %v625 = vld [vmem:[%s458 + $0x310] sm:$0xff]
        %v626 = vld [vmem:[%s458 + $0x318] sm:$0xff]
        %v627 = vld [vmem:[%s458 + $0x320] sm:$0xff]
        %v628 = vld [vmem:[%s458 + $0x328] sm:$0xff]
        %v629 = vld [vmem:[%s458 + $0x330] sm:$0xff]
        %v630 = vld [vmem:[%s458 + $0x338] sm:$0xff]
        %v631 = vld [vmem:[%s458 + $0x340] sm:$0xff]
        %v632 = vld [vmem:[%s458 + $0x348] sm:$0xff]
        %v633 = vld [vmem:[%s458 + $0x350] sm:$0xff]
        %v634 = vld [vmem:[%s458 + $0x358] sm:$0xff]
        %v635 = vld [vmem:[%s458 + $0x360] sm:$0xff]
        %v636 = vld [vmem:[%s458 + $0x368] sm:$0xff]
        %v637 = vld [vmem:[%s458 + $0x370] sm:$0xff]
        %v638 = vld [vmem:[%s458 + $0x378] sm:$0xff]
        %v639 = vld [vmem:[%s458 + $0x380] sm:$0xff]
        %v640 = vld [vmem:[%s458 + $0x388] sm:$0xff]
        %v641 = vld [vmem:[%s458 + $0x390] sm:$0xff]
        %v642 = vld [vmem:[%s458 + $0x398] sm:$0xff]
        %v643 = vld [vmem:[%s458 + $0x3a0] sm:$0xff]
        %v644 = vld [vmem:[%s458 + $0x3a8] sm:$0xff]
        %v645 = vld [vmem:[%s458 + $0x3b0] sm:$0xff]
        %v646 = vld [vmem:[%s458 + $0x3b8] sm:$0xff]
        %v647 = vld [vmem:[%s458 + $0x3c0] sm:$0xff]
        %v648 = vld [vmem:[%s458 + $0x3c8] sm:$0xff]
        %v649 = vld [vmem:[%s458 + $0x3d0] sm:$0xff]
        %v650 = vld [vmem:[%s458 + $0x3d8] sm:$0xff]
        %v651 = vld [vmem:[%s458 + $0x3e0] sm:$0xff]
        %v652 = vld [vmem:[%s458 + $0x3e8] sm:$0xff]
        %v653 = vld [vmem:[%s458 + $0x3f0] sm:$0xff]
        %v654 = vld [vmem:[%s458 + $0x3f8] sm:$0xff]
        %v687 = vunpack.c.l.b16 %v495
        %v688 = vunpack.c.l.b16 %v496
        %v689 = vunpack.c.l.b16 %v497
        %v690 = vunpack.c.l.b16 %v498
        %v691 = vunpack.c.l.b16 %v499
        %v692 = vunpack.c.l.b16 %v500
        %v693 = vunpack.c.l.b16 %v501
        %v694 = vunpack.c.l.b16 %v502
        %v695 = vunpack.c.l.b16 %v503
        %v696 = vunpack.c.l.b16 %v504
        %v697 = vunpack.c.l.b16 %v505
        %v698 = vunpack.c.l.b16 %v506
        %v699 = vunpack.c.l.b16 %v507
        %v700 = vunpack.c.l.b16 %v508
        %v701 = vunpack.c.l.b16 %v509
        %v702 = vunpack.c.l.b16 %v510
        %v703 = vunpack.c.l.b16 %v511
        %v704 = vunpack.c.l.b16 %v512
        %v705 = vunpack.c.l.b16 %v513
        %v706 = vunpack.c.l.b16 %v514
        %v707 = vunpack.c.l.b16 %v515
        %v708 = vunpack.c.l.b16 %v516
        %v709 = vunpack.c.l.b16 %v517
        %v710 = vunpack.c.l.b16 %v518
        %v711 = vunpack.c.l.b16 %v519
        %v712 = vunpack.c.l.b16 %v520
        %v713 = vunpack.c.l.b16 %v521
        %v714 = vunpack.c.l.b16 %v522
        %v715 = vunpack.c.l.b16 %v523
        %v716 = vunpack.c.l.b16 %v524
        %v717 = vunpack.c.l.b16 %v525
        %v718 = vunpack.c.l.b16 %v526
        %v719 = vpack.c.b16 %v688, %v687
        %v720 = vpack.c.b16 %v690, %v689
        %v721 = vpack.c.b16 %v692, %v691
        %v722 = vpack.c.b16 %v694, %v693
        %v723 = vpack.c.b16 %v696, %v695
        %v724 = vpack.c.b16 %v698, %v697
        %v725 = vpack.c.b16 %v700, %v699
        %v726 = vpack.c.b16 %v702, %v701
        %v727 = vpack.c.b16 %v704, %v703
        %v728 = vpack.c.b16 %v706, %v705
        %v729 = vpack.c.b16 %v708, %v707
        %v730 = vpack.c.b16 %v710, %v709
        %v731 = vpack.c.b16 %v712, %v711
        %v732 = vpack.c.b16 %v714, %v713
        %v733 = vpack.c.b16 %v716, %v715
        %v734 = vpack.c.b16 %v718, %v717
        %v879 = vunpack.c.l.b16 %v527
        %v880 = vunpack.c.h.b16 %v527
        %v881 = vunpack.c.l.b16 %v528
        %v882 = vunpack.c.h.b16 %v528
        %v883 = vunpack.c.l.b16 %v529
        %v884 = vunpack.c.h.b16 %v529
        %v885 = vunpack.c.l.b16 %v530
        %v886 = vunpack.c.h.b16 %v530
        %v887 = vunpack.c.l.b16 %v531
        %v888 = vunpack.c.h.b16 %v531
        %v889 = vunpack.c.l.b16 %v532
        %v890 = vunpack.c.h.b16 %v532
        %v891 = vunpack.c.l.b16 %v533
        %v892 = vunpack.c.h.b16 %v533
        %v893 = vunpack.c.l.b16 %v534
        %v894 = vunpack.c.h.b16 %v534
        %v895 = vunpack.c.l.b16 %v535
        %v896 = vunpack.c.h.b16 %v535
        %v897 = vunpack.c.l.b16 %v536
        %v898 = vunpack.c.h.b16 %v536
        %v899 = vunpack.c.l.b16 %v537
        %v900 = vunpack.c.h.b16 %v537
        %v901 = vunpack.c.l.b16 %v538
        %v902 = vunpack.c.h.b16 %v538
        %v903 = vunpack.c.l.b16 %v539
        %v904 = vunpack.c.h.b16 %v539
        %v905 = vunpack.c.l.b16 %v540
        %v906 = vunpack.c.h.b16 %v540
        %v907 = vunpack.c.l.b16 %v541
        %v908 = vunpack.c.h.b16 %v541
        %v909 = vunpack.c.l.b16 %v542
        %v910 = vunpack.c.h.b16 %v542
        %v911 = vunpack.c.l.b16 %v543
        %v912 = vunpack.c.h.b16 %v543
        %v913 = vunpack.c.l.b16 %v544
        %v914 = vunpack.c.h.b16 %v544
        %v915 = vunpack.c.l.b16 %v545
        %v916 = vunpack.c.h.b16 %v545
        %v917 = vunpack.c.l.b16 %v546
        %v918 = vunpack.c.h.b16 %v546
        %v919 = vunpack.c.l.b16 %v547
        %v920 = vunpack.c.h.b16 %v547
        %v921 = vunpack.c.l.b16 %v548
        %v922 = vunpack.c.h.b16 %v548
        %v923 = vunpack.c.l.b16 %v549
        %v924 = vunpack.c.h.b16 %v549
        %v925 = vunpack.c.l.b16 %v550
        %v926 = vunpack.c.h.b16 %v550
        %v927 = vunpack.c.l.b16 %v551
        %v928 = vunpack.c.h.b16 %v551
        %v929 = vunpack.c.l.b16 %v552
        %v930 = vunpack.c.h.b16 %v552
        %v931 = vunpack.c.l.b16 %v553
        %v932 = vunpack.c.h.b16 %v553
        %v933 = vunpack.c.l.b16 %v554
        %v934 = vunpack.c.h.b16 %v554
        %v935 = vunpack.c.l.b16 %v555
        %v936 = vunpack.c.h.b16 %v555
        %v937 = vunpack.c.l.b16 %v556
        %v938 = vunpack.c.h.b16 %v556
        %v939 = vunpack.c.l.b16 %v557
        %v940 = vunpack.c.h.b16 %v557
        %v941 = vunpack.c.l.b16 %v558
        %v942 = vunpack.c.h.b16 %v558
        %v943 = vunpack.c.l.b16 %v559
        %v944 = vunpack.c.h.b16 %v559
        %v945 = vunpack.c.l.b16 %v560
        %v946 = vunpack.c.h.b16 %v560
        %v947 = vunpack.c.l.b16 %v561
        %v948 = vunpack.c.h.b16 %v561
        %v949 = vunpack.c.l.b16 %v562
        %v950 = vunpack.c.h.b16 %v562
        %v951 = vunpack.c.l.b16 %v563
        %v952 = vunpack.c.h.b16 %v563
        %v953 = vunpack.c.l.b16 %v564
        %v954 = vunpack.c.h.b16 %v564
        %v955 = vunpack.c.l.b16 %v565
        %v956 = vunpack.c.h.b16 %v565
        %v957 = vunpack.c.l.b16 %v566
        %v958 = vunpack.c.h.b16 %v566
        %v959 = vunpack.c.l.b16 %v567
        %v960 = vunpack.c.h.b16 %v567
        %v961 = vunpack.c.l.b16 %v568
        %v962 = vunpack.c.h.b16 %v568
        %v963 = vunpack.c.l.b16 %v569
        %v964 = vunpack.c.h.b16 %v569
        %v965 = vunpack.c.l.b16 %v570
        %v966 = vunpack.c.h.b16 %v570
        %v967 = vunpack.c.l.b16 %v571
        %v968 = vunpack.c.h.b16 %v571
        %v969 = vunpack.c.l.b16 %v572
        %v970 = vunpack.c.h.b16 %v572
        %v971 = vunpack.c.l.b16 %v573
        %v972 = vunpack.c.h.b16 %v573
        %v973 = vunpack.c.l.b16 %v574
        %v974 = vunpack.c.h.b16 %v574
        %v975 = vunpack.c.l.b16 %v575
        %v976 = vunpack.c.h.b16 %v575
        %v977 = vunpack.c.l.b16 %v576
        %v978 = vunpack.c.h.b16 %v576
        %v979 = vunpack.c.l.b16 %v577
        %v980 = vunpack.c.h.b16 %v577
        %v981 = vunpack.c.l.b16 %v578
        %v982 = vunpack.c.h.b16 %v578
        %v983 = vunpack.c.l.b16 %v579
        %v984 = vunpack.c.h.b16 %v579
        %v985 = vunpack.c.l.b16 %v580
        %v986 = vunpack.c.h.b16 %v580
        %v987 = vunpack.c.l.b16 %v581
        %v988 = vunpack.c.h.b16 %v581
        %v989 = vunpack.c.l.b16 %v582
        %v990 = vunpack.c.h.b16 %v582
        %v991 = vunpack.c.l.b16 %v583
        %v992 = vunpack.c.h.b16 %v583
        %v993 = vunpack.c.l.b16 %v584
        %v994 = vunpack.c.h.b16 %v584
        %v995 = vunpack.c.l.b16 %v585
        %v996 = vunpack.c.h.b16 %v585
        %v997 = vunpack.c.l.b16 %v586
        %v998 = vunpack.c.h.b16 %v586
        %v999 = vunpack.c.l.b16 %v587
        %v1000 = vunpack.c.h.b16 %v587
        %v1001 = vunpack.c.l.b16 %v588
        %v1002 = vunpack.c.h.b16 %v588
        %v1003 = vunpack.c.l.b16 %v589
        %v1004 = vunpack.c.h.b16 %v589
        %v1005 = vunpack.c.l.b16 %v590
        %v1006 = vunpack.c.h.b16 %v590
        %v1007 = vunpack.c.l.b16 %v591
        %v1008 = vunpack.c.h.b16 %v591
        %v1009 = vunpack.c.l.b16 %v592
        %v1010 = vunpack.c.h.b16 %v592
        %v1011 = vunpack.c.l.b16 %v593
        %v1012 = vunpack.c.h.b16 %v593
        %v1013 = vunpack.c.l.b16 %v594
        %v1014 = vunpack.c.h.b16 %v594
        %v1015 = vunpack.c.l.b16 %v595
        %v1016 = vunpack.c.h.b16 %v595
        %v1017 = vunpack.c.l.b16 %v596
        %v1018 = vunpack.c.h.b16 %v596
        %v1019 = vunpack.c.l.b16 %v597
        %v1020 = vunpack.c.h.b16 %v597
        %v1021 = vunpack.c.l.b16 %v598
        %v1022 = vunpack.c.h.b16 %v598
        %v1023 = vunpack.c.l.b16 %v599
        %v1024 = vunpack.c.h.b16 %v599
        %v1025 = vunpack.c.l.b16 %v600
        %v1026 = vunpack.c.h.b16 %v600
        %v1027 = vunpack.c.l.b16 %v601
        %v1028 = vunpack.c.h.b16 %v601
        %v1029 = vunpack.c.l.b16 %v602
        %v1030 = vunpack.c.h.b16 %v602
        %v1031 = vunpack.c.l.b16 %v603
        %v1032 = vunpack.c.h.b16 %v603
        %v1033 = vunpack.c.l.b16 %v604
        %v1034 = vunpack.c.h.b16 %v604
        %v1035 = vunpack.c.l.b16 %v605
        %v1036 = vunpack.c.h.b16 %v605
        %v1037 = vunpack.c.l.b16 %v606
        %v1038 = vunpack.c.h.b16 %v606
        %v1039 = vunpack.c.l.b16 %v607
        %v1040 = vunpack.c.h.b16 %v607
        %v1041 = vunpack.c.l.b16 %v608
        %v1042 = vunpack.c.h.b16 %v608
        %v1043 = vunpack.c.l.b16 %v609
        %v1044 = vunpack.c.h.b16 %v609
        %v1045 = vunpack.c.l.b16 %v610
        %v1046 = vunpack.c.h.b16 %v610
        %v1047 = vunpack.c.l.b16 %v611
        %v1048 = vunpack.c.h.b16 %v611
        %v1049 = vunpack.c.l.b16 %v612
        %v1050 = vunpack.c.h.b16 %v612
        %v1051 = vunpack.c.l.b16 %v613
        %v1052 = vunpack.c.h.b16 %v613
        %v1053 = vunpack.c.l.b16 %v614
        %v1054 = vunpack.c.h.b16 %v614
        %v1055 = vunpack.c.l.b16 %v615
        %v1056 = vunpack.c.h.b16 %v615
        %v1057 = vunpack.c.l.b16 %v616
        %v1058 = vunpack.c.h.b16 %v616
        %v1059 = vunpack.c.l.b16 %v617
        %v1060 = vunpack.c.h.b16 %v617
        %v1061 = vunpack.c.l.b16 %v618
        %v1062 = vunpack.c.h.b16 %v618
        %v1063 = vunpack.c.l.b16 %v619
        %v1064 = vunpack.c.h.b16 %v619
        %v1065 = vunpack.c.l.b16 %v620
        %v1066 = vunpack.c.h.b16 %v620
        %v1067 = vunpack.c.l.b16 %v621
        %v1068 = vunpack.c.h.b16 %v621
        %v1069 = vunpack.c.l.b16 %v622
        %v1070 = vunpack.c.h.b16 %v622
        %v1071 = vunpack.c.l.b16 %v623
        %v1072 = vunpack.c.h.b16 %v623
        %v1073 = vunpack.c.l.b16 %v624
        %v1074 = vunpack.c.h.b16 %v624
        %v1075 = vunpack.c.l.b16 %v625
        %v1076 = vunpack.c.h.b16 %v625
        %v1077 = vunpack.c.l.b16 %v626
        %v1078 = vunpack.c.h.b16 %v626
        %v1079 = vunpack.c.l.b16 %v627
        %v1080 = vunpack.c.h.b16 %v627
        %v1081 = vunpack.c.l.b16 %v628
        %v1082 = vunpack.c.h.b16 %v628
        %v1083 = vunpack.c.l.b16 %v629
        %v1084 = vunpack.c.h.b16 %v629
        %v1085 = vunpack.c.l.b16 %v630
        %v1086 = vunpack.c.h.b16 %v630
        %v1087 = vunpack.c.l.b16 %v631
        %v1088 = vunpack.c.h.b16 %v631
        %v1089 = vunpack.c.l.b16 %v632
        %v1090 = vunpack.c.h.b16 %v632
        %v1091 = vunpack.c.l.b16 %v633
        %v1092 = vunpack.c.h.b16 %v633
        %v1093 = vunpack.c.l.b16 %v634
        %v1094 = vunpack.c.h.b16 %v634
        %v1095 = vunpack.c.l.b16 %v635
        %v1096 = vunpack.c.h.b16 %v635
        %v1097 = vunpack.c.l.b16 %v636
        %v1098 = vunpack.c.h.b16 %v636
        %v1099 = vunpack.c.l.b16 %v637
        %v1100 = vunpack.c.h.b16 %v637
        %v1101 = vunpack.c.l.b16 %v638
        %v1102 = vunpack.c.h.b16 %v638
        %v1103 = vunpack.c.l.b16 %v639
        %v1104 = vunpack.c.h.b16 %v639
        %v1105 = vunpack.c.l.b16 %v640
        %v1106 = vunpack.c.h.b16 %v640
        %v1107 = vunpack.c.l.b16 %v641
        %v1108 = vunpack.c.h.b16 %v641
        %v1109 = vunpack.c.l.b16 %v642
        %v1110 = vunpack.c.h.b16 %v642
        %v1111 = vunpack.c.l.b16 %v643
        %v1112 = vunpack.c.h.b16 %v643
        %v1113 = vunpack.c.l.b16 %v644
        %v1114 = vunpack.c.h.b16 %v644
        %v1115 = vunpack.c.l.b16 %v645
        %v1116 = vunpack.c.h.b16 %v645
        %v1117 = vunpack.c.l.b16 %v646
        %v1118 = vunpack.c.h.b16 %v646
        %v1119 = vunpack.c.l.b16 %v647
        %v1120 = vunpack.c.h.b16 %v647
        %v1121 = vunpack.c.l.b16 %v648
        %v1122 = vunpack.c.h.b16 %v648
        %v1123 = vunpack.c.l.b16 %v649
        %v1124 = vunpack.c.h.b16 %v649
        %v1125 = vunpack.c.l.b16 %v650
        %v1126 = vunpack.c.h.b16 %v650
        %v1127 = vunpack.c.l.b16 %v651
        %v1128 = vunpack.c.h.b16 %v651
        %v1129 = vunpack.c.l.b16 %v652
        %v1130 = vunpack.c.h.b16 %v652
        %v1131 = vunpack.c.l.b16 %v653
        %v1132 = vunpack.c.h.b16 %v653
        %v1133 = vunpack.c.l.b16 %v654
        %v1134 = vunpack.c.h.b16 %v654
        %v1135 = vpack.c.b16 %v895, %v879
        %v1136 = vpack.c.b16 %v896, %v880
        %v1137 = vpack.c.b16 %v897, %v881
        %v1138 = vpack.c.b16 %v898, %v882
        %v1139 = vpack.c.b16 %v899, %v883
        %v1140 = vpack.c.b16 %v900, %v884
        %v1141 = vpack.c.b16 %v901, %v885
        %v1142 = vpack.c.b16 %v902, %v886
        %v1143 = vpack.c.b16 %v903, %v887
        %v1144 = vpack.c.b16 %v904, %v888
        %v1145 = vpack.c.b16 %v905, %v889
        %v1146 = vpack.c.b16 %v906, %v890
        %v1147 = vpack.c.b16 %v907, %v891
        %v1148 = vpack.c.b16 %v908, %v892
        %v1149 = vpack.c.b16 %v909, %v893
        %v1150 = vpack.c.b16 %v910, %v894
        %v1151 = vpack.c.b16 %v927, %v911
        %v1152 = vpack.c.b16 %v928, %v912
        %v1153 = vpack.c.b16 %v929, %v913
        %v1154 = vpack.c.b16 %v930, %v914
        %v1155 = vpack.c.b16 %v931, %v915
        %v1156 = vpack.c.b16 %v932, %v916
        %v1157 = vpack.c.b16 %v933, %v917
        %v1158 = vpack.c.b16 %v934, %v918
        %v1159 = vpack.c.b16 %v935, %v919
        %v1160 = vpack.c.b16 %v936, %v920
        %v1161 = vpack.c.b16 %v937, %v921
        %v1162 = vpack.c.b16 %v938, %v922
        %v1163 = vpack.c.b16 %v939, %v923
        %v1164 = vpack.c.b16 %v940, %v924
        %v1165 = vpack.c.b16 %v941, %v925
        %v1166 = vpack.c.b16 %v942, %v926
        %v1167 = vpack.c.b16 %v959, %v943
        %v1168 = vpack.c.b16 %v960, %v944
        %v1169 = vpack.c.b16 %v961, %v945
        %v1170 = vpack.c.b16 %v962, %v946
        %v1171 = vpack.c.b16 %v963, %v947
        %v1172 = vpack.c.b16 %v964, %v948
        %v1173 = vpack.c.b16 %v965, %v949
        %v1174 = vpack.c.b16 %v966, %v950
        %v1175 = vpack.c.b16 %v967, %v951
        %v1176 = vpack.c.b16 %v968, %v952
        %v1177 = vpack.c.b16 %v969, %v953
        %v1178 = vpack.c.b16 %v970, %v954
        %v1179 = vpack.c.b16 %v971, %v955
        %v1180 = vpack.c.b16 %v972, %v956
        %v1181 = vpack.c.b16 %v973, %v957
        %v1182 = vpack.c.b16 %v974, %v958
        %v1183 = vpack.c.b16 %v991, %v975
        %v1184 = vpack.c.b16 %v992, %v976
        %v1185 = vpack.c.b16 %v993, %v977
        %v1186 = vpack.c.b16 %v994, %v978
        %v1187 = vpack.c.b16 %v995, %v979
        %v1188 = vpack.c.b16 %v996, %v980
        %v1189 = vpack.c.b16 %v997, %v981
        %v1190 = vpack.c.b16 %v998, %v982
        %v1191 = vpack.c.b16 %v999, %v983
        %v1192 = vpack.c.b16 %v1000, %v984
        %v1193 = vpack.c.b16 %v1001, %v985
        %v1194 = vpack.c.b16 %v1002, %v986
        %v1195 = vpack.c.b16 %v1003, %v987
        %v1196 = vpack.c.b16 %v1004, %v988
        %v1197 = vpack.c.b16 %v1005, %v989
        %v1198 = vpack.c.b16 %v1006, %v990
        %v1199 = vpack.c.b16 %v1023, %v1007
        %v1200 = vpack.c.b16 %v1024, %v1008
        %v1201 = vpack.c.b16 %v1025, %v1009
        %v1202 = vpack.c.b16 %v1026, %v1010
        %v1203 = vpack.c.b16 %v1027, %v1011
        %v1204 = vpack.c.b16 %v1028, %v1012
        %v1205 = vpack.c.b16 %v1029, %v1013
        %v1206 = vpack.c.b16 %v1030, %v1014
        %v1207 = vpack.c.b16 %v1031, %v1015
        %v1208 = vpack.c.b16 %v1032, %v1016
        %v1209 = vpack.c.b16 %v1033, %v1017
        %v1210 = vpack.c.b16 %v1034, %v1018
        %v1211 = vpack.c.b16 %v1035, %v1019
        %v1212 = vpack.c.b16 %v1036, %v1020
        %v1213 = vpack.c.b16 %v1037, %v1021
        %v1214 = vpack.c.b16 %v1038, %v1022
        %v1215 = vpack.c.b16 %v1055, %v1039
        %v1216 = vpack.c.b16 %v1056, %v1040
        %v1217 = vpack.c.b16 %v1057, %v1041
        %v1218 = vpack.c.b16 %v1058, %v1042
        %v1219 = vpack.c.b16 %v1059, %v1043
        %v1220 = vpack.c.b16 %v1060, %v1044
        %v1221 = vpack.c.b16 %v1061, %v1045
        %v1222 = vpack.c.b16 %v1062, %v1046
        %v1223 = vpack.c.b16 %v1063, %v1047
        %v1224 = vpack.c.b16 %v1064, %v1048
        %v1225 = vpack.c.b16 %v1065, %v1049
        %v1226 = vpack.c.b16 %v1066, %v1050
        %v1227 = vpack.c.b16 %v1067, %v1051
        %v1228 = vpack.c.b16 %v1068, %v1052
        %v1229 = vpack.c.b16 %v1069, %v1053
        %v1230 = vpack.c.b16 %v1070, %v1054
        %v1231 = vpack.c.b16 %v1087, %v1071
        %v1232 = vpack.c.b16 %v1088, %v1072
        %v1233 = vpack.c.b16 %v1089, %v1073
        %v1234 = vpack.c.b16 %v1090, %v1074
        %v1235 = vpack.c.b16 %v1091, %v1075
        %v1236 = vpack.c.b16 %v1092, %v1076
        %v1237 = vpack.c.b16 %v1093, %v1077
        %v1238 = vpack.c.b16 %v1094, %v1078
        %v1239 = vpack.c.b16 %v1095, %v1079
        %v1240 = vpack.c.b16 %v1096, %v1080
        %v1241 = vpack.c.b16 %v1097, %v1081
        %v1242 = vpack.c.b16 %v1098, %v1082
        %v1243 = vpack.c.b16 %v1099, %v1083
        %v1244 = vpack.c.b16 %v1100, %v1084
        %v1245 = vpack.c.b16 %v1101, %v1085
        %v1246 = vpack.c.b16 %v1102, %v1086
        %v1247 = vpack.c.b16 %v1119, %v1103
        %v1248 = vpack.c.b16 %v1120, %v1104
        %v1249 = vpack.c.b16 %v1121, %v1105
        %v1250 = vpack.c.b16 %v1122, %v1106
        %v1251 = vpack.c.b16 %v1123, %v1107
        %v1252 = vpack.c.b16 %v1124, %v1108
        %v1253 = vpack.c.b16 %v1125, %v1109
        %v1254 = vpack.c.b16 %v1126, %v1110
        %v1255 = vpack.c.b16 %v1127, %v1111
        %v1256 = vpack.c.b16 %v1128, %v1112
        %v1257 = vpack.c.b16 %v1129, %v1113
        %v1258 = vpack.c.b16 %v1130, %v1114
        %v1259 = vpack.c.b16 %v1131, %v1115
        %v1260 = vpack.c.b16 %v1132, %v1116
        %v1261 = vpack.c.b16 %v1133, %v1117
        %v1262 = vpack.c.b16 %v1134, %v1118
        %1391 = vmatprep.subr.bf16.mxu0 %v1136
        %1392 = vmatpush1.bf16.msra.mxu0 %v1135
        %1393 = vmatprep.subr.bf16.mxu0 %v1152
        %1394 = vmatpush1.bf16.msra.mxu0 %v1151
        %1395 = vmatprep.subr.bf16.mxu0 %v1168
        %1396 = vmatpush1.bf16.msra.mxu0 %v1167
        %1397 = vmatprep.subr.bf16.mxu0 %v1184
        %1398 = vmatpush1.bf16.msra.mxu0 %v1183
        %1399 = vmatprep.subr.bf16.mxu0 %v1200
        %1400 = vmatpush1.bf16.msra.mxu0 %v1199
        %1401 = vmatprep.subr.bf16.mxu0 %v1216
        %1402 = vmatpush1.bf16.msra.mxu0 %v1215
        %1403 = vmatprep.subr.bf16.mxu0 %v1232
        %1404 = vmatpush1.bf16.msra.mxu0 %v1231
        %1405 = vmatprep.subr.bf16.mxu0 %v1248
        %1406 = vmatpush1.bf16.msra.mxu0 %v1247
        %1407 = vmatprep.subr.bf16.mxu0 0
        %1408 = vmatpush1.bf16.msra.mxu0 0
        %1409 = vmatprep.subr.bf16.mxu0 0
        %1410 = vmatpush1.bf16.msra.mxu0 0
        %1411 = vmatprep.subr.bf16.mxu0 0
        %1412 = vmatpush1.bf16.msra.mxu0 0
        %1413 = vmatprep.subr.bf16.mxu0 0
        %1414 = vmatpush1.bf16.msra.mxu0 0
        %1415 = vmatprep.subr.bf16.mxu0 0
        %1416 = vmatpush1.bf16.msra.mxu0 0
        %1417 = vmatprep.subr.bf16.mxu0 0
        %1418 = vmatpush1.bf16.msra.mxu0 0
        %1419 = vmatprep.subr.bf16.mxu0 0
        %1420 = vmatpush1.bf16.msra.mxu0 0
        %1421 = vmatprep.subr.bf16.mxu0 0
        %1422 = vmatpush1.bf16.msra.mxu0 0
        %1423 = vmatprep.mubr.bf16.mxu0 0
        %1424 = vmatmul.mubr.bf16.gmra.mrb[0].mxu0 %v719
        %v1425 = vpop.f32.mrb[0].mxu0
        %v1426 = vadd.f32 0.0, %v1425
        %v1427 = vpop.f32.mrb[0].mxu0
        %v1428 = vadd.f32 0.0, %v1427
        %v1429 = vpop.f32.mrb[0].mxu0
        %v1430 = vadd.f32 0.0, %v1429
        %v1431 = vpop.f32.mrb[0].mxu0
        %v1432 = vadd.f32 0.0, %v1431
        %1433 = vmatprep.mubr.bf16.mxu0 0
        %1434 = vmatmul.mubr.bf16.gmra.mrb[0].mxu0 %v720
        %v1435 = vpop.f32.mrb[0].mxu0
        %v1436 = vadd.f32 0.0, %v1435
        %v1437 = vpop.f32.mrb[0].mxu0
        %v1438 = vadd.f32 0.0, %v1437
        %v1439 = vpop.f32.mrb[0].mxu0
        %v1440 = vadd.f32 0.0, %v1439
        %v1441 = vpop.f32.mrb[0].mxu0
        %v1442 = vadd.f32 0.0, %v1441
        %1443 = vmatprep.mubr.bf16.mxu0 0
        %1444 = vmatmul.mubr.bf16.gmra.mrb[0].mxu0 %v721
        %v1445 = vpop.f32.mrb[0].mxu0
        %v1446 = vadd.f32 0.0, %v1445
        %v1447 = vpop.f32.mrb[0].mxu0
        %v1448 = vadd.f32 0.0, %v1447
        %v1449 = vpop.f32.mrb[0].mxu0
        %v1450 = vadd.f32 0.0, %v1449
        %v1451 = vpop.f32.mrb[0].mxu0
        %v1452 = vadd.f32 0.0, %v1451
        %1453 = vmatprep.mubr.bf16.mxu0 0
        %1454 = vmatmul.mubr.bf16.gmra.mrb[0].mxu0 %v722
        %v1455 = vpop.f32.mrb[0].mxu0
        %v1456 = vadd.f32 0.0, %v1455
        %v1457 = vpop.f32.mrb[0].mxu0
        %v1458 = vadd.f32 0.0, %v1457
        %v1459 = vpop.f32.mrb[0].mxu0
        %v1460 = vadd.f32 0.0, %v1459
        %v1461 = vpop.f32.mrb[0].mxu0
        %v1462 = vadd.f32 0.0, %v1461
        %1463 = vmatprep.mubr.bf16.mxu0 0
        %1464 = vmatmul.mubr.bf16.gmra.mrb[0].mxu0 %v723
        %v1465 = vpop.f32.mrb[0].mxu0
        %v1466 = vadd.f32 0.0, %v1465
        %v1467 = vpop.f32.mrb[0].mxu0
        %v1468 = vadd.f32 0.0, %v1467
        %v1469 = vpop.f32.mrb[0].mxu0
        %v1470 = vadd.f32 0.0, %v1469
        %v1471 = vpop.f32.mrb[0].mxu0
        %v1472 = vadd.f32 0.0, %v1471
        %1473 = vmatprep.mubr.bf16.mxu0 0
        %1474 = vmatmul.mubr.bf16.gmra.mrb[0].mxu0 %v724
        %v1475 = vpop.f32.mrb[0].mxu0
        %v1476 = vadd.f32 0.0, %v1475
        %v1477 = vpop.f32.mrb[0].mxu0
        %v1478 = vadd.f32 0.0, %v1477
        %v1479 = vpop.f32.mrb[0].mxu0
        %v1480 = vadd.f32 0.0, %v1479
        %v1481 = vpop.f32.mrb[0].mxu0
        %v1482 = vadd.f32 0.0, %v1481
        %1483 = vmatprep.mubr.bf16.mxu0 0
        %1484 = vmatmul.mubr.bf16.gmra.mrb[0].mxu0 %v725
        %v1485 = vpop.f32.mrb[0].mxu0
        %v1486 = vadd.f32 0.0, %v1485
        %v1487 = vpop.f32.mrb[0].mxu0
        %v1488 = vadd.f32 0.0, %v1487
        %v1489 = vpop.f32.mrb[0].mxu0
        %v1490 = vadd.f32 0.0, %v1489
        %v1491 = vpop.f32.mrb[0].mxu0
        %v1492 = vadd.f32 0.0, %v1491
        %1493 = vmatprep.mubr.bf16.mxu0 0
        %1494 = vmatmul.mubr.bf16.gmra.mrb[0].mxu0 %v726
        %v1495 = vpop.f32.mrb[0].mxu0
        %v1496 = vadd.f32 0.0, %v1495
        %v1497 = vpop.f32.mrb[0].mxu0
        %v1498 = vadd.f32 0.0, %v1497
        %v1499 = vpop.f32.mrb[0].mxu0
        %v1500 = vadd.f32 0.0, %v1499
        %v1501 = vpop.f32.mrb[0].mxu0
        %v1502 = vadd.f32 0.0, %v1501
        %1503 = vmatprep.mubr.bf16.mxu0 0
        %1504 = vmatmul.mubr.bf16.gmra.mrb[0].mxu0 %v727
        %v1505 = vpop.f32.mrb[0].mxu0
        %v1506 = vadd.f32 0.0, %v1505
        %v1507 = vpop.f32.mrb[0].mxu0
        %v1508 = vadd.f32 0.0, %v1507
        %v1509 = vpop.f32.mrb[0].mxu0
        %v1510 = vadd.f32 0.0, %v1509
        %v1511 = vpop.f32.mrb[0].mxu0
        %v1512 = vadd.f32 0.0, %v1511
        %1513 = vmatprep.mubr.bf16.mxu0 0
        %1514 = vmatmul.mubr.bf16.gmra.mrb[0].mxu0 %v728
        %v1515 = vpop.f32.mrb[0].mxu0
        %v1516 = vadd.f32 0.0, %v1515
        %v1517 = vpop.f32.mrb[0].mxu0
        %v1518 = vadd.f32 0.0, %v1517
        %v1519 = vpop.f32.mrb[0].mxu0
        %v1520 = vadd.f32 0.0, %v1519
        %v1521 = vpop.f32.mrb[0].mxu0
        %v1522 = vadd.f32 0.0, %v1521
        %1523 = vmatprep.mubr.bf16.mxu0 0
        %1524 = vmatmul.mubr.bf16.gmra.mrb[0].mxu0 %v729
        %v1525 = vpop.f32.mrb[0].mxu0
        %v1526 = vadd.f32 0.0, %v1525
        %v1527 = vpop.f32.mrb[0].mxu0
        %v1528 = vadd.f32 0.0, %v1527
        %v1529 = vpop.f32.mrb[0].mxu0
        %v1530 = vadd.f32 0.0, %v1529
        %v1531 = vpop.f32.mrb[0].mxu0
        %v1532 = vadd.f32 0.0, %v1531
        %1533 = vmatprep.mubr.bf16.mxu0 0
        %1534 = vmatmul.mubr.bf16.gmra.mrb[0].mxu0 %v730
        %v1535 = vpop.f32.mrb[0].mxu0
        %v1536 = vadd.f32 0.0, %v1535
        %v1537 = vpop.f32.mrb[0].mxu0
        %v1538 = vadd.f32 0.0, %v1537
        %v1539 = vpop.f32.mrb[0].mxu0
        %v1540 = vadd.f32 0.0, %v1539
        %v1541 = vpop.f32.mrb[0].mxu0
        %v1542 = vadd.f32 0.0, %v1541
        %1543 = vmatprep.mubr.bf16.mxu0 0
        %1544 = vmatmul.mubr.bf16.gmra.mrb[0].mxu0 %v731
        %v1545 = vpop.f32.mrb[0].mxu0
        %v1546 = vadd.f32 0.0, %v1545
        %v1547 = vpop.f32.mrb[0].mxu0
        %v1548 = vadd.f32 0.0, %v1547
        %v1549 = vpop.f32.mrb[0].mxu0
        %v1550 = vadd.f32 0.0, %v1549
        %v1551 = vpop.f32.mrb[0].mxu0
        %v1552 = vadd.f32 0.0, %v1551
        %1553 = vmatprep.mubr.bf16.mxu0 0
        %1554 = vmatmul.mubr.bf16.gmra.mrb[0].mxu0 %v732
        %v1555 = vpop.f32.mrb[0].mxu0
        %v1556 = vadd.f32 0.0, %v1555
        %v1557 = vpop.f32.mrb[0].mxu0
        %v1558 = vadd.f32 0.0, %v1557
        %v1559 = vpop.f32.mrb[0].mxu0
        %v1560 = vadd.f32 0.0, %v1559
        %v1561 = vpop.f32.mrb[0].mxu0
        %v1562 = vadd.f32 0.0, %v1561
        %1563 = vmatprep.mubr.bf16.mxu0 0
        %1564 = vmatmul.mubr.bf16.gmra.mrb[0].mxu0 %v733
        %v1565 = vpop.f32.mrb[0].mxu0
        %v1566 = vadd.f32 0.0, %v1565
        %v1567 = vpop.f32.mrb[0].mxu0
        %v1568 = vadd.f32 0.0, %v1567
        %v1569 = vpop.f32.mrb[0].mxu0
        %v1570 = vadd.f32 0.0, %v1569
        %v1571 = vpop.f32.mrb[0].mxu0
        %v1572 = vadd.f32 0.0, %v1571
        %1573 = vmatprep.mubr.bf16.mxu0 0
        %1574 = vmatmul.mubr.bf16.gmra.mrb[0].mxu0 %v734
        %v1575 = vpop.f32.mrb[0].mxu0
        %v1576 = vadd.f32 0.0, %v1575
        %v1577 = vpop.f32.mrb[0].mxu0
        %v1578 = vadd.f32 0.0, %v1577
        %v1579 = vpop.f32.mrb[0].mxu0
        %v1580 = vadd.f32 0.0, %v1579
        %v1581 = vpop.f32.mrb[0].mxu0
        %v1582 = vadd.f32 0.0, %v1581
        %1583 = vdwg.mxu0
        %1584 = vmatprep.subr.bf16.mxu0 %v1138
        %1585 = vmatpush1.bf16.msra.mxu0 %v1137
        %1586 = vmatprep.subr.bf16.mxu0 %v1154
        %1587 = vmatpush1.bf16.msra.mxu0 %v1153
        %1588 = vmatprep.subr.bf16.mxu0 %v1170
        %1589 = vmatpush1.bf16.msra.mxu0 %v1169
        %1590 = vmatprep.subr.bf16.mxu0 %v1186
        %1591 = vmatpush1.bf16.msra.mxu0 %v1185
        %1592 = vmatprep.subr.bf16.mxu0 %v1202
        %1593 = vmatpush1.bf16.msra.mxu0 %v1201
        %1594 = vmatprep.subr.bf16.mxu0 %v1218
        %1595 = vmatpush1.bf16.msra.mxu0 %v1217
        %1596 = vmatprep.subr.bf16.mxu0 %v1234
        %1597 = vmatpush1.bf16.msra.mxu0 %v1233
        %1598 = vmatprep.subr.bf16.mxu0 %v1250
        %1599 = vmatpush1.bf16.msra.mxu0 %v1249
        %1600 = vmatprep.subr.bf16.mxu0 0
        %1601 = vmatpush1.bf16.msra.mxu0 0
        %1602 = vmatprep.subr.bf16.mxu0 0
        %1603 = vmatpush1.bf16.msra.mxu0 0
        %1604 = vmatprep.subr.bf16.mxu0 0
        %1605 = vmatpush1.bf16.msra.mxu0 0
        %1606 = vmatprep.subr.bf16.mxu0 0
        %1607 = vmatpush1.bf16.msra.mxu0 0
        %1608 = vmatprep.subr.bf16.mxu0 0
        %1609 = vmatpush1.bf16.msra.mxu0 0
        %1610 = vmatprep.subr.bf16.mxu0 0
        %1611 = vmatpush1.bf16.msra.mxu0 0
        %1612 = vmatprep.subr.bf16.mxu0 0
        %1613 = vmatpush1.bf16.msra.mxu0 0
        %1614 = vmatprep.subr.bf16.mxu0 0
        %1615 = vmatpush1.bf16.msra.mxu0 0
        %1616 = vmatprep.mubr.bf16.mxu0 0
        %1617 = vmatmul.mubr.bf16.gmra.mrb[0].mxu0 %v719
        %v1618 = vpop.f32.mrb[0].mxu0
        %v1619 = vadd.f32 0.0, %v1618
        %v1620 = vpop.f32.mrb[0].mxu0
        %v1621 = vadd.f32 0.0, %v1620
        %v1622 = vpop.f32.mrb[0].mxu0
        %v1623 = vadd.f32 0.0, %v1622
        %v1624 = vpop.f32.mrb[0].mxu0
        %v1625 = vadd.f32 0.0, %v1624
        %1626 = vmatprep.mubr.bf16.mxu0 0
        %1627 = vmatmul.mubr.bf16.gmra.mrb[0].mxu0 %v720
        %v1628 = vpop.f32.mrb[0].mxu0
        %v1629 = vadd.f32 0.0, %v1628
        %v1630 = vpop.f32.mrb[0].mxu0
        %v1631 = vadd.f32 0.0, %v1630
        %v1632 = vpop.f32.mrb[0].mxu0
        %v1633 = vadd.f32 0.0, %v1632
        %v1634 = vpop.f32.mrb[0].mxu0
        %v1635 = vadd.f32 0.0, %v1634
        %1636 = vmatprep.mubr.bf16.mxu0 0
        %1637 = vmatmul.mubr.bf16.gmra.mrb[0].mxu0 %v721
        %v1638 = vpop.f32.mrb[0].mxu0
        %v1639 = vadd.f32 0.0, %v1638
        %v1640 = vpop.f32.mrb[0].mxu0
        %v1641 = vadd.f32 0.0, %v1640
        %v1642 = vpop.f32.mrb[0].mxu0
        %v1643 = vadd.f32 0.0, %v1642
        %v1644 = vpop.f32.mrb[0].mxu0
        %v1645 = vadd.f32 0.0, %v1644
        %1646 = vmatprep.mubr.bf16.mxu0 0
        %1647 = vmatmul.mubr.bf16.gmra.mrb[0].mxu0 %v722
        %v1648 = vpop.f32.mrb[0].mxu0
        %v1649 = vadd.f32 0.0, %v1648
        %v1650 = vpop.f32.mrb[0].mxu0
        %v1651 = vadd.f32 0.0, %v1650
        %v1652 = vpop.f32.mrb[0].mxu0
        %v1653 = vadd.f32 0.0, %v1652
        %v1654 = vpop.f32.mrb[0].mxu0
        %v1655 = vadd.f32 0.0, %v1654
        %1656 = vmatprep.mubr.bf16.mxu0 0
        %1657 = vmatmul.mubr.bf16.gmra.mrb[0].mxu0 %v723
        %v1658 = vpop.f32.mrb[0].mxu0
        %v1659 = vadd.f32 0.0, %v1658
        %v1660 = vpop.f32.mrb[0].mxu0
        %v1661 = vadd.f32 0.0, %v1660
        %v1662 = vpop.f32.mrb[0].mxu0
        %v1663 = vadd.f32 0.0, %v1662
        %v1664 = vpop.f32.mrb[0].mxu0
        %v1665 = vadd.f32 0.0, %v1664
        %1666 = vmatprep.mubr.bf16.mxu0 0
        %1667 = vmatmul.mubr.bf16.gmra.mrb[0].mxu0 %v724
        %v1668 = vpop.f32.mrb[0].mxu0
        %v1669 = vadd.f32 0.0, %v1668
        %v1670 = vpop.f32.mrb[0].mxu0
        %v1671 = vadd.f32 0.0, %v1670
        %v1672 = vpop.f32.mrb[0].mxu0
        %v1673 = vadd.f32 0.0, %v1672
        %v1674 = vpop.f32.mrb[0].mxu0
        %v1675 = vadd.f32 0.0, %v1674
        %1676 = vmatprep.mubr.bf16.mxu0 0
        %1677 = vmatmul.mubr.bf16.gmra.mrb[0].mxu0 %v725
        %v1678 = vpop.f32.mrb[0].mxu0
        %v1679 = vadd.f32 0.0, %v1678
        %v1680 = vpop.f32.mrb[0].mxu0
        %v1681 = vadd.f32 0.0, %v1680
        %v1682 = vpop.f32.mrb[0].mxu0
        %v1683 = vadd.f32 0.0, %v1682
        %v1684 = vpop.f32.mrb[0].mxu0
        %v1685 = vadd.f32 0.0, %v1684
        %1686 = vmatprep.mubr.bf16.mxu0 0
        %1687 = vmatmul.mubr.bf16.gmra.mrb[0].mxu0 %v726
        %v1688 = vpop.f32.mrb[0].mxu0
        %v1689 = vadd.f32 0.0, %v1688
        %v1690 = vpop.f32.mrb[0].mxu0
        %v1691 = vadd.f32 0.0, %v1690
        %v1692 = vpop.f32.mrb[0].mxu0
        %v1693 = vadd.f32 0.0, %v1692
        %v1694 = vpop.f32.mrb[0].mxu0
        %v1695 = vadd.f32 0.0, %v1694
        %1696 = vmatprep.mubr.bf16.mxu0 0
        %1697 = vmatmul.mubr.bf16.gmra.mrb[0].mxu0 %v727
        %v1698 = vpop.f32.mrb[0].mxu0
        %v1699 = vadd.f32 0.0, %v1698
        %v1700 = vpop.f32.mrb[0].mxu0
        %v1701 = vadd.f32 0.0, %v1700
        %v1702 = vpop.f32.mrb[0].mxu0
        %v1703 = vadd.f32 0.0, %v1702
        %v1704 = vpop.f32.mrb[0].mxu0
        %v1705 = vadd.f32 0.0, %v1704
        %1706 = vmatprep.mubr.bf16.mxu0 0
        %1707 = vmatmul.mubr.bf16.gmra.mrb[0].mxu0 %v728
        %v1708 = vpop.f32.mrb[0].mxu0
        %v1709 = vadd.f32 0.0, %v1708
        %v1710 = vpop.f32.mrb[0].mxu0
        %v1711 = vadd.f32 0.0, %v1710
        %v1712 = vpop.f32.mrb[0].mxu0
        %v1713 = vadd.f32 0.0, %v1712
        %v1714 = vpop.f32.mrb[0].mxu0
        %v1715 = vadd.f32 0.0, %v1714
        %1716 = vmatprep.mubr.bf16.mxu0 0
        %1717 = vmatmul.mubr.bf16.gmra.mrb[0].mxu0 %v729
        %v1718 = vpop.f32.mrb[0].mxu0
        %v1719 = vadd.f32 0.0, %v1718
        %v1720 = vpop.f32.mrb[0].mxu0
        %v1721 = vadd.f32 0.0, %v1720
        %v1722 = vpop.f32.mrb[0].mxu0
        %v1723 = vadd.f32 0.0, %v1722
        %v1724 = vpop.f32.mrb[0].mxu0
        %v1725 = vadd.f32 0.0, %v1724
        %1726 = vmatprep.mubr.bf16.mxu0 0
        %1727 = vmatmul.mubr.bf16.gmra.mrb[0].mxu0 %v730
        %v1728 = vpop.f32.mrb[0].mxu0
        %v1729 = vadd.f32 0.0, %v1728
        %v1730 = vpop.f32.mrb[0].mxu0
        %v1731 = vadd.f32 0.0, %v1730
        %v1732 = vpop.f32.mrb[0].mxu0
        %v1733 = vadd.f32 0.0, %v1732
        %v1734 = vpop.f32.mrb[0].mxu0
        %v1735 = vadd.f32 0.0, %v1734
        %1736 = vmatprep.mubr.bf16.mxu0 0
        %1737 = vmatmul.mubr.bf16.gmra.mrb[0].mxu0 %v731
        %v1738 = vpop.f32.mrb[0].mxu0
        %v1739 = vadd.f32 0.0, %v1738
        %v1740 = vpop.f32.mrb[0].mxu0
        %v1741 = vadd.f32 0.0, %v1740
        %v1742 = vpop.f32.mrb[0].mxu0
        %v1743 = vadd.f32 0.0, %v1742
        %v1744 = vpop.f32.mrb[0].mxu0
        %v1745 = vadd.f32 0.0, %v1744
        %1746 = vmatprep.mubr.bf16.mxu0 0
        %1747 = vmatmul.mubr.bf16.gmra.mrb[0].mxu0 %v732
        %v1748 = vpop.f32.mrb[0].mxu0
        %v1749 = vadd.f32 0.0, %v1748
        %v1750 = vpop.f32.mrb[0].mxu0
        %v1751 = vadd.f32 0.0, %v1750
        %v1752 = vpop.f32.mrb[0].mxu0
        %v1753 = vadd.f32 0.0, %v1752
        %v1754 = vpop.f32.mrb[0].mxu0
        %v1755 = vadd.f32 0.0, %v1754
        %1756 = vmatprep.mubr.bf16.mxu0 0
        %1757 = vmatmul.mubr.bf16.gmra.mrb[0].mxu0 %v733
        %v1758 = vpop.f32.mrb[0].mxu0
        %v1759 = vadd.f32 0.0, %v1758
        %v1760 = vpop.f32.mrb[0].mxu0
        %v1761 = vadd.f32 0.0, %v1760
        %v1762 = vpop.f32.mrb[0].mxu0
        %v1763 = vadd.f32 0.0, %v1762
        %v1764 = vpop.f32.mrb[0].mxu0
        %v1765 = vadd.f32 0.0, %v1764
        %1766 = vmatprep.mubr.bf16.mxu0 0
        %1767 = vmatmul.mubr.bf16.gmra.mrb[0].mxu0 %v734
        %v1768 = vpop.f32.mrb[0].mxu0
        %v1769 = vadd.f32 0.0, %v1768
        %v1770 = vpop.f32.mrb[0].mxu0
        %v1771 = vadd.f32 0.0, %v1770
        %v1772 = vpop.f32.mrb[0].mxu0
        %v1773 = vadd.f32 0.0, %v1772
        %v1774 = vpop.f32.mrb[0].mxu0
        %v1775 = vadd.f32 0.0, %v1774
        %1776 = vdwg.mxu0
        %1777 = vmatprep.subr.bf16.mxu0 %v1140
        %1778 = vmatpush1.bf16.msra.mxu0 %v1139
        %1779 = vmatprep.subr.bf16.mxu0 %v1156
        %1780 = vmatpush1.bf16.msra.mxu0 %v1155
        %1781 = vmatprep.subr.bf16.mxu0 %v1172
        %1782 = vmatpush1.bf16.msra.mxu0 %v1171
        %1783 = vmatprep.subr.bf16.mxu0 %v1188
        %1784 = vmatpush1.bf16.msra.mxu0 %v1187
        %1785 = vmatprep.subr.bf16.mxu0 %v1204
        %1786 = vmatpush1.bf16.msra.mxu0 %v1203
        %1787 = vmatprep.subr.bf16.mxu0 %v1220
        %1788 = vmatpush1.bf16.msra.mxu0 %v1219
        %1789 = vmatprep.subr.bf16.mxu0 %v1236
        %1790 = vmatpush1.bf16.msra.mxu0 %v1235
        %1791 = vmatprep.subr.bf16.mxu0 %v1252
        %1792 = vmatpush1.bf16.msra.mxu0 %v1251
        %1793 = vmatprep.subr.bf16.mxu0 0
        %1794 = vmatpush1.bf16.msra.mxu0 0
        %1795 = vmatprep.subr.bf16.mxu0 0
        %1796 = vmatpush1.bf16.msra.mxu0 0
        %1797 = vmatprep.subr.bf16.mxu0 0
        %1798 = vmatpush1.bf16.msra.mxu0 0
        %1799 = vmatprep.subr.bf16.mxu0 0
        %1800 = vmatpush1.bf16.msra.mxu0 0
        %1801 = vmatprep.subr.bf16.mxu0 0
        %1802 = vmatpush1.bf16.msra.mxu0 0
        %1803 = vmatprep.subr.bf16.mxu0 0
        %1804 = vmatpush1.bf16.msra.mxu0 0
        %1805 = vmatprep.subr.bf16.mxu0 0
        %1806 = vmatpush1.bf16.msra.mxu0 0
        %1807 = vmatprep.subr.bf16.mxu0 0
        %1808 = vmatpush1.bf16.msra.mxu0 0
        %1809 = vmatprep.mubr.bf16.mxu0 0
        %1810 = vmatmul.mubr.bf16.gmra.mrb[0].mxu0 %v719
        %v1811 = vpop.f32.mrb[0].mxu0
        %v1812 = vadd.f32 0.0, %v1811
        %v1813 = vpop.f32.mrb[0].mxu0
        %v1814 = vadd.f32 0.0, %v1813
        %v1815 = vpop.f32.mrb[0].mxu0
        %v1816 = vadd.f32 0.0, %v1815
        %v1817 = vpop.f32.mrb[0].mxu0
        %v1818 = vadd.f32 0.0, %v1817
        %1819 = vmatprep.mubr.bf16.mxu0 0
        %1820 = vmatmul.mubr.bf16.gmra.mrb[0].mxu0 %v720
        %v1821 = vpop.f32.mrb[0].mxu0
        %v1822 = vadd.f32 0.0, %v1821
        %v1823 = vpop.f32.mrb[0].mxu0
        %v1824 = vadd.f32 0.0, %v1823
        %v1825 = vpop.f32.mrb[0].mxu0
        %v1826 = vadd.f32 0.0, %v1825
        %v1827 = vpop.f32.mrb[0].mxu0
        %v1828 = vadd.f32 0.0, %v1827
        %1829 = vmatprep.mubr.bf16.mxu0 0
        %1830 = vmatmul.mubr.bf16.gmra.mrb[0].mxu0 %v721
        %v1831 = vpop.f32.mrb[0].mxu0
        %v1832 = vadd.f32 0.0, %v1831
        %v1833 = vpop.f32.mrb[0].mxu0
        %v1834 = vadd.f32 0.0, %v1833
        %v1835 = vpop.f32.mrb[0].mxu0
        %v1836 = vadd.f32 0.0, %v1835
        %v1837 = vpop.f32.mrb[0].mxu0
        %v1838 = vadd.f32 0.0, %v1837
        %1839 = vmatprep.mubr.bf16.mxu0 0
        %1840 = vmatmul.mubr.bf16.gmra.mrb[0].mxu0 %v722
        %v1841 = vpop.f32.mrb[0].mxu0
        %v1842 = vadd.f32 0.0, %v1841
        %v1843 = vpop.f32.mrb[0].mxu0
        %v1844 = vadd.f32 0.0, %v1843
        %v1845 = vpop.f32.mrb[0].mxu0
        %v1846 = vadd.f32 0.0, %v1845
        %v1847 = vpop.f32.mrb[0].mxu0
        %v1848 = vadd.f32 0.0, %v1847
        %1849 = vmatprep.mubr.bf16.mxu0 0
        %1850 = vmatmul.mubr.bf16.gmra.mrb[0].mxu0 %v723
        %v1851 = vpop.f32.mrb[0].mxu0
        %v1852 = vadd.f32 0.0, %v1851
        %v1853 = vpop.f32.mrb[0].mxu0
        %v1854 = vadd.f32 0.0, %v1853
        %v1855 = vpop.f32.mrb[0].mxu0
        %v1856 = vadd.f32 0.0, %v1855
        %v1857 = vpop.f32.mrb[0].mxu0
        %v1858 = vadd.f32 0.0, %v1857
        %1859 = vmatprep.mubr.bf16.mxu0 0
        %1860 = vmatmul.mubr.bf16.gmra.mrb[0].mxu0 %v724
        %v1861 = vpop.f32.mrb[0].mxu0
        %v1862 = vadd.f32 0.0, %v1861
        %v1863 = vpop.f32.mrb[0].mxu0
        %v1864 = vadd.f32 0.0, %v1863
        %v1865 = vpop.f32.mrb[0].mxu0
        %v1866 = vadd.f32 0.0, %v1865
        %v1867 = vpop.f32.mrb[0].mxu0
        %v1868 = vadd.f32 0.0, %v1867
        %1869 = vmatprep.mubr.bf16.mxu0 0
        %1870 = vmatmul.mubr.bf16.gmra.mrb[0].mxu0 %v725
        %v1871 = vpop.f32.mrb[0].mxu0
        %v1872 = vadd.f32 0.0, %v1871
        %v1873 = vpop.f32.mrb[0].mxu0
        %v1874 = vadd.f32 0.0, %v1873
        %v1875 = vpop.f32.mrb[0].mxu0
        %v1876 = vadd.f32 0.0, %v1875
        %v1877 = vpop.f32.mrb[0].mxu0
        %v1878 = vadd.f32 0.0, %v1877
        %1879 = vmatprep.mubr.bf16.mxu0 0
        %1880 = vmatmul.mubr.bf16.gmra.mrb[0].mxu0 %v726
        %v1881 = vpop.f32.mrb[0].mxu0
        %v1882 = vadd.f32 0.0, %v1881
        %v1883 = vpop.f32.mrb[0].mxu0
        %v1884 = vadd.f32 0.0, %v1883
        %v1885 = vpop.f32.mrb[0].mxu0
        %v1886 = vadd.f32 0.0, %v1885
        %v1887 = vpop.f32.mrb[0].mxu0
        %v1888 = vadd.f32 0.0, %v1887
        %1889 = vmatprep.mubr.bf16.mxu0 0
        %1890 = vmatmul.mubr.bf16.gmra.mrb[0].mxu0 %v727
        %v1891 = vpop.f32.mrb[0].mxu0
        %v1892 = vadd.f32 0.0, %v1891
        %v1893 = vpop.f32.mrb[0].mxu0
        %v1894 = vadd.f32 0.0, %v1893
        %v1895 = vpop.f32.mrb[0].mxu0
        %v1896 = vadd.f32 0.0, %v1895
        %v1897 = vpop.f32.mrb[0].mxu0
        %v1898 = vadd.f32 0.0, %v1897
        %1899 = vmatprep.mubr.bf16.mxu0 0
        %1900 = vmatmul.mubr.bf16.gmra.mrb[0].mxu0 %v728
        %v1901 = vpop.f32.mrb[0].mxu0
        %v1902 = vadd.f32 0.0, %v1901
        %v1903 = vpop.f32.mrb[0].mxu0
        %v1904 = vadd.f32 0.0, %v1903
        %v1905 = vpop.f32.mrb[0].mxu0
        %v1906 = vadd.f32 0.0, %v1905
        %v1907 = vpop.f32.mrb[0].mxu0
        %v1908 = vadd.f32 0.0, %v1907
        %1909 = vmatprep.mubr.bf16.mxu0 0
        %1910 = vmatmul.mubr.bf16.gmra.mrb[0].mxu0 %v729
        %v1911 = vpop.f32.mrb[0].mxu0
        %v1912 = vadd.f32 0.0, %v1911
        %v1913 = vpop.f32.mrb[0].mxu0
        %v1914 = vadd.f32 0.0, %v1913
        %v1915 = vpop.f32.mrb[0].mxu0
        %v1916 = vadd.f32 0.0, %v1915
        %v1917 = vpop.f32.mrb[0].mxu0
        %v1918 = vadd.f32 0.0, %v1917
        %1919 = vmatprep.mubr.bf16.mxu0 0
        %1920 = vmatmul.mubr.bf16.gmra.mrb[0].mxu0 %v730
        %v1921 = vpop.f32.mrb[0].mxu0
        %v1922 = vadd.f32 0.0, %v1921
        %v1923 = vpop.f32.mrb[0].mxu0
        %v1924 = vadd.f32 0.0, %v1923
        %v1925 = vpop.f32.mrb[0].mxu0
        %v1926 = vadd.f32 0.0, %v1925
        %v1927 = vpop.f32.mrb[0].mxu0
        %v1928 = vadd.f32 0.0, %v1927
        %1929 = vmatprep.mubr.bf16.mxu0 0
        %1930 = vmatmul.mubr.bf16.gmra.mrb[0].mxu0 %v731
        %v1931 = vpop.f32.mrb[0].mxu0
        %v1932 = vadd.f32 0.0, %v1931
        %v1933 = vpop.f32.mrb[0].mxu0
        %v1934 = vadd.f32 0.0, %v1933
        %v1935 = vpop.f32.mrb[0].mxu0
        %v1936 = vadd.f32 0.0, %v1935
        %v1937 = vpop.f32.mrb[0].mxu0
        %v1938 = vadd.f32 0.0, %v1937
        %1939 = vmatprep.mubr.bf16.mxu0 0
        %1940 = vmatmul.mubr.bf16.gmra.mrb[0].mxu0 %v732
        %v1941 = vpop.f32.mrb[0].mxu0
        %v1942 = vadd.f32 0.0, %v1941
        %v1943 = vpop.f32.mrb[0].mxu0
        %v1944 = vadd.f32 0.0, %v1943
        %v1945 = vpop.f32.mrb[0].mxu0
        %v1946 = vadd.f32 0.0, %v1945
        %v1947 = vpop.f32.mrb[0].mxu0
        %v1948 = vadd.f32 0.0, %v1947
        %1949 = vmatprep.mubr.bf16.mxu0 0
        %1950 = vmatmul.mubr.bf16.gmra.mrb[0].mxu0 %v733
        %v1951 = vpop.f32.mrb[0].mxu0
        %v1952 = vadd.f32 0.0, %v1951
        %v1953 = vpop.f32.mrb[0].mxu0
        %v1954 = vadd.f32 0.0, %v1953
        %v1955 = vpop.f32.mrb[0].mxu0
        %v1956 = vadd.f32 0.0, %v1955
        %v1957 = vpop.f32.mrb[0].mxu0
        %v1958 = vadd.f32 0.0, %v1957
        %1959 = vmatprep.mubr.bf16.mxu0 0
        %1960 = vmatmul.mubr.bf16.gmra.mrb[0].mxu0 %v734
        %v1961 = vpop.f32.mrb[0].mxu0
        %v1962 = vadd.f32 0.0, %v1961
        %v1963 = vpop.f32.mrb[0].mxu0
        %v1964 = vadd.f32 0.0, %v1963
        %v1965 = vpop.f32.mrb[0].mxu0
        %v1966 = vadd.f32 0.0, %v1965
        %v1967 = vpop.f32.mrb[0].mxu0
        %v1968 = vadd.f32 0.0, %v1967
        %1969 = vdwg.mxu0
        %1970 = vmatprep.subr.bf16.mxu0 %v1142
        %1971 = vmatpush1.bf16.msra.mxu0 %v1141
        %1972 = vmatprep.subr.bf16.mxu0 %v1158
        %1973 = vmatpush1.bf16.msra.mxu0 %v1157
        %1974 = vmatprep.subr.bf16.mxu0 %v1174
        %1975 = vmatpush1.bf16.msra.mxu0 %v1173
        %1976 = vmatprep.subr.bf16.mxu0 %v1190
        %1977 = vmatpush1.bf16.msra.mxu0 %v1189
        %1978 = vmatprep.subr.bf16.mxu0 %v1206
        %1979 = vmatpush1.bf16.msra.mxu0 %v1205
        %1980 = vmatprep.subr.bf16.mxu0 %v1222
        %1981 = vmatpush1.bf16.msra.mxu0 %v1221
        %1982 = vmatprep.subr.bf16.mxu0 %v1238
        %1983 = vmatpush1.bf16.msra.mxu0 %v1237
        %1984 = vmatprep.subr.bf16.mxu0 %v1254
        %1985 = vmatpush1.bf16.msra.mxu0 %v1253
        %1986 = vmatprep.subr.bf16.mxu0 0
        %1987 = vmatpush1.bf16.msra.mxu0 0
        %1988 = vmatprep.subr.bf16.mxu0 0
        %1989 = vmatpush1.bf16.msra.mxu0 0
        %1990 = vmatprep.subr.bf16.mxu0 0
        %1991 = vmatpush1.bf16.msra.mxu0 0
        %1992 = vmatprep.subr.bf16.mxu0 0
        %1993 = vmatpush1.bf16.msra.mxu0 0
        %1994 = vmatprep.subr.bf16.mxu0 0
        %1995 = vmatpush1.bf16.msra.mxu0 0
        %1996 = vmatprep.subr.bf16.mxu0 0
        %1997 = vmatpush1.bf16.msra.mxu0 0
        %1998 = vmatprep.subr.bf16.mxu0 0
        %1999 = vmatpush1.bf16.msra.mxu0 0
        %2000 = vmatprep.subr.bf16.mxu0 0
        %2001 = vmatpush1.bf16.msra.mxu0 0
        %2002 = vmatprep.mubr.bf16.mxu0 0
        %2003 = vmatmul.mubr.bf16.gmra.mrb[0].mxu0 %v719
        %v2004 = vpop.f32.mrb[0].mxu0
        %v2005 = vadd.f32 0.0, %v2004
        %v2006 = vpop.f32.mrb[0].mxu0
        %v2007 = vadd.f32 0.0, %v2006
        %v2008 = vpop.f32.mrb[0].mxu0
        %v2009 = vadd.f32 0.0, %v2008
        %v2010 = vpop.f32.mrb[0].mxu0
        %v2011 = vadd.f32 0.0, %v2010
        %2012 = vmatprep.mubr.bf16.mxu0 0
        %2013 = vmatmul.mubr.bf16.gmra.mrb[0].mxu0 %v720
        %v2014 = vpop.f32.mrb[0].mxu0
        %v2015 = vadd.f32 0.0, %v2014
        %v2016 = vpop.f32.mrb[0].mxu0
        %v2017 = vadd.f32 0.0, %v2016
        %v2018 = vpop.f32.mrb[0].mxu0
        %v2019 = vadd.f32 0.0, %v2018
        %v2020 = vpop.f32.mrb[0].mxu0
        %v2021 = vadd.f32 0.0, %v2020
        %2022 = vmatprep.mubr.bf16.mxu0 0
        %2023 = vmatmul.mubr.bf16.gmra.mrb[0].mxu0 %v721
        %v2024 = vpop.f32.mrb[0].mxu0
        %v2025 = vadd.f32 0.0, %v2024
        %v2026 = vpop.f32.mrb[0].mxu0
        %v2027 = vadd.f32 0.0, %v2026
        %v2028 = vpop.f32.mrb[0].mxu0
        %v2029 = vadd.f32 0.0, %v2028
        %v2030 = vpop.f32.mrb[0].mxu0
        %v2031 = vadd.f32 0.0, %v2030
        %2032 = vmatprep.mubr.bf16.mxu0 0
        %2033 = vmatmul.mubr.bf16.gmra.mrb[0].mxu0 %v722
        %v2034 = vpop.f32.mrb[0].mxu0
        %v2035 = vadd.f32 0.0, %v2034
        %v2036 = vpop.f32.mrb[0].mxu0
        %v2037 = vadd.f32 0.0, %v2036
        %v2038 = vpop.f32.mrb[0].mxu0
        %v2039 = vadd.f32 0.0, %v2038
        %v2040 = vpop.f32.mrb[0].mxu0
        %v2041 = vadd.f32 0.0, %v2040
        %2042 = vmatprep.mubr.bf16.mxu0 0
        %2043 = vmatmul.mubr.bf16.gmra.mrb[0].mxu0 %v723
        %v2044 = vpop.f32.mrb[0].mxu0
        %v2045 = vadd.f32 0.0, %v2044
        %v2046 = vpop.f32.mrb[0].mxu0
        %v2047 = vadd.f32 0.0, %v2046
        %v2048 = vpop.f32.mrb[0].mxu0
        %v2049 = vadd.f32 0.0, %v2048
        %v2050 = vpop.f32.mrb[0].mxu0
        %v2051 = vadd.f32 0.0, %v2050
        %2052 = vmatprep.mubr.bf16.mxu0 0
        %2053 = vmatmul.mubr.bf16.gmra.mrb[0].mxu0 %v724
        %v2054 = vpop.f32.mrb[0].mxu0
        %v2055 = vadd.f32 0.0, %v2054
        %v2056 = vpop.f32.mrb[0].mxu0
        %v2057 = vadd.f32 0.0, %v2056
        %v2058 = vpop.f32.mrb[0].mxu0
        %v2059 = vadd.f32 0.0, %v2058
        %v2060 = vpop.f32.mrb[0].mxu0
        %v2061 = vadd.f32 0.0, %v2060
        %2062 = vmatprep.mubr.bf16.mxu0 0
        %2063 = vmatmul.mubr.bf16.gmra.mrb[0].mxu0 %v725
        %v2064 = vpop.f32.mrb[0].mxu0
        %v2065 = vadd.f32 0.0, %v2064
        %v2066 = vpop.f32.mrb[0].mxu0
        %v2067 = vadd.f32 0.0, %v2066
        %v2068 = vpop.f32.mrb[0].mxu0
        %v2069 = vadd.f32 0.0, %v2068
        %v2070 = vpop.f32.mrb[0].mxu0
        %v2071 = vadd.f32 0.0, %v2070
        %2072 = vmatprep.mubr.bf16.mxu0 0
        %2073 = vmatmul.mubr.bf16.gmra.mrb[0].mxu0 %v726
        %v2074 = vpop.f32.mrb[0].mxu0
        %v2075 = vadd.f32 0.0, %v2074
        %v2076 = vpop.f32.mrb[0].mxu0
        %v2077 = vadd.f32 0.0, %v2076
        %v2078 = vpop.f32.mrb[0].mxu0
        %v2079 = vadd.f32 0.0, %v2078
        %v2080 = vpop.f32.mrb[0].mxu0
        %v2081 = vadd.f32 0.0, %v2080
        %2082 = vmatprep.mubr.bf16.mxu0 0
        %2083 = vmatmul.mubr.bf16.gmra.mrb[0].mxu0 %v727
        %v2084 = vpop.f32.mrb[0].mxu0
        %v2085 = vadd.f32 0.0, %v2084
        %v2086 = vpop.f32.mrb[0].mxu0
        %v2087 = vadd.f32 0.0, %v2086
        %v2088 = vpop.f32.mrb[0].mxu0
        %v2089 = vadd.f32 0.0, %v2088
        %v2090 = vpop.f32.mrb[0].mxu0
        %v2091 = vadd.f32 0.0, %v2090
        %2092 = vmatprep.mubr.bf16.mxu0 0
        %2093 = vmatmul.mubr.bf16.gmra.mrb[0].mxu0 %v728
        %v2094 = vpop.f32.mrb[0].mxu0
        %v2095 = vadd.f32 0.0, %v2094
        %v2096 = vpop.f32.mrb[0].mxu0
        %v2097 = vadd.f32 0.0, %v2096
        %v2098 = vpop.f32.mrb[0].mxu0
        %v2099 = vadd.f32 0.0, %v2098
        %v2100 = vpop.f32.mrb[0].mxu0
        %v2101 = vadd.f32 0.0, %v2100
        %2102 = vmatprep.mubr.bf16.mxu0 0
        %2103 = vmatmul.mubr.bf16.gmra.mrb[0].mxu0 %v729
        %v2104 = vpop.f32.mrb[0].mxu0
        %v2105 = vadd.f32 0.0, %v2104
        %v2106 = vpop.f32.mrb[0].mxu0
        %v2107 = vadd.f32 0.0, %v2106
        %v2108 = vpop.f32.mrb[0].mxu0
        %v2109 = vadd.f32 0.0, %v2108
        %v2110 = vpop.f32.mrb[0].mxu0
        %v2111 = vadd.f32 0.0, %v2110
        %2112 = vmatprep.mubr.bf16.mxu0 0
        %2113 = vmatmul.mubr.bf16.gmra.mrb[0].mxu0 %v730
        %v2114 = vpop.f32.mrb[0].mxu0
        %v2115 = vadd.f32 0.0, %v2114
        %v2116 = vpop.f32.mrb[0].mxu0
        %v2117 = vadd.f32 0.0, %v2116
        %v2118 = vpop.f32.mrb[0].mxu0
        %v2119 = vadd.f32 0.0, %v2118
        %v2120 = vpop.f32.mrb[0].mxu0
        %v2121 = vadd.f32 0.0, %v2120
        %2122 = vmatprep.mubr.bf16.mxu0 0
        %2123 = vmatmul.mubr.bf16.gmra.mrb[0].mxu0 %v731
        %v2124 = vpop.f32.mrb[0].mxu0
        %v2125 = vadd.f32 0.0, %v2124
        %v2126 = vpop.f32.mrb[0].mxu0
        %v2127 = vadd.f32 0.0, %v2126
        %v2128 = vpop.f32.mrb[0].mxu0
        %v2129 = vadd.f32 0.0, %v2128
        %v2130 = vpop.f32.mrb[0].mxu0
        %v2131 = vadd.f32 0.0, %v2130
        %2132 = vmatprep.mubr.bf16.mxu0 0
        %2133 = vmatmul.mubr.bf16.gmra.mrb[0].mxu0 %v732
        %v2134 = vpop.f32.mrb[0].mxu0
        %v2135 = vadd.f32 0.0, %v2134
        %v2136 = vpop.f32.mrb[0].mxu0
        %v2137 = vadd.f32 0.0, %v2136
        %v2138 = vpop.f32.mrb[0].mxu0
        %v2139 = vadd.f32 0.0, %v2138
        %v2140 = vpop.f32.mrb[0].mxu0
        %v2141 = vadd.f32 0.0, %v2140
        %2142 = vmatprep.mubr.bf16.mxu0 0
        %2143 = vmatmul.mubr.bf16.gmra.mrb[0].mxu0 %v733
        %v2144 = vpop.f32.mrb[0].mxu0
        %v2145 = vadd.f32 0.0, %v2144
        %v2146 = vpop.f32.mrb[0].mxu0
        %v2147 = vadd.f32 0.0, %v2146
        %v2148 = vpop.f32.mrb[0].mxu0
        %v2149 = vadd.f32 0.0, %v2148
        %v2150 = vpop.f32.mrb[0].mxu0
        %v2151 = vadd.f32 0.0, %v2150
        %2152 = vmatprep.mubr.bf16.mxu0 0
        %2153 = vmatmul.mubr.bf16.gmra.mrb[0].mxu0 %v734
        %v2154 = vpop.f32.mrb[0].mxu0
        %v2155 = vadd.f32 0.0, %v2154
        %v2156 = vpop.f32.mrb[0].mxu0
        %v2157 = vadd.f32 0.0, %v2156
        %v2158 = vpop.f32.mrb[0].mxu0
        %v2159 = vadd.f32 0.0, %v2158
        %v2160 = vpop.f32.mrb[0].mxu0
        %v2161 = vadd.f32 0.0, %v2160
        %2162 = vdwg.mxu0
        %2163 = vmatprep.subr.bf16.mxu0 %v1144
        %2164 = vmatpush1.bf16.msra.mxu0 %v1143
        %2165 = vmatprep.subr.bf16.mxu0 %v1160
        %2166 = vmatpush1.bf16.msra.mxu0 %v1159
        %2167 = vmatprep.subr.bf16.mxu0 %v1176
        %2168 = vmatpush1.bf16.msra.mxu0 %v1175
        %2169 = vmatprep.subr.bf16.mxu0 %v1192
        %2170 = vmatpush1.bf16.msra.mxu0 %v1191
        %2171 = vmatprep.subr.bf16.mxu0 %v1208
        %2172 = vmatpush1.bf16.msra.mxu0 %v1207
        %2173 = vmatprep.subr.bf16.mxu0 %v1224
        %2174 = vmatpush1.bf16.msra.mxu0 %v1223
        %2175 = vmatprep.subr.bf16.mxu0 %v1240
        %2176 = vmatpush1.bf16.msra.mxu0 %v1239
        %2177 = vmatprep.subr.bf16.mxu0 %v1256
        %2178 = vmatpush1.bf16.msra.mxu0 %v1255
        %2179 = vmatprep.subr.bf16.mxu0 0
        %2180 = vmatpush1.bf16.msra.mxu0 0
        %2181 = vmatprep.subr.bf16.mxu0 0
        %2182 = vmatpush1.bf16.msra.mxu0 0
        %2183 = vmatprep.subr.bf16.mxu0 0
        %2184 = vmatpush1.bf16.msra.mxu0 0
        %2185 = vmatprep.subr.bf16.mxu0 0
        %2186 = vmatpush1.bf16.msra.mxu0 0
        %2187 = vmatprep.subr.bf16.mxu0 0
        %2188 = vmatpush1.bf16.msra.mxu0 0
        %2189 = vmatprep.subr.bf16.mxu0 0
        %2190 = vmatpush1.bf16.msra.mxu0 0
        %2191 = vmatprep.subr.bf16.mxu0 0
        %2192 = vmatpush1.bf16.msra.mxu0 0
        %2193 = vmatprep.subr.bf16.mxu0 0
        %2194 = vmatpush1.bf16.msra.mxu0 0
        %2195 = vmatprep.mubr.bf16.mxu0 0
        %2196 = vmatmul.mubr.bf16.gmra.mrb[0].mxu0 %v719
        %v2197 = vpop.f32.mrb[0].mxu0
        %v2198 = vadd.f32 0.0, %v2197
        %v2199 = vpop.f32.mrb[0].mxu0
        %v2200 = vadd.f32 0.0, %v2199
        %v2201 = vpop.f32.mrb[0].mxu0
        %v2202 = vadd.f32 0.0, %v2201
        %v2203 = vpop.f32.mrb[0].mxu0
        %v2204 = vadd.f32 0.0, %v2203
        %2205 = vmatprep.mubr.bf16.mxu0 0
        %2206 = vmatmul.mubr.bf16.gmra.mrb[0].mxu0 %v720
        %v2207 = vpop.f32.mrb[0].mxu0
        %v2208 = vadd.f32 0.0, %v2207
        %v2209 = vpop.f32.mrb[0].mxu0
        %v2210 = vadd.f32 0.0, %v2209
        %v2211 = vpop.f32.mrb[0].mxu0
        %v2212 = vadd.f32 0.0, %v2211
        %v2213 = vpop.f32.mrb[0].mxu0
        %v2214 = vadd.f32 0.0, %v2213
        %2215 = vmatprep.mubr.bf16.mxu0 0
        %2216 = vmatmul.mubr.bf16.gmra.mrb[0].mxu0 %v721
        %v2217 = vpop.f32.mrb[0].mxu0
        %v2218 = vadd.f32 0.0, %v2217
        %v2219 = vpop.f32.mrb[0].mxu0
        %v2220 = vadd.f32 0.0, %v2219
        %v2221 = vpop.f32.mrb[0].mxu0
        %v2222 = vadd.f32 0.0, %v2221
        %v2223 = vpop.f32.mrb[0].mxu0
        %v2224 = vadd.f32 0.0, %v2223
        %2225 = vmatprep.mubr.bf16.mxu0 0
        %2226 = vmatmul.mubr.bf16.gmra.mrb[0].mxu0 %v722
        %v2227 = vpop.f32.mrb[0].mxu0
        %v2228 = vadd.f32 0.0, %v2227
        %v2229 = vpop.f32.mrb[0].mxu0
        %v2230 = vadd.f32 0.0, %v2229
        %v2231 = vpop.f32.mrb[0].mxu0
        %v2232 = vadd.f32 0.0, %v2231
        %v2233 = vpop.f32.mrb[0].mxu0
        %v2234 = vadd.f32 0.0, %v2233
        %2235 = vmatprep.mubr.bf16.mxu0 0
        %2236 = vmatmul.mubr.bf16.gmra.mrb[0].mxu0 %v723
        %v2237 = vpop.f32.mrb[0].mxu0
        %v2238 = vadd.f32 0.0, %v2237
        %v2239 = vpop.f32.mrb[0].mxu0
        %v2240 = vadd.f32 0.0, %v2239
        %v2241 = vpop.f32.mrb[0].mxu0
        %v2242 = vadd.f32 0.0, %v2241
        %v2243 = vpop.f32.mrb[0].mxu0
        %v2244 = vadd.f32 0.0, %v2243
        %2245 = vmatprep.mubr.bf16.mxu0 0
        %2246 = vmatmul.mubr.bf16.gmra.mrb[0].mxu0 %v724
        %v2247 = vpop.f32.mrb[0].mxu0
        %v2248 = vadd.f32 0.0, %v2247
        %v2249 = vpop.f32.mrb[0].mxu0
        %v2250 = vadd.f32 0.0, %v2249
        %v2251 = vpop.f32.mrb[0].mxu0
        %v2252 = vadd.f32 0.0, %v2251
        %v2253 = vpop.f32.mrb[0].mxu0
        %v2254 = vadd.f32 0.0, %v2253
        %2255 = vmatprep.mubr.bf16.mxu0 0
        %2256 = vmatmul.mubr.bf16.gmra.mrb[0].mxu0 %v725
        %v2257 = vpop.f32.mrb[0].mxu0
        %v2258 = vadd.f32 0.0, %v2257
        %v2259 = vpop.f32.mrb[0].mxu0
        %v2260 = vadd.f32 0.0, %v2259
        %v2261 = vpop.f32.mrb[0].mxu0
        %v2262 = vadd.f32 0.0, %v2261
        %v2263 = vpop.f32.mrb[0].mxu0
        %v2264 = vadd.f32 0.0, %v2263
        %2265 = vmatprep.mubr.bf16.mxu0 0
        %2266 = vmatmul.mubr.bf16.gmra.mrb[0].mxu0 %v726
        %v2267 = vpop.f32.mrb[0].mxu0
        %v2268 = vadd.f32 0.0, %v2267
        %v2269 = vpop.f32.mrb[0].mxu0
        %v2270 = vadd.f32 0.0, %v2269
        %v2271 = vpop.f32.mrb[0].mxu0
        %v2272 = vadd.f32 0.0, %v2271
        %v2273 = vpop.f32.mrb[0].mxu0
        %v2274 = vadd.f32 0.0, %v2273
        %2275 = vmatprep.mubr.bf16.mxu0 0
        %2276 = vmatmul.mubr.bf16.gmra.mrb[0].mxu0 %v727
        %v2277 = vpop.f32.mrb[0].mxu0
        %v2278 = vadd.f32 0.0, %v2277
        %v2279 = vpop.f32.mrb[0].mxu0
        %v2280 = vadd.f32 0.0, %v2279
        %v2281 = vpop.f32.mrb[0].mxu0
        %v2282 = vadd.f32 0.0, %v2281
        %v2283 = vpop.f32.mrb[0].mxu0
        %v2284 = vadd.f32 0.0, %v2283
        %2285 = vmatprep.mubr.bf16.mxu0 0
        %2286 = vmatmul.mubr.bf16.gmra.mrb[0].mxu0 %v728
        %v2287 = vpop.f32.mrb[0].mxu0
        %v2288 = vadd.f32 0.0, %v2287
        %v2289 = vpop.f32.mrb[0].mxu0
        %v2290 = vadd.f32 0.0, %v2289
        %v2291 = vpop.f32.mrb[0].mxu0
        %v2292 = vadd.f32 0.0, %v2291
        %v2293 = vpop.f32.mrb[0].mxu0
        %v2294 = vadd.f32 0.0, %v2293
        %2295 = vmatprep.mubr.bf16.mxu0 0
        %2296 = vmatmul.mubr.bf16.gmra.mrb[0].mxu0 %v729
        %v2297 = vpop.f32.mrb[0].mxu0
        %v2298 = vadd.f32 0.0, %v2297
        %v2299 = vpop.f32.mrb[0].mxu0
        %v2300 = vadd.f32 0.0, %v2299
        %v2301 = vpop.f32.mrb[0].mxu0
        %v2302 = vadd.f32 0.0, %v2301
        %v2303 = vpop.f32.mrb[0].mxu0
        %v2304 = vadd.f32 0.0, %v2303
        %2305 = vmatprep.mubr.bf16.mxu0 0
        %2306 = vmatmul.mubr.bf16.gmra.mrb[0].mxu0 %v730
        %v2307 = vpop.f32.mrb[0].mxu0
        %v2308 = vadd.f32 0.0, %v2307
        %v2309 = vpop.f32.mrb[0].mxu0
        %v2310 = vadd.f32 0.0, %v2309
        %v2311 = vpop.f32.mrb[0].mxu0
        %v2312 = vadd.f32 0.0, %v2311
        %v2313 = vpop.f32.mrb[0].mxu0
        %v2314 = vadd.f32 0.0, %v2313
        %2315 = vmatprep.mubr.bf16.mxu0 0
        %2316 = vmatmul.mubr.bf16.gmra.mrb[0].mxu0 %v731
        %v2317 = vpop.f32.mrb[0].mxu0
        %v2318 = vadd.f32 0.0, %v2317
        %v2319 = vpop.f32.mrb[0].mxu0
        %v2320 = vadd.f32 0.0, %v2319
        %v2321 = vpop.f32.mrb[0].mxu0
        %v2322 = vadd.f32 0.0, %v2321
        %v2323 = vpop.f32.mrb[0].mxu0
        %v2324 = vadd.f32 0.0, %v2323
        %2325 = vmatprep.mubr.bf16.mxu0 0
        %2326 = vmatmul.mubr.bf16.gmra.mrb[0].mxu0 %v732
        %v2327 = vpop.f32.mrb[0].mxu0
        %v2328 = vadd.f32 0.0, %v2327
        %v2329 = vpop.f32.mrb[0].mxu0
        %v2330 = vadd.f32 0.0, %v2329
        %v2331 = vpop.f32.mrb[0].mxu0
        %v2332 = vadd.f32 0.0, %v2331
        %v2333 = vpop.f32.mrb[0].mxu0
        %v2334 = vadd.f32 0.0, %v2333
        %2335 = vmatprep.mubr.bf16.mxu0 0
        %2336 = vmatmul.mubr.bf16.gmra.mrb[0].mxu0 %v733
        %v2337 = vpop.f32.mrb[0].mxu0
        %v2338 = vadd.f32 0.0, %v2337
        %v2339 = vpop.f32.mrb[0].mxu0
        %v2340 = vadd.f32 0.0, %v2339
        %v2341 = vpop.f32.mrb[0].mxu0
        %v2342 = vadd.f32 0.0, %v2341
        %v2343 = vpop.f32.mrb[0].mxu0
        %v2344 = vadd.f32 0.0, %v2343
        %2345 = vmatprep.mubr.bf16.mxu0 0
        %2346 = vmatmul.mubr.bf16.gmra.mrb[0].mxu0 %v734
        %v2347 = vpop.f32.mrb[0].mxu0
        %v2348 = vadd.f32 0.0, %v2347
        %v2349 = vpop.f32.mrb[0].mxu0
        %v2350 = vadd.f32 0.0, %v2349
        %v2351 = vpop.f32.mrb[0].mxu0
        %v2352 = vadd.f32 0.0, %v2351
        %v2353 = vpop.f32.mrb[0].mxu0
        %v2354 = vadd.f32 0.0, %v2353
        %2355 = vdwg.mxu0
        %2356 = vmatprep.subr.bf16.mxu0 %v1146
        %2357 = vmatpush1.bf16.msra.mxu0 %v1145
        %2358 = vmatprep.subr.bf16.mxu0 %v1162
        %2359 = vmatpush1.bf16.msra.mxu0 %v1161
        %2360 = vmatprep.subr.bf16.mxu0 %v1178
        %2361 = vmatpush1.bf16.msra.mxu0 %v1177
        %2362 = vmatprep.subr.bf16.mxu0 %v1194
        %2363 = vmatpush1.bf16.msra.mxu0 %v1193
        %2364 = vmatprep.subr.bf16.mxu0 %v1210
        %2365 = vmatpush1.bf16.msra.mxu0 %v1209
        %2366 = vmatprep.subr.bf16.mxu0 %v1226
        %2367 = vmatpush1.bf16.msra.mxu0 %v1225
        %2368 = vmatprep.subr.bf16.mxu0 %v1242
        %2369 = vmatpush1.bf16.msra.mxu0 %v1241
        %2370 = vmatprep.subr.bf16.mxu0 %v1258
        %2371 = vmatpush1.bf16.msra.mxu0 %v1257
        %2372 = vmatprep.subr.bf16.mxu0 0
        %2373 = vmatpush1.bf16.msra.mxu0 0
        %2374 = vmatprep.subr.bf16.mxu0 0
        %2375 = vmatpush1.bf16.msra.mxu0 0
        %2376 = vmatprep.subr.bf16.mxu0 0
        %2377 = vmatpush1.bf16.msra.mxu0 0
        %2378 = vmatprep.subr.bf16.mxu0 0
        %2379 = vmatpush1.bf16.msra.mxu0 0
        %2380 = vmatprep.subr.bf16.mxu0 0
        %2381 = vmatpush1.bf16.msra.mxu0 0
        %2382 = vmatprep.subr.bf16.mxu0 0
        %2383 = vmatpush1.bf16.msra.mxu0 0
        %2384 = vmatprep.subr.bf16.mxu0 0
        %2385 = vmatpush1.bf16.msra.mxu0 0
        %2386 = vmatprep.subr.bf16.mxu0 0
        %2387 = vmatpush1.bf16.msra.mxu0 0
        %2388 = vmatprep.mubr.bf16.mxu0 0
        %2389 = vmatmul.mubr.bf16.gmra.mrb[0].mxu0 %v719
        %v2390 = vpop.f32.mrb[0].mxu0
        %v2391 = vadd.f32 0.0, %v2390
        %v2392 = vpop.f32.mrb[0].mxu0
        %v2393 = vadd.f32 0.0, %v2392
        %v2394 = vpop.f32.mrb[0].mxu0
        %v2395 = vadd.f32 0.0, %v2394
        %v2396 = vpop.f32.mrb[0].mxu0
        %v2397 = vadd.f32 0.0, %v2396
        %2398 = vmatprep.mubr.bf16.mxu0 0
        %2399 = vmatmul.mubr.bf16.gmra.mrb[0].mxu0 %v720
        %v2400 = vpop.f32.mrb[0].mxu0
        %v2401 = vadd.f32 0.0, %v2400
        %v2402 = vpop.f32.mrb[0].mxu0
        %v2403 = vadd.f32 0.0, %v2402
        %v2404 = vpop.f32.mrb[0].mxu0
        %v2405 = vadd.f32 0.0, %v2404
        %v2406 = vpop.f32.mrb[0].mxu0
        %v2407 = vadd.f32 0.0, %v2406
        %2408 = vmatprep.mubr.bf16.mxu0 0
        %2409 = vmatmul.mubr.bf16.gmra.mrb[0].mxu0 %v721
        %v2410 = vpop.f32.mrb[0].mxu0
        %v2411 = vadd.f32 0.0, %v2410
        %v2412 = vpop.f32.mrb[0].mxu0
        %v2413 = vadd.f32 0.0, %v2412
        %v2414 = vpop.f32.mrb[0].mxu0
        %v2415 = vadd.f32 0.0, %v2414
        %v2416 = vpop.f32.mrb[0].mxu0
        %v2417 = vadd.f32 0.0, %v2416
        %2418 = vmatprep.mubr.bf16.mxu0 0
        %2419 = vmatmul.mubr.bf16.gmra.mrb[0].mxu0 %v722
        %v2420 = vpop.f32.mrb[0].mxu0
        %v2421 = vadd.f32 0.0, %v2420
        %v2422 = vpop.f32.mrb[0].mxu0
        %v2423 = vadd.f32 0.0, %v2422
        %v2424 = vpop.f32.mrb[0].mxu0
        %v2425 = vadd.f32 0.0, %v2424
        %v2426 = vpop.f32.mrb[0].mxu0
        %v2427 = vadd.f32 0.0, %v2426
        %2428 = vmatprep.mubr.bf16.mxu0 0
        %2429 = vmatmul.mubr.bf16.gmra.mrb[0].mxu0 %v723
        %v2430 = vpop.f32.mrb[0].mxu0
        %v2431 = vadd.f32 0.0, %v2430
        %v2432 = vpop.f32.mrb[0].mxu0
        %v2433 = vadd.f32 0.0, %v2432
        %v2434 = vpop.f32.mrb[0].mxu0
        %v2435 = vadd.f32 0.0, %v2434
        %v2436 = vpop.f32.mrb[0].mxu0
        %v2437 = vadd.f32 0.0, %v2436
        %2438 = vmatprep.mubr.bf16.mxu0 0
        %2439 = vmatmul.mubr.bf16.gmra.mrb[0].mxu0 %v724
        %v2440 = vpop.f32.mrb[0].mxu0
        %v2441 = vadd.f32 0.0, %v2440
        %v2442 = vpop.f32.mrb[0].mxu0
        %v2443 = vadd.f32 0.0, %v2442
        %v2444 = vpop.f32.mrb[0].mxu0
        %v2445 = vadd.f32 0.0, %v2444
        %v2446 = vpop.f32.mrb[0].mxu0
        %v2447 = vadd.f32 0.0, %v2446
        %2448 = vmatprep.mubr.bf16.mxu0 0
        %2449 = vmatmul.mubr.bf16.gmra.mrb[0].mxu0 %v725
        %v2450 = vpop.f32.mrb[0].mxu0
        %v2451 = vadd.f32 0.0, %v2450
        %v2452 = vpop.f32.mrb[0].mxu0
        %v2453 = vadd.f32 0.0, %v2452
        %v2454 = vpop.f32.mrb[0].mxu0
        %v2455 = vadd.f32 0.0, %v2454
        %v2456 = vpop.f32.mrb[0].mxu0
        %v2457 = vadd.f32 0.0, %v2456
        %2458 = vmatprep.mubr.bf16.mxu0 0
        %2459 = vmatmul.mubr.bf16.gmra.mrb[0].mxu0 %v726
        %v2460 = vpop.f32.mrb[0].mxu0
        %v2461 = vadd.f32 0.0, %v2460
        %v2462 = vpop.f32.mrb[0].mxu0
        %v2463 = vadd.f32 0.0, %v2462
        %v2464 = vpop.f32.mrb[0].mxu0
        %v2465 = vadd.f32 0.0, %v2464
        %v2466 = vpop.f32.mrb[0].mxu0
        %v2467 = vadd.f32 0.0, %v2466
        %2468 = vmatprep.mubr.bf16.mxu0 0
        %2469 = vmatmul.mubr.bf16.gmra.mrb[0].mxu0 %v727
        %v2470 = vpop.f32.mrb[0].mxu0
        %v2471 = vadd.f32 0.0, %v2470
        %v2472 = vpop.f32.mrb[0].mxu0
        %v2473 = vadd.f32 0.0, %v2472
        %v2474 = vpop.f32.mrb[0].mxu0
        %v2475 = vadd.f32 0.0, %v2474
        %v2476 = vpop.f32.mrb[0].mxu0
        %v2477 = vadd.f32 0.0, %v2476
        %2478 = vmatprep.mubr.bf16.mxu0 0
        %2479 = vmatmul.mubr.bf16.gmra.mrb[0].mxu0 %v728
        %v2480 = vpop.f32.mrb[0].mxu0
        %v2481 = vadd.f32 0.0, %v2480
        %v2482 = vpop.f32.mrb[0].mxu0
        %v2483 = vadd.f32 0.0, %v2482
        %v2484 = vpop.f32.mrb[0].mxu0
        %v2485 = vadd.f32 0.0, %v2484
        %v2486 = vpop.f32.mrb[0].mxu0
        %v2487 = vadd.f32 0.0, %v2486
        %2488 = vmatprep.mubr.bf16.mxu0 0
        %2489 = vmatmul.mubr.bf16.gmra.mrb[0].mxu0 %v729
        %v2490 = vpop.f32.mrb[0].mxu0
        %v2491 = vadd.f32 0.0, %v2490
        %v2492 = vpop.f32.mrb[0].mxu0
        %v2493 = vadd.f32 0.0, %v2492
        %v2494 = vpop.f32.mrb[0].mxu0
        %v2495 = vadd.f32 0.0, %v2494
        %v2496 = vpop.f32.mrb[0].mxu0
        %v2497 = vadd.f32 0.0, %v2496
        %2498 = vmatprep.mubr.bf16.mxu0 0
        %2499 = vmatmul.mubr.bf16.gmra.mrb[0].mxu0 %v730
        %v2500 = vpop.f32.mrb[0].mxu0
        %v2501 = vadd.f32 0.0, %v2500
        %v2502 = vpop.f32.mrb[0].mxu0
        %v2503 = vadd.f32 0.0, %v2502
        %v2504 = vpop.f32.mrb[0].mxu0
        %v2505 = vadd.f32 0.0, %v2504
        %v2506 = vpop.f32.mrb[0].mxu0
        %v2507 = vadd.f32 0.0, %v2506
        %2508 = vmatprep.mubr.bf16.mxu0 0
        %2509 = vmatmul.mubr.bf16.gmra.mrb[0].mxu0 %v731
        %v2510 = vpop.f32.mrb[0].mxu0
        %v2511 = vadd.f32 0.0, %v2510
        %v2512 = vpop.f32.mrb[0].mxu0
        %v2513 = vadd.f32 0.0, %v2512
        %v2514 = vpop.f32.mrb[0].mxu0
        %v2515 = vadd.f32 0.0, %v2514
        %v2516 = vpop.f32.mrb[0].mxu0
        %v2517 = vadd.f32 0.0, %v2516
        %2518 = vmatprep.mubr.bf16.mxu0 0
        %2519 = vmatmul.mubr.bf16.gmra.mrb[0].mxu0 %v732
        %v2520 = vpop.f32.mrb[0].mxu0
        %v2521 = vadd.f32 0.0, %v2520
        %v2522 = vpop.f32.mrb[0].mxu0
        %v2523 = vadd.f32 0.0, %v2522
        %v2524 = vpop.f32.mrb[0].mxu0
        %v2525 = vadd.f32 0.0, %v2524
        %v2526 = vpop.f32.mrb[0].mxu0
        %v2527 = vadd.f32 0.0, %v2526
        %2528 = vmatprep.mubr.bf16.mxu0 0
        %2529 = vmatmul.mubr.bf16.gmra.mrb[0].mxu0 %v733
        %v2530 = vpop.f32.mrb[0].mxu0
        %v2531 = vadd.f32 0.0, %v2530
        %v2532 = vpop.f32.mrb[0].mxu0
        %v2533 = vadd.f32 0.0, %v2532
        %v2534 = vpop.f32.mrb[0].mxu0
        %v2535 = vadd.f32 0.0, %v2534
        %v2536 = vpop.f32.mrb[0].mxu0
        %v2537 = vadd.f32 0.0, %v2536
        %2538 = vmatprep.mubr.bf16.mxu0 0
        %2539 = vmatmul.mubr.bf16.gmra.mrb[0].mxu0 %v734
        %v2540 = vpop.f32.mrb[0].mxu0
        %v2541 = vadd.f32 0.0, %v2540
        %v2542 = vpop.f32.mrb[0].mxu0
        %v2543 = vadd.f32 0.0, %v2542
        %v2544 = vpop.f32.mrb[0].mxu0
        %v2545 = vadd.f32 0.0, %v2544
        %v2546 = vpop.f32.mrb[0].mxu0
        %v2547 = vadd.f32 0.0, %v2546
        %2548 = vdwg.mxu0
        %2549 = vmatprep.subr.bf16.mxu0 %v1148
        %2550 = vmatpush1.bf16.msra.mxu0 %v1147
        %2551 = vmatprep.subr.bf16.mxu0 %v1164
        %2552 = vmatpush1.bf16.msra.mxu0 %v1163
        %2553 = vmatprep.subr.bf16.mxu0 %v1180
        %2554 = vmatpush1.bf16.msra.mxu0 %v1179
        %2555 = vmatprep.subr.bf16.mxu0 %v1196
        %2556 = vmatpush1.bf16.msra.mxu0 %v1195
        %2557 = vmatprep.subr.bf16.mxu0 %v1212
        %2558 = vmatpush1.bf16.msra.mxu0 %v1211
        %2559 = vmatprep.subr.bf16.mxu0 %v1228
        %2560 = vmatpush1.bf16.msra.mxu0 %v1227
        %2561 = vmatprep.subr.bf16.mxu0 %v1244
        %2562 = vmatpush1.bf16.msra.mxu0 %v1243
        %2563 = vmatprep.subr.bf16.mxu0 %v1260
        %2564 = vmatpush1.bf16.msra.mxu0 %v1259
        %2565 = vmatprep.subr.bf16.mxu0 0
        %2566 = vmatpush1.bf16.msra.mxu0 0
        %2567 = vmatprep.subr.bf16.mxu0 0
        %2568 = vmatpush1.bf16.msra.mxu0 0
        %2569 = vmatprep.subr.bf16.mxu0 0
        %2570 = vmatpush1.bf16.msra.mxu0 0
        %2571 = vmatprep.subr.bf16.mxu0 0
        %2572 = vmatpush1.bf16.msra.mxu0 0
        %2573 = vmatprep.subr.bf16.mxu0 0
        %2574 = vmatpush1.bf16.msra.mxu0 0
        %2575 = vmatprep.subr.bf16.mxu0 0
        %2576 = vmatpush1.bf16.msra.mxu0 0
        %2577 = vmatprep.subr.bf16.mxu0 0
        %2578 = vmatpush1.bf16.msra.mxu0 0
        %2579 = vmatprep.subr.bf16.mxu0 0
        %2580 = vmatpush1.bf16.msra.mxu0 0
        %2581 = vmatprep.mubr.bf16.mxu0 0
        %2582 = vmatmul.mubr.bf16.gmra.mrb[0].mxu0 %v719
        %v2583 = vpop.f32.mrb[0].mxu0
        %v2584 = vadd.f32 0.0, %v2583
        %v2585 = vpop.f32.mrb[0].mxu0
        %v2586 = vadd.f32 0.0, %v2585
        %v2587 = vpop.f32.mrb[0].mxu0
        %v2588 = vadd.f32 0.0, %v2587
        %v2589 = vpop.f32.mrb[0].mxu0
        %v2590 = vadd.f32 0.0, %v2589
        %2591 = vmatprep.mubr.bf16.mxu0 0
        %2592 = vmatmul.mubr.bf16.gmra.mrb[0].mxu0 %v720
        %v2593 = vpop.f32.mrb[0].mxu0
        %v2594 = vadd.f32 0.0, %v2593
        %v2595 = vpop.f32.mrb[0].mxu0
        %v2596 = vadd.f32 0.0, %v2595
        %v2597 = vpop.f32.mrb[0].mxu0
        %v2598 = vadd.f32 0.0, %v2597
        %v2599 = vpop.f32.mrb[0].mxu0
        %v2600 = vadd.f32 0.0, %v2599
        %2601 = vmatprep.mubr.bf16.mxu0 0
        %2602 = vmatmul.mubr.bf16.gmra.mrb[0].mxu0 %v721
        %v2603 = vpop.f32.mrb[0].mxu0
        %v2604 = vadd.f32 0.0, %v2603
        %v2605 = vpop.f32.mrb[0].mxu0
        %v2606 = vadd.f32 0.0, %v2605
        %v2607 = vpop.f32.mrb[0].mxu0
        %v2608 = vadd.f32 0.0, %v2607
        %v2609 = vpop.f32.mrb[0].mxu0
        %v2610 = vadd.f32 0.0, %v2609
        %2611 = vmatprep.mubr.bf16.mxu0 0
        %2612 = vmatmul.mubr.bf16.gmra.mrb[0].mxu0 %v722
        %v2613 = vpop.f32.mrb[0].mxu0
        %v2614 = vadd.f32 0.0, %v2613
        %v2615 = vpop.f32.mrb[0].mxu0
        %v2616 = vadd.f32 0.0, %v2615
        %v2617 = vpop.f32.mrb[0].mxu0
        %v2618 = vadd.f32 0.0, %v2617
        %v2619 = vpop.f32.mrb[0].mxu0
        %v2620 = vadd.f32 0.0, %v2619
        %2621 = vmatprep.mubr.bf16.mxu0 0
        %2622 = vmatmul.mubr.bf16.gmra.mrb[0].mxu0 %v723
        %v2623 = vpop.f32.mrb[0].mxu0
        %v2624 = vadd.f32 0.0, %v2623
        %v2625 = vpop.f32.mrb[0].mxu0
        %v2626 = vadd.f32 0.0, %v2625
        %v2627 = vpop.f32.mrb[0].mxu0
        %v2628 = vadd.f32 0.0, %v2627
        %v2629 = vpop.f32.mrb[0].mxu0
        %v2630 = vadd.f32 0.0, %v2629
        %2631 = vmatprep.mubr.bf16.mxu0 0
        %2632 = vmatmul.mubr.bf16.gmra.mrb[0].mxu0 %v724
        %v2633 = vpop.f32.mrb[0].mxu0
        %v2634 = vadd.f32 0.0, %v2633
        %v2635 = vpop.f32.mrb[0].mxu0
        %v2636 = vadd.f32 0.0, %v2635
        %v2637 = vpop.f32.mrb[0].mxu0
        %v2638 = vadd.f32 0.0, %v2637
        %v2639 = vpop.f32.mrb[0].mxu0
        %v2640 = vadd.f32 0.0, %v2639
        %2641 = vmatprep.mubr.bf16.mxu0 0
        %2642 = vmatmul.mubr.bf16.gmra.mrb[0].mxu0 %v725
        %v2643 = vpop.f32.mrb[0].mxu0
        %v2644 = vadd.f32 0.0, %v2643
        %v2645 = vpop.f32.mrb[0].mxu0
        %v2646 = vadd.f32 0.0, %v2645
        %v2647 = vpop.f32.mrb[0].mxu0
        %v2648 = vadd.f32 0.0, %v2647
        %v2649 = vpop.f32.mrb[0].mxu0
        %v2650 = vadd.f32 0.0, %v2649
        %2651 = vmatprep.mubr.bf16.mxu0 0
        %2652 = vmatmul.mubr.bf16.gmra.mrb[0].mxu0 %v726
        %v2653 = vpop.f32.mrb[0].mxu0
        %v2654 = vadd.f32 0.0, %v2653
        %v2655 = vpop.f32.mrb[0].mxu0
        %v2656 = vadd.f32 0.0, %v2655
        %v2657 = vpop.f32.mrb[0].mxu0
        %v2658 = vadd.f32 0.0, %v2657
        %v2659 = vpop.f32.mrb[0].mxu0
        %v2660 = vadd.f32 0.0, %v2659
        %2661 = vmatprep.mubr.bf16.mxu0 0
        %2662 = vmatmul.mubr.bf16.gmra.mrb[0].mxu0 %v727
        %v2663 = vpop.f32.mrb[0].mxu0
        %v2664 = vadd.f32 0.0, %v2663
        %v2665 = vpop.f32.mrb[0].mxu0
        %v2666 = vadd.f32 0.0, %v2665
        %v2667 = vpop.f32.mrb[0].mxu0
        %v2668 = vadd.f32 0.0, %v2667
        %v2669 = vpop.f32.mrb[0].mxu0
        %v2670 = vadd.f32 0.0, %v2669
        %2671 = vmatprep.mubr.bf16.mxu0 0
        %2672 = vmatmul.mubr.bf16.gmra.mrb[0].mxu0 %v728
        %v2673 = vpop.f32.mrb[0].mxu0
        %v2674 = vadd.f32 0.0, %v2673
        %v2675 = vpop.f32.mrb[0].mxu0
        %v2676 = vadd.f32 0.0, %v2675
        %v2677 = vpop.f32.mrb[0].mxu0
        %v2678 = vadd.f32 0.0, %v2677
        %v2679 = vpop.f32.mrb[0].mxu0
        %v2680 = vadd.f32 0.0, %v2679
        %2681 = vmatprep.mubr.bf16.mxu0 0
        %2682 = vmatmul.mubr.bf16.gmra.mrb[0].mxu0 %v729
        %v2683 = vpop.f32.mrb[0].mxu0
        %v2684 = vadd.f32 0.0, %v2683
        %v2685 = vpop.f32.mrb[0].mxu0
        %v2686 = vadd.f32 0.0, %v2685
        %v2687 = vpop.f32.mrb[0].mxu0
        %v2688 = vadd.f32 0.0, %v2687
        %v2689 = vpop.f32.mrb[0].mxu0
        %v2690 = vadd.f32 0.0, %v2689
        %2691 = vmatprep.mubr.bf16.mxu0 0
        %2692 = vmatmul.mubr.bf16.gmra.mrb[0].mxu0 %v730
        %v2693 = vpop.f32.mrb[0].mxu0
        %v2694 = vadd.f32 0.0, %v2693
        %v2695 = vpop.f32.mrb[0].mxu0
        %v2696 = vadd.f32 0.0, %v2695
        %v2697 = vpop.f32.mrb[0].mxu0
        %v2698 = vadd.f32 0.0, %v2697
        %v2699 = vpop.f32.mrb[0].mxu0
        %v2700 = vadd.f32 0.0, %v2699
        %2701 = vmatprep.mubr.bf16.mxu0 0
        %2702 = vmatmul.mubr.bf16.gmra.mrb[0].mxu0 %v731
        %v2703 = vpop.f32.mrb[0].mxu0
        %v2704 = vadd.f32 0.0, %v2703
        %v2705 = vpop.f32.mrb[0].mxu0
        %v2706 = vadd.f32 0.0, %v2705
        %v2707 = vpop.f32.mrb[0].mxu0
        %v2708 = vadd.f32 0.0, %v2707
        %v2709 = vpop.f32.mrb[0].mxu0
        %v2710 = vadd.f32 0.0, %v2709
        %2711 = vmatprep.mubr.bf16.mxu0 0
        %2712 = vmatmul.mubr.bf16.gmra.mrb[0].mxu0 %v732
        %v2713 = vpop.f32.mrb[0].mxu0
        %v2714 = vadd.f32 0.0, %v2713
        %v2715 = vpop.f32.mrb[0].mxu0
        %v2716 = vadd.f32 0.0, %v2715
        %v2717 = vpop.f32.mrb[0].mxu0
        %v2718 = vadd.f32 0.0, %v2717
        %v2719 = vpop.f32.mrb[0].mxu0
        %v2720 = vadd.f32 0.0, %v2719
        %2721 = vmatprep.mubr.bf16.mxu0 0
        %2722 = vmatmul.mubr.bf16.gmra.mrb[0].mxu0 %v733
        %v2723 = vpop.f32.mrb[0].mxu0
        %v2724 = vadd.f32 0.0, %v2723
        %v2725 = vpop.f32.mrb[0].mxu0
        %v2726 = vadd.f32 0.0, %v2725
        %v2727 = vpop.f32.mrb[0].mxu0
        %v2728 = vadd.f32 0.0, %v2727
        %v2729 = vpop.f32.mrb[0].mxu0
        %v2730 = vadd.f32 0.0, %v2729
        %2731 = vmatprep.mubr.bf16.mxu0 0
        %2732 = vmatmul.mubr.bf16.gmra.mrb[0].mxu0 %v734
        %v2733 = vpop.f32.mrb[0].mxu0
        %v2734 = vadd.f32 0.0, %v2733
        %v2735 = vpop.f32.mrb[0].mxu0
        %v2736 = vadd.f32 0.0, %v2735
        %v2737 = vpop.f32.mrb[0].mxu0
        %v2738 = vadd.f32 0.0, %v2737
        %v2739 = vpop.f32.mrb[0].mxu0
        %v2740 = vadd.f32 0.0, %v2739
        %2741 = vdwg.mxu0
        %2742 = vmatprep.subr.bf16.mxu0 %v1150
        %2743 = vmatpush1.bf16.msra.mxu0 %v1149
        %2744 = vmatprep.subr.bf16.mxu0 %v1166
        %2745 = vmatpush1.bf16.msra.mxu0 %v1165
        %2746 = vmatprep.subr.bf16.mxu0 %v1182
        %2747 = vmatpush1.bf16.msra.mxu0 %v1181
        %2748 = vmatprep.subr.bf16.mxu0 %v1198
        %2749 = vmatpush1.bf16.msra.mxu0 %v1197
        %2750 = vmatprep.subr.bf16.mxu0 %v1214
        %2751 = vmatpush1.bf16.msra.mxu0 %v1213
        %2752 = vmatprep.subr.bf16.mxu0 %v1230
        %2753 = vmatpush1.bf16.msra.mxu0 %v1229
        %2754 = vmatprep.subr.bf16.mxu0 %v1246
        %2755 = vmatpush1.bf16.msra.mxu0 %v1245
        %2756 = vmatprep.subr.bf16.mxu0 %v1262
        %2757 = vmatpush1.bf16.msra.mxu0 %v1261
        %2758 = vmatprep.subr.bf16.mxu0 0
        %2759 = vmatpush1.bf16.msra.mxu0 0
        %2760 = vmatprep.subr.bf16.mxu0 0
        %2761 = vmatpush1.bf16.msra.mxu0 0
        %2762 = vmatprep.subr.bf16.mxu0 0
        %2763 = vmatpush1.bf16.msra.mxu0 0
        %2764 = vmatprep.subr.bf16.mxu0 0
        %2765 = vmatpush1.bf16.msra.mxu0 0
        %2766 = vmatprep.subr.bf16.mxu0 0
        %2767 = vmatpush1.bf16.msra.mxu0 0
        %2768 = vmatprep.subr.bf16.mxu0 0
        %2769 = vmatpush1.bf16.msra.mxu0 0
        %2770 = vmatprep.subr.bf16.mxu0 0
        %2771 = vmatpush1.bf16.msra.mxu0 0
        %2772 = vmatprep.subr.bf16.mxu0 0
        %2773 = vmatpush1.bf16.msra.mxu0 0
        %2774 = vmatprep.mubr.bf16.mxu0 0
        %2775 = vmatmul.mubr.bf16.gmra.mrb[0].mxu0 %v719
        %v2776 = vpop.f32.mrb[0].mxu0
        %v2777 = vadd.f32 0.0, %v2776
        %v2778 = vpop.f32.mrb[0].mxu0
        %v2779 = vadd.f32 0.0, %v2778
        %v2780 = vpop.f32.mrb[0].mxu0
        %v2781 = vadd.f32 0.0, %v2780
        %v2782 = vpop.f32.mrb[0].mxu0
        %v2783 = vadd.f32 0.0, %v2782
        %2784 = vmatprep.mubr.bf16.mxu0 0
        %2785 = vmatmul.mubr.bf16.gmra.mrb[0].mxu0 %v720
        %v2786 = vpop.f32.mrb[0].mxu0
        %v2787 = vadd.f32 0.0, %v2786
        %v2788 = vpop.f32.mrb[0].mxu0
        %v2789 = vadd.f32 0.0, %v2788
        %v2790 = vpop.f32.mrb[0].mxu0
        %v2791 = vadd.f32 0.0, %v2790
        %v2792 = vpop.f32.mrb[0].mxu0
        %v2793 = vadd.f32 0.0, %v2792
        %2794 = vmatprep.mubr.bf16.mxu0 0
        %2795 = vmatmul.mubr.bf16.gmra.mrb[0].mxu0 %v721
        %v2796 = vpop.f32.mrb[0].mxu0
        %v2797 = vadd.f32 0.0, %v2796
        %v2798 = vpop.f32.mrb[0].mxu0
        %v2799 = vadd.f32 0.0, %v2798
        %v2800 = vpop.f32.mrb[0].mxu0
        %v2801 = vadd.f32 0.0, %v2800
        %v2802 = vpop.f32.mrb[0].mxu0
        %v2803 = vadd.f32 0.0, %v2802
        %2804 = vmatprep.mubr.bf16.mxu0 0
        %2805 = vmatmul.mubr.bf16.gmra.mrb[0].mxu0 %v722
        %v2806 = vpop.f32.mrb[0].mxu0
        %v2807 = vadd.f32 0.0, %v2806
        %v2808 = vpop.f32.mrb[0].mxu0
        %v2809 = vadd.f32 0.0, %v2808
        %v2810 = vpop.f32.mrb[0].mxu0
        %v2811 = vadd.f32 0.0, %v2810
        %v2812 = vpop.f32.mrb[0].mxu0
        %v2813 = vadd.f32 0.0, %v2812
        %2814 = vmatprep.mubr.bf16.mxu0 0
        %2815 = vmatmul.mubr.bf16.gmra.mrb[0].mxu0 %v723
        %v2816 = vpop.f32.mrb[0].mxu0
        %v2817 = vadd.f32 0.0, %v2816
        %v2818 = vpop.f32.mrb[0].mxu0
        %v2819 = vadd.f32 0.0, %v2818
        %v2820 = vpop.f32.mrb[0].mxu0
        %v2821 = vadd.f32 0.0, %v2820
        %v2822 = vpop.f32.mrb[0].mxu0
        %v2823 = vadd.f32 0.0, %v2822
        %2824 = vmatprep.mubr.bf16.mxu0 0
        %2825 = vmatmul.mubr.bf16.gmra.mrb[0].mxu0 %v724
        %v2826 = vpop.f32.mrb[0].mxu0
        %v2827 = vadd.f32 0.0, %v2826
        %v2828 = vpop.f32.mrb[0].mxu0
        %v2829 = vadd.f32 0.0, %v2828
        %v2830 = vpop.f32.mrb[0].mxu0
        %v2831 = vadd.f32 0.0, %v2830
        %v2832 = vpop.f32.mrb[0].mxu0
        %v2833 = vadd.f32 0.0, %v2832
        %2834 = vmatprep.mubr.bf16.mxu0 0
        %2835 = vmatmul.mubr.bf16.gmra.mrb[0].mxu0 %v725
        %v2836 = vpop.f32.mrb[0].mxu0
        %v2837 = vadd.f32 0.0, %v2836
        %v2838 = vpop.f32.mrb[0].mxu0
        %v2839 = vadd.f32 0.0, %v2838
        %v2840 = vpop.f32.mrb[0].mxu0
        %v2841 = vadd.f32 0.0, %v2840
        %v2842 = vpop.f32.mrb[0].mxu0
        %v2843 = vadd.f32 0.0, %v2842
        %2844 = vmatprep.mubr.bf16.mxu0 0
        %2845 = vmatmul.mubr.bf16.gmra.mrb[0].mxu0 %v726
        %v2846 = vpop.f32.mrb[0].mxu0
        %v2847 = vadd.f32 0.0, %v2846
        %v2848 = vpop.f32.mrb[0].mxu0
        %v2849 = vadd.f32 0.0, %v2848
        %v2850 = vpop.f32.mrb[0].mxu0
        %v2851 = vadd.f32 0.0, %v2850
        %v2852 = vpop.f32.mrb[0].mxu0
        %v2853 = vadd.f32 0.0, %v2852
        %2854 = vmatprep.mubr.bf16.mxu0 0
        %2855 = vmatmul.mubr.bf16.gmra.mrb[0].mxu0 %v727
        %v2856 = vpop.f32.mrb[0].mxu0
        %v2857 = vadd.f32 0.0, %v2856
        %v2858 = vpop.f32.mrb[0].mxu0
        %v2859 = vadd.f32 0.0, %v2858
        %v2860 = vpop.f32.mrb[0].mxu0
        %v2861 = vadd.f32 0.0, %v2860
        %v2862 = vpop.f32.mrb[0].mxu0
        %v2863 = vadd.f32 0.0, %v2862
        %2864 = vmatprep.mubr.bf16.mxu0 0
        %2865 = vmatmul.mubr.bf16.gmra.mrb[0].mxu0 %v728
        %v2866 = vpop.f32.mrb[0].mxu0
        %v2867 = vadd.f32 0.0, %v2866
        %v2868 = vpop.f32.mrb[0].mxu0
        %v2869 = vadd.f32 0.0, %v2868
        %v2870 = vpop.f32.mrb[0].mxu0
        %v2871 = vadd.f32 0.0, %v2870
        %v2872 = vpop.f32.mrb[0].mxu0
        %v2873 = vadd.f32 0.0, %v2872
        %2874 = vmatprep.mubr.bf16.mxu0 0
        %2875 = vmatmul.mubr.bf16.gmra.mrb[0].mxu0 %v729
        %v2876 = vpop.f32.mrb[0].mxu0
        %v2877 = vadd.f32 0.0, %v2876
        %v2878 = vpop.f32.mrb[0].mxu0
        %v2879 = vadd.f32 0.0, %v2878
        %v2880 = vpop.f32.mrb[0].mxu0
        %v2881 = vadd.f32 0.0, %v2880
        %v2882 = vpop.f32.mrb[0].mxu0
        %v2883 = vadd.f32 0.0, %v2882
        %2884 = vmatprep.mubr.bf16.mxu0 0
        %2885 = vmatmul.mubr.bf16.gmra.mrb[0].mxu0 %v730
        %v2886 = vpop.f32.mrb[0].mxu0
        %v2887 = vadd.f32 0.0, %v2886
        %v2888 = vpop.f32.mrb[0].mxu0
        %v2889 = vadd.f32 0.0, %v2888
        %v2890 = vpop.f32.mrb[0].mxu0
        %v2891 = vadd.f32 0.0, %v2890
        %v2892 = vpop.f32.mrb[0].mxu0
        %v2893 = vadd.f32 0.0, %v2892
        %2894 = vmatprep.mubr.bf16.mxu0 0
        %2895 = vmatmul.mubr.bf16.gmra.mrb[0].mxu0 %v731
        %v2896 = vpop.f32.mrb[0].mxu0
        %v2897 = vadd.f32 0.0, %v2896
        %v2898 = vpop.f32.mrb[0].mxu0
        %v2899 = vadd.f32 0.0, %v2898
        %v2900 = vpop.f32.mrb[0].mxu0
        %v2901 = vadd.f32 0.0, %v2900
        %v2902 = vpop.f32.mrb[0].mxu0
        %v2903 = vadd.f32 0.0, %v2902
        %2904 = vmatprep.mubr.bf16.mxu0 0
        %2905 = vmatmul.mubr.bf16.gmra.mrb[0].mxu0 %v732
        %v2906 = vpop.f32.mrb[0].mxu0
        %v2907 = vadd.f32 0.0, %v2906
        %v2908 = vpop.f32.mrb[0].mxu0
        %v2909 = vadd.f32 0.0, %v2908
        %v2910 = vpop.f32.mrb[0].mxu0
        %v2911 = vadd.f32 0.0, %v2910
        %v2912 = vpop.f32.mrb[0].mxu0
        %v2913 = vadd.f32 0.0, %v2912
        %2914 = vmatprep.mubr.bf16.mxu0 0
        %2915 = vmatmul.mubr.bf16.gmra.mrb[0].mxu0 %v733
        %v2916 = vpop.f32.mrb[0].mxu0
        %v2917 = vadd.f32 0.0, %v2916
        %v2918 = vpop.f32.mrb[0].mxu0
        %v2919 = vadd.f32 0.0, %v2918
        %v2920 = vpop.f32.mrb[0].mxu0
        %v2921 = vadd.f32 0.0, %v2920
        %v2922 = vpop.f32.mrb[0].mxu0
        %v2923 = vadd.f32 0.0, %v2922
        %2924 = vmatprep.mubr.bf16.mxu0 0
        %2925 = vmatmul.mubr.bf16.gmra.mrb[0].mxu0 %v734
        %v2926 = vpop.f32.mrb[0].mxu0
        %v2927 = vadd.f32 0.0, %v2926
        %v2928 = vpop.f32.mrb[0].mxu0
        %v2929 = vadd.f32 0.0, %v2928
        %v2930 = vpop.f32.mrb[0].mxu0
        %v2931 = vadd.f32 0.0, %v2930
        %v2932 = vpop.f32.mrb[0].mxu0
        %v2933 = vadd.f32 0.0, %v2932
        %2934 = vdwg.mxu0
        %v2935 = vmax.f32 %v1426, 0.0
        %v2936 = vmax.f32 %v1428, 0.0
        %v2937 = vmax.f32 %v1619, 0.0
        %v2938 = vmax.f32 %v1621, 0.0
        %v2939 = vmax.f32 %v1812, 0.0
        %v2940 = vmax.f32 %v1814, 0.0
        %v2941 = vmax.f32 %v2005, 0.0
        %v2942 = vmax.f32 %v2007, 0.0
        %v2943 = vmax.f32 %v2198, 0.0
        %v2944 = vmax.f32 %v2200, 0.0
        %v2945 = vmax.f32 %v2391, 0.0
        %v2946 = vmax.f32 %v2393, 0.0
        %v2947 = vmax.f32 %v2584, 0.0
        %v2948 = vmax.f32 %v2586, 0.0
        %v2949 = vmax.f32 %v2777, 0.0
        %v2950 = vmax.f32 %v2779, 0.0
        %v2951 = vmax.f32 %v1430, 0.0
        %v2952 = vmax.f32 %v1432, 0.0
        %v2953 = vmax.f32 %v1623, 0.0
        %v2954 = vmax.f32 %v1625, 0.0
        %v2955 = vmax.f32 %v1816, 0.0
        %v2956 = vmax.f32 %v1818, 0.0
        %v2957 = vmax.f32 %v2009, 0.0
        %v2958 = vmax.f32 %v2011, 0.0
        %v2959 = vmax.f32 %v2202, 0.0
        %v2960 = vmax.f32 %v2204, 0.0
        %v2961 = vmax.f32 %v2395, 0.0
        %v2962 = vmax.f32 %v2397, 0.0
        %v2963 = vmax.f32 %v2588, 0.0
        %v2964 = vmax.f32 %v2590, 0.0
        %v2965 = vmax.f32 %v2781, 0.0
        %v2966 = vmax.f32 %v2783, 0.0
        %v2967 = vmax.f32 %v1436, 0.0
        %v2968 = vmax.f32 %v1438, 0.0
        %v2969 = vmax.f32 %v1629, 0.0
        %v2970 = vmax.f32 %v1631, 0.0
        %v2971 = vmax.f32 %v1822, 0.0
        %v2972 = vmax.f32 %v1824, 0.0
        %v2973 = vmax.f32 %v2015, 0.0
        %v2974 = vmax.f32 %v2017, 0.0
        %v2975 = vmax.f32 %v2208, 0.0
        %v2976 = vmax.f32 %v2210, 0.0
        %v2977 = vmax.f32 %v2401, 0.0
        %v2978 = vmax.f32 %v2403, 0.0
        %v2979 = vmax.f32 %v2594, 0.0
        %v2980 = vmax.f32 %v2596, 0.0
        %v2981 = vmax.f32 %v2787, 0.0
        %v2982 = vmax.f32 %v2789, 0.0
        %v2983 = vmax.f32 %v1440, 0.0
        %v2984 = vmax.f32 %v1442, 0.0
        %v2985 = vmax.f32 %v1633, 0.0
        %v2986 = vmax.f32 %v1635, 0.0
        %v2987 = vmax.f32 %v1826, 0.0
        %v2988 = vmax.f32 %v1828, 0.0
        %v2989 = vmax.f32 %v2019, 0.0
        %v2990 = vmax.f32 %v2021, 0.0
        %v2991 = vmax.f32 %v2212, 0.0
        %v2992 = vmax.f32 %v2214, 0.0
        %v2993 = vmax.f32 %v2405, 0.0
        %v2994 = vmax.f32 %v2407, 0.0
        %v2995 = vmax.f32 %v2598, 0.0
        %v2996 = vmax.f32 %v2600, 0.0
        %v2997 = vmax.f32 %v2791, 0.0
        %v2998 = vmax.f32 %v2793, 0.0
        %v2999 = vmax.f32 %v1446, 0.0
        %v3000 = vmax.f32 %v1448, 0.0
        %v3001 = vmax.f32 %v1639, 0.0
        %v3002 = vmax.f32 %v1641, 0.0
        %v3003 = vmax.f32 %v1832, 0.0
        %v3004 = vmax.f32 %v1834, 0.0
        %v3005 = vmax.f32 %v2025, 0.0
        %v3006 = vmax.f32 %v2027, 0.0
        %v3007 = vmax.f32 %v2218, 0.0
        %v3008 = vmax.f32 %v2220, 0.0
        %v3009 = vmax.f32 %v2411, 0.0
        %v3010 = vmax.f32 %v2413, 0.0
        %v3011 = vmax.f32 %v2604, 0.0
        %v3012 = vmax.f32 %v2606, 0.0
        %v3013 = vmax.f32 %v2797, 0.0
        %v3014 = vmax.f32 %v2799, 0.0
        %v3015 = vmax.f32 %v1450, 0.0
        %v3016 = vmax.f32 %v1452, 0.0
        %v3017 = vmax.f32 %v1643, 0.0
        %v3018 = vmax.f32 %v1645, 0.0
        %v3019 = vmax.f32 %v1836, 0.0
        %v3020 = vmax.f32 %v1838, 0.0
        %v3021 = vmax.f32 %v2029, 0.0
        %v3022 = vmax.f32 %v2031, 0.0
        %v3023 = vmax.f32 %v2222, 0.0
        %v3024 = vmax.f32 %v2224, 0.0
        %v3025 = vmax.f32 %v2415, 0.0
        %v3026 = vmax.f32 %v2417, 0.0
        %v3027 = vmax.f32 %v2608, 0.0
        %v3028 = vmax.f32 %v2610, 0.0
        %v3029 = vmax.f32 %v2801, 0.0
        %v3030 = vmax.f32 %v2803, 0.0
        %v3031 = vmax.f32 %v1456, 0.0
        %v3032 = vmax.f32 %v1458, 0.0
        %v3033 = vmax.f32 %v1649, 0.0
        %v3034 = vmax.f32 %v1651, 0.0
        %v3035 = vmax.f32 %v1842, 0.0
        %v3036 = vmax.f32 %v1844, 0.0
        %v3037 = vmax.f32 %v2035, 0.0
        %v3038 = vmax.f32 %v2037, 0.0
        %v3039 = vmax.f32 %v2228, 0.0
        %v3040 = vmax.f32 %v2230, 0.0
        %v3041 = vmax.f32 %v2421, 0.0
        %v3042 = vmax.f32 %v2423, 0.0
        %v3043 = vmax.f32 %v2614, 0.0
        %v3044 = vmax.f32 %v2616, 0.0
        %v3045 = vmax.f32 %v2807, 0.0
        %v3046 = vmax.f32 %v2809, 0.0
        %v3047 = vmax.f32 %v1460, 0.0
        %v3048 = vmax.f32 %v1462, 0.0
        %v3049 = vmax.f32 %v1653, 0.0
        %v3050 = vmax.f32 %v1655, 0.0
        %v3051 = vmax.f32 %v1846, 0.0
        %v3052 = vmax.f32 %v1848, 0.0
        %v3053 = vmax.f32 %v2039, 0.0
        %v3054 = vmax.f32 %v2041, 0.0
        %v3055 = vmax.f32 %v2232, 0.0
        %v3056 = vmax.f32 %v2234, 0.0
        %v3057 = vmax.f32 %v2425, 0.0
        %v3058 = vmax.f32 %v2427, 0.0
        %v3059 = vmax.f32 %v2618, 0.0
        %v3060 = vmax.f32 %v2620, 0.0
        %v3061 = vmax.f32 %v2811, 0.0
        %v3062 = vmax.f32 %v2813, 0.0
        %v3063 = vmax.f32 %v1466, 0.0
        %v3064 = vmax.f32 %v1468, 0.0
        %v3065 = vmax.f32 %v1659, 0.0
        %v3066 = vmax.f32 %v1661, 0.0
        %v3067 = vmax.f32 %v1852, 0.0
        %v3068 = vmax.f32 %v1854, 0.0
        %v3069 = vmax.f32 %v2045, 0.0
        %v3070 = vmax.f32 %v2047, 0.0
        %v3071 = vmax.f32 %v2238, 0.0
        %v3072 = vmax.f32 %v2240, 0.0
        %v3073 = vmax.f32 %v2431, 0.0
        %v3074 = vmax.f32 %v2433, 0.0
        %v3075 = vmax.f32 %v2624, 0.0
        %v3076 = vmax.f32 %v2626, 0.0
        %v3077 = vmax.f32 %v2817, 0.0
        %v3078 = vmax.f32 %v2819, 0.0
        %v3079 = vmax.f32 %v1470, 0.0
        %v3080 = vmax.f32 %v1472, 0.0
        %v3081 = vmax.f32 %v1663, 0.0
        %v3082 = vmax.f32 %v1665, 0.0
        %v3083 = vmax.f32 %v1856, 0.0
        %v3084 = vmax.f32 %v1858, 0.0
        %v3085 = vmax.f32 %v2049, 0.0
        %v3086 = vmax.f32 %v2051, 0.0
        %v3087 = vmax.f32 %v2242, 0.0
        %v3088 = vmax.f32 %v2244, 0.0
        %v3089 = vmax.f32 %v2435, 0.0
        %v3090 = vmax.f32 %v2437, 0.0
        %v3091 = vmax.f32 %v2628, 0.0
        %v3092 = vmax.f32 %v2630, 0.0
        %v3093 = vmax.f32 %v2821, 0.0
        %v3094 = vmax.f32 %v2823, 0.0
        %v3095 = vmax.f32 %v1476, 0.0
        %v3096 = vmax.f32 %v1478, 0.0
        %v3097 = vmax.f32 %v1669, 0.0
        %v3098 = vmax.f32 %v1671, 0.0
        %v3099 = vmax.f32 %v1862, 0.0
        %v3100 = vmax.f32 %v1864, 0.0
        %v3101 = vmax.f32 %v2055, 0.0
        %v3102 = vmax.f32 %v2057, 0.0
        %v3103 = vmax.f32 %v2248, 0.0
        %v3104 = vmax.f32 %v2250, 0.0
        %v3105 = vmax.f32 %v2441, 0.0
        %v3106 = vmax.f32 %v2443, 0.0
        %v3107 = vmax.f32 %v2634, 0.0
        %v3108 = vmax.f32 %v2636, 0.0
        %v3109 = vmax.f32 %v2827, 0.0
        %v3110 = vmax.f32 %v2829, 0.0
        %v3111 = vmax.f32 %v1480, 0.0
        %v3112 = vmax.f32 %v1482, 0.0
        %v3113 = vmax.f32 %v1673, 0.0
        %v3114 = vmax.f32 %v1675, 0.0
        %v3115 = vmax.f32 %v1866, 0.0
        %v3116 = vmax.f32 %v1868, 0.0
        %v3117 = vmax.f32 %v2059, 0.0
        %v3118 = vmax.f32 %v2061, 0.0
        %v3119 = vmax.f32 %v2252, 0.0
        %v3120 = vmax.f32 %v2254, 0.0
        %v3121 = vmax.f32 %v2445, 0.0
        %v3122 = vmax.f32 %v2447, 0.0
        %v3123 = vmax.f32 %v2638, 0.0
        %v3124 = vmax.f32 %v2640, 0.0
        %v3125 = vmax.f32 %v2831, 0.0
        %v3126 = vmax.f32 %v2833, 0.0
        %v3127 = vmax.f32 %v1486, 0.0
        %v3128 = vmax.f32 %v1488, 0.0
        %v3129 = vmax.f32 %v1679, 0.0
        %v3130 = vmax.f32 %v1681, 0.0
        %v3131 = vmax.f32 %v1872, 0.0
        %v3132 = vmax.f32 %v1874, 0.0
        %v3133 = vmax.f32 %v2065, 0.0
        %v3134 = vmax.f32 %v2067, 0.0
        %v3135 = vmax.f32 %v2258, 0.0
        %v3136 = vmax.f32 %v2260, 0.0
        %v3137 = vmax.f32 %v2451, 0.0
        %v3138 = vmax.f32 %v2453, 0.0
        %v3139 = vmax.f32 %v2644, 0.0
        %v3140 = vmax.f32 %v2646, 0.0
        %v3141 = vmax.f32 %v2837, 0.0
        %v3142 = vmax.f32 %v2839, 0.0
        %v3143 = vmax.f32 %v1490, 0.0
        %v3144 = vmax.f32 %v1492, 0.0
        %v3145 = vmax.f32 %v1683, 0.0
        %v3146 = vmax.f32 %v1685, 0.0
        %v3147 = vmax.f32 %v1876, 0.0
        %v3148 = vmax.f32 %v1878, 0.0
        %v3149 = vmax.f32 %v2069, 0.0
        %v3150 = vmax.f32 %v2071, 0.0
        %v3151 = vmax.f32 %v2262, 0.0
        %v3152 = vmax.f32 %v2264, 0.0
        %v3153 = vmax.f32 %v2455, 0.0
        %v3154 = vmax.f32 %v2457, 0.0
        %v3155 = vmax.f32 %v2648, 0.0
        %v3156 = vmax.f32 %v2650, 0.0
        %v3157 = vmax.f32 %v2841, 0.0
        %v3158 = vmax.f32 %v2843, 0.0
        %v3159 = vmax.f32 %v1496, 0.0
        %v3160 = vmax.f32 %v1498, 0.0
        %v3161 = vmax.f32 %v1689, 0.0
        %v3162 = vmax.f32 %v1691, 0.0
        %v3163 = vmax.f32 %v1882, 0.0
        %v3164 = vmax.f32 %v1884, 0.0
        %v3165 = vmax.f32 %v2075, 0.0
        %v3166 = vmax.f32 %v2077, 0.0
        %v3167 = vmax.f32 %v2268, 0.0
        %v3168 = vmax.f32 %v2270, 0.0
        %v3169 = vmax.f32 %v2461, 0.0
        %v3170 = vmax.f32 %v2463, 0.0
        %v3171 = vmax.f32 %v2654, 0.0
        %v3172 = vmax.f32 %v2656, 0.0
        %v3173 = vmax.f32 %v2847, 0.0
        %v3174 = vmax.f32 %v2849, 0.0
        %v3175 = vmax.f32 %v1500, 0.0
        %v3176 = vmax.f32 %v1502, 0.0
        %v3177 = vmax.f32 %v1693, 0.0
        %v3178 = vmax.f32 %v1695, 0.0
        %v3179 = vmax.f32 %v1886, 0.0
        %v3180 = vmax.f32 %v1888, 0.0
        %v3181 = vmax.f32 %v2079, 0.0
        %v3182 = vmax.f32 %v2081, 0.0
        %v3183 = vmax.f32 %v2272, 0.0
        %v3184 = vmax.f32 %v2274, 0.0
        %v3185 = vmax.f32 %v2465, 0.0
        %v3186 = vmax.f32 %v2467, 0.0
        %v3187 = vmax.f32 %v2658, 0.0
        %v3188 = vmax.f32 %v2660, 0.0
        %v3189 = vmax.f32 %v2851, 0.0
        %v3190 = vmax.f32 %v2853, 0.0
        %v3191 = vmax.f32 %v1506, 0.0
        %v3192 = vmax.f32 %v1508, 0.0
        %v3193 = vmax.f32 %v1699, 0.0
        %v3194 = vmax.f32 %v1701, 0.0
        %v3195 = vmax.f32 %v1892, 0.0
        %v3196 = vmax.f32 %v1894, 0.0
        %v3197 = vmax.f32 %v2085, 0.0
        %v3198 = vmax.f32 %v2087, 0.0
        %v3199 = vmax.f32 %v2278, 0.0
        %v3200 = vmax.f32 %v2280, 0.0
        %v3201 = vmax.f32 %v2471, 0.0
        %v3202 = vmax.f32 %v2473, 0.0
        %v3203 = vmax.f32 %v2664, 0.0
        %v3204 = vmax.f32 %v2666, 0.0
        %v3205 = vmax.f32 %v2857, 0.0
        %v3206 = vmax.f32 %v2859, 0.0
        %v3207 = vmax.f32 %v1510, 0.0
        %v3208 = vmax.f32 %v1512, 0.0
        %v3209 = vmax.f32 %v1703, 0.0
        %v3210 = vmax.f32 %v1705, 0.0
        %v3211 = vmax.f32 %v1896, 0.0
        %v3212 = vmax.f32 %v1898, 0.0
        %v3213 = vmax.f32 %v2089, 0.0
        %v3214 = vmax.f32 %v2091, 0.0
        %v3215 = vmax.f32 %v2282, 0.0
        %v3216 = vmax.f32 %v2284, 0.0
        %v3217 = vmax.f32 %v2475, 0.0
        %v3218 = vmax.f32 %v2477, 0.0
        %v3219 = vmax.f32 %v2668, 0.0
        %v3220 = vmax.f32 %v2670, 0.0
        %v3221 = vmax.f32 %v2861, 0.0
        %v3222 = vmax.f32 %v2863, 0.0
        %v3223 = vmax.f32 %v1516, 0.0
        %v3224 = vmax.f32 %v1518, 0.0
        %v3225 = vmax.f32 %v1709, 0.0
        %v3226 = vmax.f32 %v1711, 0.0
        %v3227 = vmax.f32 %v1902, 0.0
        %v3228 = vmax.f32 %v1904, 0.0
        %v3229 = vmax.f32 %v2095, 0.0
        %v3230 = vmax.f32 %v2097, 0.0
        %v3231 = vmax.f32 %v2288, 0.0
        %v3232 = vmax.f32 %v2290, 0.0
        %v3233 = vmax.f32 %v2481, 0.0
        %v3234 = vmax.f32 %v2483, 0.0
        %v3235 = vmax.f32 %v2674, 0.0
        %v3236 = vmax.f32 %v2676, 0.0
        %v3237 = vmax.f32 %v2867, 0.0
        %v3238 = vmax.f32 %v2869, 0.0
        %v3239 = vmax.f32 %v1520, 0.0
        %v3240 = vmax.f32 %v1522, 0.0
        %v3241 = vmax.f32 %v1713, 0.0
        %v3242 = vmax.f32 %v1715, 0.0
        %v3243 = vmax.f32 %v1906, 0.0
        %v3244 = vmax.f32 %v1908, 0.0
        %v3245 = vmax.f32 %v2099, 0.0
        %v3246 = vmax.f32 %v2101, 0.0
        %v3247 = vmax.f32 %v2292, 0.0
        %v3248 = vmax.f32 %v2294, 0.0
        %v3249 = vmax.f32 %v2485, 0.0
        %v3250 = vmax.f32 %v2487, 0.0
        %v3251 = vmax.f32 %v2678, 0.0
        %v3252 = vmax.f32 %v2680, 0.0
        %v3253 = vmax.f32 %v2871, 0.0
        %v3254 = vmax.f32 %v2873, 0.0
        %v3255 = vmax.f32 %v1526, 0.0
        %v3256 = vmax.f32 %v1528, 0.0
        %v3257 = vmax.f32 %v1719, 0.0
        %v3258 = vmax.f32 %v1721, 0.0
        %v3259 = vmax.f32 %v1912, 0.0
        %v3260 = vmax.f32 %v1914, 0.0
        %v3261 = vmax.f32 %v2105, 0.0
        %v3262 = vmax.f32 %v2107, 0.0
        %v3263 = vmax.f32 %v2298, 0.0
        %v3264 = vmax.f32 %v2300, 0.0
        %v3265 = vmax.f32 %v2491, 0.0
        %v3266 = vmax.f32 %v2493, 0.0
        %v3267 = vmax.f32 %v2684, 0.0
        %v3268 = vmax.f32 %v2686, 0.0
        %v3269 = vmax.f32 %v2877, 0.0
        %v3270 = vmax.f32 %v2879, 0.0
        %v3271 = vmax.f32 %v1530, 0.0
        %v3272 = vmax.f32 %v1532, 0.0
        %v3273 = vmax.f32 %v1723, 0.0
        %v3274 = vmax.f32 %v1725, 0.0
        %v3275 = vmax.f32 %v1916, 0.0
        %v3276 = vmax.f32 %v1918, 0.0
        %v3277 = vmax.f32 %v2109, 0.0
        %v3278 = vmax.f32 %v2111, 0.0
        %v3279 = vmax.f32 %v2302, 0.0
        %v3280 = vmax.f32 %v2304, 0.0
        %v3281 = vmax.f32 %v2495, 0.0
        %v3282 = vmax.f32 %v2497, 0.0
        %v3283 = vmax.f32 %v2688, 0.0
        %v3284 = vmax.f32 %v2690, 0.0
        %v3285 = vmax.f32 %v2881, 0.0
        %v3286 = vmax.f32 %v2883, 0.0
        %v3287 = vmax.f32 %v1536, 0.0
        %v3288 = vmax.f32 %v1538, 0.0
        %v3289 = vmax.f32 %v1729, 0.0
        %v3290 = vmax.f32 %v1731, 0.0
        %v3291 = vmax.f32 %v1922, 0.0
        %v3292 = vmax.f32 %v1924, 0.0
        %v3293 = vmax.f32 %v2115, 0.0
        %v3294 = vmax.f32 %v2117, 0.0
        %v3295 = vmax.f32 %v2308, 0.0
        %v3296 = vmax.f32 %v2310, 0.0
        %v3297 = vmax.f32 %v2501, 0.0
        %v3298 = vmax.f32 %v2503, 0.0
        %v3299 = vmax.f32 %v2694, 0.0
        %v3300 = vmax.f32 %v2696, 0.0
        %v3301 = vmax.f32 %v2887, 0.0
        %v3302 = vmax.f32 %v2889, 0.0
        %v3303 = vmax.f32 %v1540, 0.0
        %v3304 = vmax.f32 %v1542, 0.0
        %v3305 = vmax.f32 %v1733, 0.0
        %v3306 = vmax.f32 %v1735, 0.0
        %v3307 = vmax.f32 %v1926, 0.0
        %v3308 = vmax.f32 %v1928, 0.0
        %v3309 = vmax.f32 %v2119, 0.0
        %v3310 = vmax.f32 %v2121, 0.0
        %v3311 = vmax.f32 %v2312, 0.0
        %v3312 = vmax.f32 %v2314, 0.0
        %v3313 = vmax.f32 %v2505, 0.0
        %v3314 = vmax.f32 %v2507, 0.0
        %v3315 = vmax.f32 %v2698, 0.0
        %v3316 = vmax.f32 %v2700, 0.0
        %v3317 = vmax.f32 %v2891, 0.0
        %v3318 = vmax.f32 %v2893, 0.0
        %v3319 = vmax.f32 %v1546, 0.0
        %v3320 = vmax.f32 %v1548, 0.0
        %v3321 = vmax.f32 %v1739, 0.0
        %v3322 = vmax.f32 %v1741, 0.0
        %v3323 = vmax.f32 %v1932, 0.0
        %v3324 = vmax.f32 %v1934, 0.0
        %v3325 = vmax.f32 %v2125, 0.0
        %v3326 = vmax.f32 %v2127, 0.0
        %v3327 = vmax.f32 %v2318, 0.0
        %v3328 = vmax.f32 %v2320, 0.0
        %v3329 = vmax.f32 %v2511, 0.0
        %v3330 = vmax.f32 %v2513, 0.0
        %v3331 = vmax.f32 %v2704, 0.0
        %v3332 = vmax.f32 %v2706, 0.0
        %v3333 = vmax.f32 %v2897, 0.0
        %v3334 = vmax.f32 %v2899, 0.0
        %v3335 = vmax.f32 %v1550, 0.0
        %v3336 = vmax.f32 %v1552, 0.0
        %v3337 = vmax.f32 %v1743, 0.0
        %v3338 = vmax.f32 %v1745, 0.0
        %v3339 = vmax.f32 %v1936, 0.0
        %v3340 = vmax.f32 %v1938, 0.0
        %v3341 = vmax.f32 %v2129, 0.0
        %v3342 = vmax.f32 %v2131, 0.0
        %v3343 = vmax.f32 %v2322, 0.0
        %v3344 = vmax.f32 %v2324, 0.0
        %v3345 = vmax.f32 %v2515, 0.0
        %v3346 = vmax.f32 %v2517, 0.0
        %v3347 = vmax.f32 %v2708, 0.0
        %v3348 = vmax.f32 %v2710, 0.0
        %v3349 = vmax.f32 %v2901, 0.0
        %v3350 = vmax.f32 %v2903, 0.0
        %v3351 = vmax.f32 %v1556, 0.0
        %v3352 = vmax.f32 %v1558, 0.0
        %v3353 = vmax.f32 %v1749, 0.0
        %v3354 = vmax.f32 %v1751, 0.0
        %v3355 = vmax.f32 %v1942, 0.0
        %v3356 = vmax.f32 %v1944, 0.0
        %v3357 = vmax.f32 %v2135, 0.0
        %v3358 = vmax.f32 %v2137, 0.0
        %v3359 = vmax.f32 %v2328, 0.0
        %v3360 = vmax.f32 %v2330, 0.0
        %v3361 = vmax.f32 %v2521, 0.0
        %v3362 = vmax.f32 %v2523, 0.0
        %v3363 = vmax.f32 %v2714, 0.0
        %v3364 = vmax.f32 %v2716, 0.0
        %v3365 = vmax.f32 %v2907, 0.0
        %v3366 = vmax.f32 %v2909, 0.0
        %v3367 = vmax.f32 %v1560, 0.0
        %v3368 = vmax.f32 %v1562, 0.0
        %v3369 = vmax.f32 %v1753, 0.0
        %v3370 = vmax.f32 %v1755, 0.0
        %v3371 = vmax.f32 %v1946, 0.0
        %v3372 = vmax.f32 %v1948, 0.0
        %v3373 = vmax.f32 %v2139, 0.0
        %v3374 = vmax.f32 %v2141, 0.0
        %v3375 = vmax.f32 %v2332, 0.0
        %v3376 = vmax.f32 %v2334, 0.0
        %v3377 = vmax.f32 %v2525, 0.0
        %v3378 = vmax.f32 %v2527, 0.0
        %v3379 = vmax.f32 %v2718, 0.0
        %v3380 = vmax.f32 %v2720, 0.0
        %v3381 = vmax.f32 %v2911, 0.0
        %v3382 = vmax.f32 %v2913, 0.0
        %v3383 = vmax.f32 %v1566, 0.0
        %v3384 = vmax.f32 %v1568, 0.0
        %v3385 = vmax.f32 %v1759, 0.0
        %v3386 = vmax.f32 %v1761, 0.0
        %v3387 = vmax.f32 %v1952, 0.0
        %v3388 = vmax.f32 %v1954, 0.0
        %v3389 = vmax.f32 %v2145, 0.0
        %v3390 = vmax.f32 %v2147, 0.0
        %v3391 = vmax.f32 %v2338, 0.0
        %v3392 = vmax.f32 %v2340, 0.0
        %v3393 = vmax.f32 %v2531, 0.0
        %v3394 = vmax.f32 %v2533, 0.0
        %v3395 = vmax.f32 %v2724, 0.0
        %v3396 = vmax.f32 %v2726, 0.0
        %v3397 = vmax.f32 %v2917, 0.0
        %v3398 = vmax.f32 %v2919, 0.0
        %v3399 = vmax.f32 %v1570, 0.0
        %v3400 = vmax.f32 %v1572, 0.0
        %v3401 = vmax.f32 %v1763, 0.0
        %v3402 = vmax.f32 %v1765, 0.0
        %v3403 = vmax.f32 %v1956, 0.0
        %v3404 = vmax.f32 %v1958, 0.0
        %v3405 = vmax.f32 %v2149, 0.0
        %v3406 = vmax.f32 %v2151, 0.0
        %v3407 = vmax.f32 %v2342, 0.0
        %v3408 = vmax.f32 %v2344, 0.0
        %v3409 = vmax.f32 %v2535, 0.0
        %v3410 = vmax.f32 %v2537, 0.0
        %v3411 = vmax.f32 %v2728, 0.0
        %v3412 = vmax.f32 %v2730, 0.0
        %v3413 = vmax.f32 %v2921, 0.0
        %v3414 = vmax.f32 %v2923, 0.0
        %v3415 = vmax.f32 %v1576, 0.0
        %v3416 = vmax.f32 %v1578, 0.0
        %v3417 = vmax.f32 %v1769, 0.0
        %v3418 = vmax.f32 %v1771, 0.0
        %v3419 = vmax.f32 %v1962, 0.0
        %v3420 = vmax.f32 %v1964, 0.0
        %v3421 = vmax.f32 %v2155, 0.0
        %v3422 = vmax.f32 %v2157, 0.0
        %v3423 = vmax.f32 %v2348, 0.0
        %v3424 = vmax.f32 %v2350, 0.0
        %v3425 = vmax.f32 %v2541, 0.0
        %v3426 = vmax.f32 %v2543, 0.0
        %v3427 = vmax.f32 %v2734, 0.0
        %v3428 = vmax.f32 %v2736, 0.0
        %v3429 = vmax.f32 %v2927, 0.0
        %v3430 = vmax.f32 %v2929, 0.0
        %v3431 = vmax.f32 %v1580, 0.0
        %v3432 = vmax.f32 %v1582, 0.0
        %v3433 = vmax.f32 %v1773, 0.0
        %v3434 = vmax.f32 %v1775, 0.0
        %v3435 = vmax.f32 %v1966, 0.0
        %v3436 = vmax.f32 %v1968, 0.0
        %v3437 = vmax.f32 %v2159, 0.0
        %v3438 = vmax.f32 %v2161, 0.0
        %v3439 = vmax.f32 %v2352, 0.0
        %v3440 = vmax.f32 %v2354, 0.0
        %v3441 = vmax.f32 %v2545, 0.0
        %v3442 = vmax.f32 %v2547, 0.0
        %v3443 = vmax.f32 %v2738, 0.0
        %v3444 = vmax.f32 %v2740, 0.0
        %v3445 = vmax.f32 %v2931, 0.0
        %v3446 = vmax.f32 %v2933, 0.0
        %v3447 = vld [vmem:[%s491] ss:$2 sm:$0xff]
        %s3448 = scalar_lea.vmem %s491, 16
        %v3449 = vld [vmem:[%s3448] ss:$2 sm:$0xff]
        %s3450 = scalar_lea.vmem %s491, 1
        %v3451 = vld [vmem:[%s3450] ss:$2 sm:$0xff]
        %s3452 = scalar_lea.vmem %s491, 17
        %v3453 = vld [vmem:[%s3452] ss:$2 sm:$0xff]
        %v3454 = vsub.f32 1.0, %v3447
        %v3455 = vsub.f32 1.0, %v3449
        %v3456 = vsub.f32 1.0, %v3451
        %v3457 = vsub.f32 1.0, %v3453
        %v3458 = vmul.f32 %v3454, %v3456
        %v3459 = vmul.f32 %v3455, %v3457
        %v3460 = vmul.f32 %v3454, %v3451
        %v3461 = vmul.f32 %v3455, %v3453
        %v3462 = vmul.f32 %v3447, %v3456
        %v3463 = vmul.f32 %v3449, %v3457
        %v3464 = vmul.f32 %v3447, %v3451
        %v3465 = vmul.f32 %v3449, %v3453
        %v3468 = vlaneseq
        %v3469 = vshrl.u32 %v3468, 7
        %v3470 = vsub.s32 0, %v3469
        %v3471 = vrot.slane %v3458, %v3470
        %v3472 = vlaneseq
        %v3473 = vshrl.u32 %v3472, 7
        %v3474 = vsub.s32 1, %v3473
        %v3475 = vrot.slane %v3458, %v3474
        %v3476 = vlaneseq
        %v3477 = vshrl.u32 %v3476, 7
        %v3478 = vsub.s32 2, %v3477
        %v3479 = vrot.slane %v3458, %v3478
        %v3480 = vlaneseq
        %v3481 = vshrl.u32 %v3480, 7
        %v3482 = vsub.s32 3, %v3481
        %v3483 = vrot.slane %v3458, %v3482
        %v3484 = vlaneseq
        %v3485 = vshrl.u32 %v3484, 7
        %v3486 = vsub.s32 4, %v3485
        %v3487 = vrot.slane %v3458, %v3486
        %v3488 = vlaneseq
        %v3489 = vshrl.u32 %v3488, 7
        %v3490 = vsub.s32 5, %v3489
        %v3491 = vrot.slane %v3458, %v3490
        %v3492 = vlaneseq
        %v3493 = vshrl.u32 %v3492, 7
        %v3494 = vsub.s32 6, %v3493
        %v3495 = vrot.slane %v3458, %v3494
        %v3496 = vlaneseq
        %v3497 = vshrl.u32 %v3496, 7
        %v3498 = vsub.s32 7, %v3497
        %v3499 = vrot.slane %v3458, %v3498
        %v3500 = vlaneseq
        %v3501 = vshrl.u32 %v3500, 7
        %v3502 = vsub.s32 0, %v3501
        %v3503 = vrot.slane %v3459, %v3502
        %v3504 = vlaneseq
        %v3505 = vshrl.u32 %v3504, 7
        %v3506 = vsub.s32 1, %v3505
        %v3507 = vrot.slane %v3459, %v3506
        %v3508 = vlaneseq
        %v3509 = vshrl.u32 %v3508, 7
        %v3510 = vsub.s32 2, %v3509
        %v3511 = vrot.slane %v3459, %v3510
        %v3512 = vlaneseq
        %v3513 = vshrl.u32 %v3512, 7
        %v3514 = vsub.s32 3, %v3513
        %v3515 = vrot.slane %v3459, %v3514
        %v3516 = vlaneseq
        %v3517 = vshrl.u32 %v3516, 7
        %v3518 = vsub.s32 4, %v3517
        %v3519 = vrot.slane %v3459, %v3518
        %v3520 = vlaneseq
        %v3521 = vshrl.u32 %v3520, 7
        %v3522 = vsub.s32 5, %v3521
        %v3523 = vrot.slane %v3459, %v3522
        %v3524 = vlaneseq
        %v3525 = vshrl.u32 %v3524, 7
        %v3526 = vsub.s32 6, %v3525
        %v3527 = vrot.slane %v3459, %v3526
        %v3528 = vlaneseq
        %v3529 = vshrl.u32 %v3528, 7
        %v3530 = vsub.s32 7, %v3529
        %v3531 = vrot.slane %v3459, %v3530
        %v3548 = vmul.f32 %v3471, %v2935
        %v3549 = vmul.f32 %v3475, %v2936
        %v3550 = vmul.f32 %v3479, %v2937
        %v3551 = vmul.f32 %v3483, %v2938
        %v3552 = vmul.f32 %v3487, %v2939
        %v3553 = vmul.f32 %v3491, %v2940
        %v3554 = vmul.f32 %v3495, %v2941
        %v3555 = vmul.f32 %v3499, %v2942
        %v3556 = vmul.f32 %v3503, %v2943
        %v3557 = vmul.f32 %v3507, %v2944
        %v3558 = vmul.f32 %v3511, %v2945
        %v3559 = vmul.f32 %v3515, %v2946
        %v3560 = vmul.f32 %v3519, %v2947
        %v3561 = vmul.f32 %v3523, %v2948
        %v3562 = vmul.f32 %v3527, %v2949
        %v3563 = vmul.f32 %v3531, %v2950
        %v3564 = vmul.f32 %v3471, %v2951
        %v3565 = vmul.f32 %v3475, %v2952
        %v3566 = vmul.f32 %v3479, %v2953
        %v3567 = vmul.f32 %v3483, %v2954
        %v3568 = vmul.f32 %v3487, %v2955
        %v3569 = vmul.f32 %v3491, %v2956
        %v3570 = vmul.f32 %v3495, %v2957
        %v3571 = vmul.f32 %v3499, %v2958
        %v3572 = vmul.f32 %v3503, %v2959
        %v3573 = vmul.f32 %v3507, %v2960
        %v3574 = vmul.f32 %v3511, %v2961
        %v3575 = vmul.f32 %v3515, %v2962
        %v3576 = vmul.f32 %v3519, %v2963
        %v3577 = vmul.f32 %v3523, %v2964
        %v3578 = vmul.f32 %v3527, %v2965
        %v3579 = vmul.f32 %v3531, %v2966
        %v3580 = vmul.f32 %v3471, %v2967
        %v3581 = vmul.f32 %v3475, %v2968
        %v3582 = vmul.f32 %v3479, %v2969
        %v3583 = vmul.f32 %v3483, %v2970
        %v3584 = vmul.f32 %v3487, %v2971
        %v3585 = vmul.f32 %v3491, %v2972
        %v3586 = vmul.f32 %v3495, %v2973
        %v3587 = vmul.f32 %v3499, %v2974
        %v3588 = vmul.f32 %v3503, %v2975
        %v3589 = vmul.f32 %v3507, %v2976
        %v3590 = vmul.f32 %v3511, %v2977
        %v3591 = vmul.f32 %v3515, %v2978
        %v3592 = vmul.f32 %v3519, %v2979
        %v3593 = vmul.f32 %v3523, %v2980
        %v3594 = vmul.f32 %v3527, %v2981
        %v3595 = vmul.f32 %v3531, %v2982
        %v3596 = vmul.f32 %v3471, %v2983
        %v3597 = vmul.f32 %v3475, %v2984
        %v3598 = vmul.f32 %v3479, %v2985
        %v3599 = vmul.f32 %v3483, %v2986
        %v3600 = vmul.f32 %v3487, %v2987
        %v3601 = vmul.f32 %v3491, %v2988
        %v3602 = vmul.f32 %v3495, %v2989
        %v3603 = vmul.f32 %v3499, %v2990
        %v3604 = vmul.f32 %v3503, %v2991
        %v3605 = vmul.f32 %v3507, %v2992
        %v3606 = vmul.f32 %v3511, %v2993
        %v3607 = vmul.f32 %v3515, %v2994
        %v3608 = vmul.f32 %v3519, %v2995
        %v3609 = vmul.f32 %v3523, %v2996
        %v3610 = vmul.f32 %v3527, %v2997
        %v3611 = vmul.f32 %v3531, %v2998
        %v3612 = vmul.f32 %v3471, %v2999
        %v3613 = vmul.f32 %v3475, %v3000
        %v3614 = vmul.f32 %v3479, %v3001
        %v3615 = vmul.f32 %v3483, %v3002
        %v3616 = vmul.f32 %v3487, %v3003
        %v3617 = vmul.f32 %v3491, %v3004
        %v3618 = vmul.f32 %v3495, %v3005
        %v3619 = vmul.f32 %v3499, %v3006
        %v3620 = vmul.f32 %v3503, %v3007
        %v3621 = vmul.f32 %v3507, %v3008
        %v3622 = vmul.f32 %v3511, %v3009
        %v3623 = vmul.f32 %v3515, %v3010
        %v3624 = vmul.f32 %v3519, %v3011
        %v3625 = vmul.f32 %v3523, %v3012
        %v3626 = vmul.f32 %v3527, %v3013
        %v3627 = vmul.f32 %v3531, %v3014
        %v3628 = vmul.f32 %v3471, %v3015
        %v3629 = vmul.f32 %v3475, %v3016
        %v3630 = vmul.f32 %v3479, %v3017
        %v3631 = vmul.f32 %v3483, %v3018
        %v3632 = vmul.f32 %v3487, %v3019
        %v3633 = vmul.f32 %v3491, %v3020
        %v3634 = vmul.f32 %v3495, %v3021
        %v3635 = vmul.f32 %v3499, %v3022
        %v3636 = vmul.f32 %v3503, %v3023
        %v3637 = vmul.f32 %v3507, %v3024
        %v3638 = vmul.f32 %v3511, %v3025
        %v3639 = vmul.f32 %v3515, %v3026
        %v3640 = vmul.f32 %v3519, %v3027
        %v3641 = vmul.f32 %v3523, %v3028
        %v3642 = vmul.f32 %v3527, %v3029
        %v3643 = vmul.f32 %v3531, %v3030
        %v3644 = vmul.f32 %v3471, %v3031
        %v3645 = vmul.f32 %v3475, %v3032
        %v3646 = vmul.f32 %v3479, %v3033
        %v3647 = vmul.f32 %v3483, %v3034
        %v3648 = vmul.f32 %v3487, %v3035
        %v3649 = vmul.f32 %v3491, %v3036
        %v3650 = vmul.f32 %v3495, %v3037
        %v3651 = vmul.f32 %v3499, %v3038
        %v3652 = vmul.f32 %v3503, %v3039
        %v3653 = vmul.f32 %v3507, %v3040
        %v3654 = vmul.f32 %v3511, %v3041
        %v3655 = vmul.f32 %v3515, %v3042
        %v3656 = vmul.f32 %v3519, %v3043
        %v3657 = vmul.f32 %v3523, %v3044
        %v3658 = vmul.f32 %v3527, %v3045
        %v3659 = vmul.f32 %v3531, %v3046
        %v3660 = vmul.f32 %v3471, %v3047
        %v3661 = vmul.f32 %v3475, %v3048
        %v3662 = vmul.f32 %v3479, %v3049
        %v3663 = vmul.f32 %v3483, %v3050
        %v3664 = vmul.f32 %v3487, %v3051
        %v3665 = vmul.f32 %v3491, %v3052
        %v3666 = vmul.f32 %v3495, %v3053
        %v3667 = vmul.f32 %v3499, %v3054
        %v3668 = vmul.f32 %v3503, %v3055
        %v3669 = vmul.f32 %v3507, %v3056
        %v3670 = vmul.f32 %v3511, %v3057
        %v3671 = vmul.f32 %v3515, %v3058
        %v3672 = vmul.f32 %v3519, %v3059
        %v3673 = vmul.f32 %v3523, %v3060
        %v3674 = vmul.f32 %v3527, %v3061
        %v3675 = vmul.f32 %v3531, %v3062
        %v3678 = vlaneseq
        %v3679 = vshrl.u32 %v3678, 7
        %v3680 = vsub.s32 0, %v3679
        %v3681 = vrot.slane %v3460, %v3680
        %v3682 = vlaneseq
        %v3683 = vshrl.u32 %v3682, 7
        %v3684 = vsub.s32 1, %v3683
        %v3685 = vrot.slane %v3460, %v3684
        %v3686 = vlaneseq
        %v3687 = vshrl.u32 %v3686, 7
        %v3688 = vsub.s32 2, %v3687
        %v3689 = vrot.slane %v3460, %v3688
        %v3690 = vlaneseq
        %v3691 = vshrl.u32 %v3690, 7
        %v3692 = vsub.s32 3, %v3691
        %v3693 = vrot.slane %v3460, %v3692
        %v3694 = vlaneseq
        %v3695 = vshrl.u32 %v3694, 7
        %v3696 = vsub.s32 4, %v3695
        %v3697 = vrot.slane %v3460, %v3696
        %v3698 = vlaneseq
        %v3699 = vshrl.u32 %v3698, 7
        %v3700 = vsub.s32 5, %v3699
        %v3701 = vrot.slane %v3460, %v3700
        %v3702 = vlaneseq
        %v3703 = vshrl.u32 %v3702, 7
        %v3704 = vsub.s32 6, %v3703
        %v3705 = vrot.slane %v3460, %v3704
        %v3706 = vlaneseq
        %v3707 = vshrl.u32 %v3706, 7
        %v3708 = vsub.s32 7, %v3707
        %v3709 = vrot.slane %v3460, %v3708
        %v3710 = vlaneseq
        %v3711 = vshrl.u32 %v3710, 7
        %v3712 = vsub.s32 0, %v3711
        %v3713 = vrot.slane %v3461, %v3712
        %v3714 = vlaneseq
        %v3715 = vshrl.u32 %v3714, 7
        %v3716 = vsub.s32 1, %v3715
        %v3717 = vrot.slane %v3461, %v3716
        %v3718 = vlaneseq
        %v3719 = vshrl.u32 %v3718, 7
        %v3720 = vsub.s32 2, %v3719
        %v3721 = vrot.slane %v3461, %v3720
        %v3722 = vlaneseq
        %v3723 = vshrl.u32 %v3722, 7
        %v3724 = vsub.s32 3, %v3723
        %v3725 = vrot.slane %v3461, %v3724
        %v3726 = vlaneseq
        %v3727 = vshrl.u32 %v3726, 7
        %v3728 = vsub.s32 4, %v3727
        %v3729 = vrot.slane %v3461, %v3728
        %v3730 = vlaneseq
        %v3731 = vshrl.u32 %v3730, 7
        %v3732 = vsub.s32 5, %v3731
        %v3733 = vrot.slane %v3461, %v3732
        %v3734 = vlaneseq
        %v3735 = vshrl.u32 %v3734, 7
        %v3736 = vsub.s32 6, %v3735
        %v3737 = vrot.slane %v3461, %v3736
        %v3738 = vlaneseq
        %v3739 = vshrl.u32 %v3738, 7
        %v3740 = vsub.s32 7, %v3739
        %v3741 = vrot.slane %v3461, %v3740
        %v3758 = vmul.f32 %v3681, %v3063
        %v3759 = vmul.f32 %v3685, %v3064
        %v3760 = vmul.f32 %v3689, %v3065
        %v3761 = vmul.f32 %v3693, %v3066
        %v3762 = vmul.f32 %v3697, %v3067
        %v3763 = vmul.f32 %v3701, %v3068
        %v3764 = vmul.f32 %v3705, %v3069
        %v3765 = vmul.f32 %v3709, %v3070
        %v3766 = vmul.f32 %v3713, %v3071
        %v3767 = vmul.f32 %v3717, %v3072
        %v3768 = vmul.f32 %v3721, %v3073
        %v3769 = vmul.f32 %v3725, %v3074
        %v3770 = vmul.f32 %v3729, %v3075
        %v3771 = vmul.f32 %v3733, %v3076
        %v3772 = vmul.f32 %v3737, %v3077
        %v3773 = vmul.f32 %v3741, %v3078
        %v3774 = vmul.f32 %v3681, %v3079
        %v3775 = vmul.f32 %v3685, %v3080
        %v3776 = vmul.f32 %v3689, %v3081
        %v3777 = vmul.f32 %v3693, %v3082
        %v3778 = vmul.f32 %v3697, %v3083
        %v3779 = vmul.f32 %v3701, %v3084
        %v3780 = vmul.f32 %v3705, %v3085
        %v3781 = vmul.f32 %v3709, %v3086
        %v3782 = vmul.f32 %v3713, %v3087
        %v3783 = vmul.f32 %v3717, %v3088
        %v3784 = vmul.f32 %v3721, %v3089
        %v3785 = vmul.f32 %v3725, %v3090
        %v3786 = vmul.f32 %v3729, %v3091
        %v3787 = vmul.f32 %v3733, %v3092
        %v3788 = vmul.f32 %v3737, %v3093
        %v3789 = vmul.f32 %v3741, %v3094
        %v3790 = vmul.f32 %v3681, %v3095
        %v3791 = vmul.f32 %v3685, %v3096
        %v3792 = vmul.f32 %v3689, %v3097
        %v3793 = vmul.f32 %v3693, %v3098
        %v3794 = vmul.f32 %v3697, %v3099
        %v3795 = vmul.f32 %v3701, %v3100
        %v3796 = vmul.f32 %v3705, %v3101
        %v3797 = vmul.f32 %v3709, %v3102
        %v3798 = vmul.f32 %v3713, %v3103
        %v3799 = vmul.f32 %v3717, %v3104
        %v3800 = vmul.f32 %v3721, %v3105
        %v3801 = vmul.f32 %v3725, %v3106
        %v3802 = vmul.f32 %v3729, %v3107
        %v3803 = vmul.f32 %v3733, %v3108
        %v3804 = vmul.f32 %v3737, %v3109
        %v3805 = vmul.f32 %v3741, %v3110
        %v3806 = vmul.f32 %v3681, %v3111
        %v3807 = vmul.f32 %v3685, %v3112
        %v3808 = vmul.f32 %v3689, %v3113
        %v3809 = vmul.f32 %v3693, %v3114
        %v3810 = vmul.f32 %v3697, %v3115
        %v3811 = vmul.f32 %v3701, %v3116
        %v3812 = vmul.f32 %v3705, %v3117
        %v3813 = vmul.f32 %v3709, %v3118
        %v3814 = vmul.f32 %v3713, %v3119
        %v3815 = vmul.f32 %v3717, %v3120
        %v3816 = vmul.f32 %v3721, %v3121
        %v3817 = vmul.f32 %v3725, %v3122
        %v3818 = vmul.f32 %v3729, %v3123
        %v3819 = vmul.f32 %v3733, %v3124
        %v3820 = vmul.f32 %v3737, %v3125
        %v3821 = vmul.f32 %v3741, %v3126
        %v3822 = vmul.f32 %v3681, %v3127
        %v3823 = vmul.f32 %v3685, %v3128
        %v3824 = vmul.f32 %v3689, %v3129
        %v3825 = vmul.f32 %v3693, %v3130
        %v3826 = vmul.f32 %v3697, %v3131
        %v3827 = vmul.f32 %v3701, %v3132
        %v3828 = vmul.f32 %v3705, %v3133
        %v3829 = vmul.f32 %v3709, %v3134
        %v3830 = vmul.f32 %v3713, %v3135
        %v3831 = vmul.f32 %v3717, %v3136
        %v3832 = vmul.f32 %v3721, %v3137
        %v3833 = vmul.f32 %v3725, %v3138
        %v3834 = vmul.f32 %v3729, %v3139
        %v3835 = vmul.f32 %v3733, %v3140
        %v3836 = vmul.f32 %v3737, %v3141
        %v3837 = vmul.f32 %v3741, %v3142
        %v3838 = vmul.f32 %v3681, %v3143
        %v3839 = vmul.f32 %v3685, %v3144
        %v3840 = vmul.f32 %v3689, %v3145
        %v3841 = vmul.f32 %v3693, %v3146
        %v3842 = vmul.f32 %v3697, %v3147
        %v3843 = vmul.f32 %v3701, %v3148
        %v3844 = vmul.f32 %v3705, %v3149
        %v3845 = vmul.f32 %v3709, %v3150
        %v3846 = vmul.f32 %v3713, %v3151
        %v3847 = vmul.f32 %v3717, %v3152
        %v3848 = vmul.f32 %v3721, %v3153
        %v3849 = vmul.f32 %v3725, %v3154
        %v3850 = vmul.f32 %v3729, %v3155
        %v3851 = vmul.f32 %v3733, %v3156
        %v3852 = vmul.f32 %v3737, %v3157
        %v3853 = vmul.f32 %v3741, %v3158
        %v3854 = vmul.f32 %v3681, %v3159
        %v3855 = vmul.f32 %v3685, %v3160
        %v3856 = vmul.f32 %v3689, %v3161
        %v3857 = vmul.f32 %v3693, %v3162
        %v3858 = vmul.f32 %v3697, %v3163
        %v3859 = vmul.f32 %v3701, %v3164
        %v3860 = vmul.f32 %v3705, %v3165
        %v3861 = vmul.f32 %v3709, %v3166
        %v3862 = vmul.f32 %v3713, %v3167
        %v3863 = vmul.f32 %v3717, %v3168
        %v3864 = vmul.f32 %v3721, %v3169
        %v3865 = vmul.f32 %v3725, %v3170
        %v3866 = vmul.f32 %v3729, %v3171
        %v3867 = vmul.f32 %v3733, %v3172
        %v3868 = vmul.f32 %v3737, %v3173
        %v3869 = vmul.f32 %v3741, %v3174
        %v3870 = vmul.f32 %v3681, %v3175
        %v3871 = vmul.f32 %v3685, %v3176
        %v3872 = vmul.f32 %v3689, %v3177
        %v3873 = vmul.f32 %v3693, %v3178
        %v3874 = vmul.f32 %v3697, %v3179
        %v3875 = vmul.f32 %v3701, %v3180
        %v3876 = vmul.f32 %v3705, %v3181
        %v3877 = vmul.f32 %v3709, %v3182
        %v3878 = vmul.f32 %v3713, %v3183
        %v3879 = vmul.f32 %v3717, %v3184
        %v3880 = vmul.f32 %v3721, %v3185
        %v3881 = vmul.f32 %v3725, %v3186
        %v3882 = vmul.f32 %v3729, %v3187
        %v3883 = vmul.f32 %v3733, %v3188
        %v3884 = vmul.f32 %v3737, %v3189
        %v3885 = vmul.f32 %v3741, %v3190
        %v3886 = vadd.f32 %v3548, %v3758
        %v3887 = vadd.f32 %v3549, %v3759
        %v3888 = vadd.f32 %v3550, %v3760
        %v3889 = vadd.f32 %v3551, %v3761
        %v3890 = vadd.f32 %v3552, %v3762
        %v3891 = vadd.f32 %v3553, %v3763
        %v3892 = vadd.f32 %v3554, %v3764
        %v3893 = vadd.f32 %v3555, %v3765
        %v3894 = vadd.f32 %v3556, %v3766
        %v3895 = vadd.f32 %v3557, %v3767
        %v3896 = vadd.f32 %v3558, %v3768
        %v3897 = vadd.f32 %v3559, %v3769
        %v3898 = vadd.f32 %v3560, %v3770
        %v3899 = vadd.f32 %v3561, %v3771
        %v3900 = vadd.f32 %v3562, %v3772
        %v3901 = vadd.f32 %v3563, %v3773
        %v3902 = vadd.f32 %v3564, %v3774
        %v3903 = vadd.f32 %v3565, %v3775
        %v3904 = vadd.f32 %v3566, %v3776
        %v3905 = vadd.f32 %v3567, %v3777
        %v3906 = vadd.f32 %v3568, %v3778
        %v3907 = vadd.f32 %v3569, %v3779
        %v3908 = vadd.f32 %v3570, %v3780
        %v3909 = vadd.f32 %v3571, %v3781
        %v3910 = vadd.f32 %v3572, %v3782
        %v3911 = vadd.f32 %v3573, %v3783
        %v3912 = vadd.f32 %v3574, %v3784
        %v3913 = vadd.f32 %v3575, %v3785
        %v3914 = vadd.f32 %v3576, %v3786
        %v3915 = vadd.f32 %v3577, %v3787
        %v3916 = vadd.f32 %v3578, %v3788
        %v3917 = vadd.f32 %v3579, %v3789
        %v3918 = vadd.f32 %v3580, %v3790
        %v3919 = vadd.f32 %v3581, %v3791
        %v3920 = vadd.f32 %v3582, %v3792
        %v3921 = vadd.f32 %v3583, %v3793
        %v3922 = vadd.f32 %v3584, %v3794
        %v3923 = vadd.f32 %v3585, %v3795
        %v3924 = vadd.f32 %v3586, %v3796
        %v3925 = vadd.f32 %v3587, %v3797
        %v3926 = vadd.f32 %v3588, %v3798
        %v3927 = vadd.f32 %v3589, %v3799
        %v3928 = vadd.f32 %v3590, %v3800
        %v3929 = vadd.f32 %v3591, %v3801
        %v3930 = vadd.f32 %v3592, %v3802
        %v3931 = vadd.f32 %v3593, %v3803
        %v3932 = vadd.f32 %v3594, %v3804
        %v3933 = vadd.f32 %v3595, %v3805
        %v3934 = vadd.f32 %v3596, %v3806
        %v3935 = vadd.f32 %v3597, %v3807
        %v3936 = vadd.f32 %v3598, %v3808
        %v3937 = vadd.f32 %v3599, %v3809
        %v3938 = vadd.f32 %v3600, %v3810
        %v3939 = vadd.f32 %v3601, %v3811
        %v3940 = vadd.f32 %v3602, %v3812
        %v3941 = vadd.f32 %v3603, %v3813
        %v3942 = vadd.f32 %v3604, %v3814
        %v3943 = vadd.f32 %v3605, %v3815
        %v3944 = vadd.f32 %v3606, %v3816
        %v3945 = vadd.f32 %v3607, %v3817
        %v3946 = vadd.f32 %v3608, %v3818
        %v3947 = vadd.f32 %v3609, %v3819
        %v3948 = vadd.f32 %v3610, %v3820
        %v3949 = vadd.f32 %v3611, %v3821
        %v3950 = vadd.f32 %v3612, %v3822
        %v3951 = vadd.f32 %v3613, %v3823
        %v3952 = vadd.f32 %v3614, %v3824
        %v3953 = vadd.f32 %v3615, %v3825
        %v3954 = vadd.f32 %v3616, %v3826
        %v3955 = vadd.f32 %v3617, %v3827
        %v3956 = vadd.f32 %v3618, %v3828
        %v3957 = vadd.f32 %v3619, %v3829
        %v3958 = vadd.f32 %v3620, %v3830
        %v3959 = vadd.f32 %v3621, %v3831
        %v3960 = vadd.f32 %v3622, %v3832
        %v3961 = vadd.f32 %v3623, %v3833
        %v3962 = vadd.f32 %v3624, %v3834
        %v3963 = vadd.f32 %v3625, %v3835
        %v3964 = vadd.f32 %v3626, %v3836
        %v3965 = vadd.f32 %v3627, %v3837
        %v3966 = vadd.f32 %v3628, %v3838
        %v3967 = vadd.f32 %v3629, %v3839
        %v3968 = vadd.f32 %v3630, %v3840
        %v3969 = vadd.f32 %v3631, %v3841
        %v3970 = vadd.f32 %v3632, %v3842
        %v3971 = vadd.f32 %v3633, %v3843
        %v3972 = vadd.f32 %v3634, %v3844
        %v3973 = vadd.f32 %v3635, %v3845
        %v3974 = vadd.f32 %v3636, %v3846
        %v3975 = vadd.f32 %v3637, %v3847
        %v3976 = vadd.f32 %v3638, %v3848
        %v3977 = vadd.f32 %v3639, %v3849
        %v3978 = vadd.f32 %v3640, %v3850
        %v3979 = vadd.f32 %v3641, %v3851
        %v3980 = vadd.f32 %v3642, %v3852
        %v3981 = vadd.f32 %v3643, %v3853
        %v3982 = vadd.f32 %v3644, %v3854
        %v3983 = vadd.f32 %v3645, %v3855
        %v3984 = vadd.f32 %v3646, %v3856
        %v3985 = vadd.f32 %v3647, %v3857
        %v3986 = vadd.f32 %v3648, %v3858
        %v3987 = vadd.f32 %v3649, %v3859
        %v3988 = vadd.f32 %v3650, %v3860
        %v3989 = vadd.f32 %v3651, %v3861
        %v3990 = vadd.f32 %v3652, %v3862
        %v3991 = vadd.f32 %v3653, %v3863
        %v3992 = vadd.f32 %v3654, %v3864
        %v3993 = vadd.f32 %v3655, %v3865
        %v3994 = vadd.f32 %v3656, %v3866
        %v3995 = vadd.f32 %v3657, %v3867
        %v3996 = vadd.f32 %v3658, %v3868
        %v3997 = vadd.f32 %v3659, %v3869
        %v3998 = vadd.f32 %v3660, %v3870
        %v3999 = vadd.f32 %v3661, %v3871
        %v4000 = vadd.f32 %v3662, %v3872
        %v4001 = vadd.f32 %v3663, %v3873
        %v4002 = vadd.f32 %v3664, %v3874
        %v4003 = vadd.f32 %v3665, %v3875
        %v4004 = vadd.f32 %v3666, %v3876
        %v4005 = vadd.f32 %v3667, %v3877
        %v4006 = vadd.f32 %v3668, %v3878
        %v4007 = vadd.f32 %v3669, %v3879
        %v4008 = vadd.f32 %v3670, %v3880
        %v4009 = vadd.f32 %v3671, %v3881
        %v4010 = vadd.f32 %v3672, %v3882
        %v4011 = vadd.f32 %v3673, %v3883
        %v4012 = vadd.f32 %v3674, %v3884
        %v4013 = vadd.f32 %v3675, %v3885
        %v4016 = vlaneseq
        %v4017 = vshrl.u32 %v4016, 7
        %v4018 = vsub.s32 0, %v4017
        %v4019 = vrot.slane %v3462, %v4018
        %v4020 = vlaneseq
        %v4021 = vshrl.u32 %v4020, 7
        %v4022 = vsub.s32 1, %v4021
        %v4023 = vrot.slane %v3462, %v4022
        %v4024 = vlaneseq
        %v4025 = vshrl.u32 %v4024, 7
        %v4026 = vsub.s32 2, %v4025
        %v4027 = vrot.slane %v3462, %v4026
        %v4028 = vlaneseq
        %v4029 = vshrl.u32 %v4028, 7
        %v4030 = vsub.s32 3, %v4029
        %v4031 = vrot.slane %v3462, %v4030
        %v4032 = vlaneseq
        %v4033 = vshrl.u32 %v4032, 7
        %v4034 = vsub.s32 4, %v4033
        %v4035 = vrot.slane %v3462, %v4034
        %v4036 = vlaneseq
        %v4037 = vshrl.u32 %v4036, 7
        %v4038 = vsub.s32 5, %v4037
        %v4039 = vrot.slane %v3462, %v4038
        %v4040 = vlaneseq
        %v4041 = vshrl.u32 %v4040, 7
        %v4042 = vsub.s32 6, %v4041
        %v4043 = vrot.slane %v3462, %v4042
        %v4044 = vlaneseq
        %v4045 = vshrl.u32 %v4044, 7
        %v4046 = vsub.s32 7, %v4045
        %v4047 = vrot.slane %v3462, %v4046
        %v4048 = vlaneseq
        %v4049 = vshrl.u32 %v4048, 7
        %v4050 = vsub.s32 0, %v4049
        %v4051 = vrot.slane %v3463, %v4050
        %v4052 = vlaneseq
        %v4053 = vshrl.u32 %v4052, 7
        %v4054 = vsub.s32 1, %v4053
        %v4055 = vrot.slane %v3463, %v4054
        %v4056 = vlaneseq
        %v4057 = vshrl.u32 %v4056, 7
        %v4058 = vsub.s32 2, %v4057
        %v4059 = vrot.slane %v3463, %v4058
        %v4060 = vlaneseq
        %v4061 = vshrl.u32 %v4060, 7
        %v4062 = vsub.s32 3, %v4061
        %v4063 = vrot.slane %v3463, %v4062
        %v4064 = vlaneseq
        %v4065 = vshrl.u32 %v4064, 7
        %v4066 = vsub.s32 4, %v4065
        %v4067 = vrot.slane %v3463, %v4066
        %v4068 = vlaneseq
        %v4069 = vshrl.u32 %v4068, 7
        %v4070 = vsub.s32 5, %v4069
        %v4071 = vrot.slane %v3463, %v4070
        %v4072 = vlaneseq
        %v4073 = vshrl.u32 %v4072, 7
        %v4074 = vsub.s32 6, %v4073
        %v4075 = vrot.slane %v3463, %v4074
        %v4076 = vlaneseq
        %v4077 = vshrl.u32 %v4076, 7
        %v4078 = vsub.s32 7, %v4077
        %v4079 = vrot.slane %v3463, %v4078
        %v4096 = vmul.f32 %v4019, %v3191
        %v4097 = vmul.f32 %v4023, %v3192
        %v4098 = vmul.f32 %v4027, %v3193
        %v4099 = vmul.f32 %v4031, %v3194
        %v4100 = vmul.f32 %v4035, %v3195
        %v4101 = vmul.f32 %v4039, %v3196
        %v4102 = vmul.f32 %v4043, %v3197
        %v4103 = vmul.f32 %v4047, %v3198
        %v4104 = vmul.f32 %v4051, %v3199
        %v4105 = vmul.f32 %v4055, %v3200
        %v4106 = vmul.f32 %v4059, %v3201
        %v4107 = vmul.f32 %v4063, %v3202
        %v4108 = vmul.f32 %v4067, %v3203
        %v4109 = vmul.f32 %v4071, %v3204
        %v4110 = vmul.f32 %v4075, %v3205
        %v4111 = vmul.f32 %v4079, %v3206
        %v4112 = vmul.f32 %v4019, %v3207
        %v4113 = vmul.f32 %v4023, %v3208
        %v4114 = vmul.f32 %v4027, %v3209
        %v4115 = vmul.f32 %v4031, %v3210
        %v4116 = vmul.f32 %v4035, %v3211
        %v4117 = vmul.f32 %v4039, %v3212
        %v4118 = vmul.f32 %v4043, %v3213
        %v4119 = vmul.f32 %v4047, %v3214
        %v4120 = vmul.f32 %v4051, %v3215
        %v4121 = vmul.f32 %v4055, %v3216
        %v4122 = vmul.f32 %v4059, %v3217
        %v4123 = vmul.f32 %v4063, %v3218
        %v4124 = vmul.f32 %v4067, %v3219
        %v4125 = vmul.f32 %v4071, %v3220
        %v4126 = vmul.f32 %v4075, %v3221
        %v4127 = vmul.f32 %v4079, %v3222
        %v4128 = vmul.f32 %v4019, %v3223
        %v4129 = vmul.f32 %v4023, %v3224
        %v4130 = vmul.f32 %v4027, %v3225
        %v4131 = vmul.f32 %v4031, %v3226
        %v4132 = vmul.f32 %v4035, %v3227
        %v4133 = vmul.f32 %v4039, %v3228
        %v4134 = vmul.f32 %v4043, %v3229
        %v4135 = vmul.f32 %v4047, %v3230
        %v4136 = vmul.f32 %v4051, %v3231
        %v4137 = vmul.f32 %v4055, %v3232
        %v4138 = vmul.f32 %v4059, %v3233
        %v4139 = vmul.f32 %v4063, %v3234
        %v4140 = vmul.f32 %v4067, %v3235
        %v4141 = vmul.f32 %v4071, %v3236
        %v4142 = vmul.f32 %v4075, %v3237
        %v4143 = vmul.f32 %v4079, %v3238
        %v4144 = vmul.f32 %v4019, %v3239
        %v4145 = vmul.f32 %v4023, %v3240
        %v4146 = vmul.f32 %v4027, %v3241
        %v4147 = vmul.f32 %v4031, %v3242
        %v4148 = vmul.f32 %v4035, %v3243
        %v4149 = vmul.f32 %v4039, %v3244
        %v4150 = vmul.f32 %v4043, %v3245
        %v4151 = vmul.f32 %v4047, %v3246
        %v4152 = vmul.f32 %v4051, %v3247
        %v4153 = vmul.f32 %v4055, %v3248
        %v4154 = vmul.f32 %v4059, %v3249
        %v4155 = vmul.f32 %v4063, %v3250
        %v4156 = vmul.f32 %v4067, %v3251
        %v4157 = vmul.f32 %v4071, %v3252
        %v4158 = vmul.f32 %v4075, %v3253
        %v4159 = vmul.f32 %v4079, %v3254
        %v4160 = vmul.f32 %v4019, %v3255
        %v4161 = vmul.f32 %v4023, %v3256
        %v4162 = vmul.f32 %v4027, %v3257
        %v4163 = vmul.f32 %v4031, %v3258
        %v4164 = vmul.f32 %v4035, %v3259
        %v4165 = vmul.f32 %v4039, %v3260
        %v4166 = vmul.f32 %v4043, %v3261
        %v4167 = vmul.f32 %v4047, %v3262
        %v4168 = vmul.f32 %v4051, %v3263
        %v4169 = vmul.f32 %v4055, %v3264
        %v4170 = vmul.f32 %v4059, %v3265
        %v4171 = vmul.f32 %v4063, %v3266
        %v4172 = vmul.f32 %v4067, %v3267
        %v4173 = vmul.f32 %v4071, %v3268
        %v4174 = vmul.f32 %v4075, %v3269
        %v4175 = vmul.f32 %v4079, %v3270
        %v4176 = vmul.f32 %v4019, %v3271
        %v4177 = vmul.f32 %v4023, %v3272
        %v4178 = vmul.f32 %v4027, %v3273
        %v4179 = vmul.f32 %v4031, %v3274
        %v4180 = vmul.f32 %v4035, %v3275
        %v4181 = vmul.f32 %v4039, %v3276
        %v4182 = vmul.f32 %v4043, %v3277
        %v4183 = vmul.f32 %v4047, %v3278
        %v4184 = vmul.f32 %v4051, %v3279
        %v4185 = vmul.f32 %v4055, %v3280
        %v4186 = vmul.f32 %v4059, %v3281
        %v4187 = vmul.f32 %v4063, %v3282
        %v4188 = vmul.f32 %v4067, %v3283
        %v4189 = vmul.f32 %v4071, %v3284
        %v4190 = vmul.f32 %v4075, %v3285
        %v4191 = vmul.f32 %v4079, %v3286
        %v4192 = vmul.f32 %v4019, %v3287
        %v4193 = vmul.f32 %v4023, %v3288
        %v4194 = vmul.f32 %v4027, %v3289
        %v4195 = vmul.f32 %v4031, %v3290
        %v4196 = vmul.f32 %v4035, %v3291
        %v4197 = vmul.f32 %v4039, %v3292
        %v4198 = vmul.f32 %v4043, %v3293
        %v4199 = vmul.f32 %v4047, %v3294
        %v4200 = vmul.f32 %v4051, %v3295
        %v4201 = vmul.f32 %v4055, %v3296
        %v4202 = vmul.f32 %v4059, %v3297
        %v4203 = vmul.f32 %v4063, %v3298
        %v4204 = vmul.f32 %v4067, %v3299
        %v4205 = vmul.f32 %v4071, %v3300
        %v4206 = vmul.f32 %v4075, %v3301
        %v4207 = vmul.f32 %v4079, %v3302
        %v4208 = vmul.f32 %v4019, %v3303
        %v4209 = vmul.f32 %v4023, %v3304
        %v4210 = vmul.f32 %v4027, %v3305
        %v4211 = vmul.f32 %v4031, %v3306
        %v4212 = vmul.f32 %v4035, %v3307
        %v4213 = vmul.f32 %v4039, %v3308
        %v4214 = vmul.f32 %v4043, %v3309
        %v4215 = vmul.f32 %v4047, %v3310
        %v4216 = vmul.f32 %v4051, %v3311
        %v4217 = vmul.f32 %v4055, %v3312
        %v4218 = vmul.f32 %v4059, %v3313
        %v4219 = vmul.f32 %v4063, %v3314
        %v4220 = vmul.f32 %v4067, %v3315
        %v4221 = vmul.f32 %v4071, %v3316
        %v4222 = vmul.f32 %v4075, %v3317
        %v4223 = vmul.f32 %v4079, %v3318
        %v4224 = vadd.f32 %v3886, %v4096
        %v4225 = vadd.f32 %v3887, %v4097
        %v4226 = vadd.f32 %v3888, %v4098
        %v4227 = vadd.f32 %v3889, %v4099
        %v4228 = vadd.f32 %v3890, %v4100
        %v4229 = vadd.f32 %v3891, %v4101
        %v4230 = vadd.f32 %v3892, %v4102
        %v4231 = vadd.f32 %v3893, %v4103
        %v4232 = vadd.f32 %v3894, %v4104
        %v4233 = vadd.f32 %v3895, %v4105
        %v4234 = vadd.f32 %v3896, %v4106
        %v4235 = vadd.f32 %v3897, %v4107
        %v4236 = vadd.f32 %v3898, %v4108
        %v4237 = vadd.f32 %v3899, %v4109
        %v4238 = vadd.f32 %v3900, %v4110
        %v4239 = vadd.f32 %v3901, %v4111
        %v4240 = vadd.f32 %v3902, %v4112
        %v4241 = vadd.f32 %v3903, %v4113
        %v4242 = vadd.f32 %v3904, %v4114
        %v4243 = vadd.f32 %v3905, %v4115
        %v4244 = vadd.f32 %v3906, %v4116
        %v4245 = vadd.f32 %v3907, %v4117
        %v4246 = vadd.f32 %v3908, %v4118
        %v4247 = vadd.f32 %v3909, %v4119
        %v4248 = vadd.f32 %v3910, %v4120
        %v4249 = vadd.f32 %v3911, %v4121
        %v4250 = vadd.f32 %v3912, %v4122
        %v4251 = vadd.f32 %v3913, %v4123
        %v4252 = vadd.f32 %v3914, %v4124
        %v4253 = vadd.f32 %v3915, %v4125
        %v4254 = vadd.f32 %v3916, %v4126
        %v4255 = vadd.f32 %v3917, %v4127
        %v4256 = vadd.f32 %v3918, %v4128
        %v4257 = vadd.f32 %v3919, %v4129
        %v4258 = vadd.f32 %v3920, %v4130
        %v4259 = vadd.f32 %v3921, %v4131
        %v4260 = vadd.f32 %v3922, %v4132
        %v4261 = vadd.f32 %v3923, %v4133
        %v4262 = vadd.f32 %v3924, %v4134
        %v4263 = vadd.f32 %v3925, %v4135
        %v4264 = vadd.f32 %v3926, %v4136
        %v4265 = vadd.f32 %v3927, %v4137
        %v4266 = vadd.f32 %v3928, %v4138
        %v4267 = vadd.f32 %v3929, %v4139
        %v4268 = vadd.f32 %v3930, %v4140
        %v4269 = vadd.f32 %v3931, %v4141
        %v4270 = vadd.f32 %v3932, %v4142
        %v4271 = vadd.f32 %v3933, %v4143
        %v4272 = vadd.f32 %v3934, %v4144
        %v4273 = vadd.f32 %v3935, %v4145
        %v4274 = vadd.f32 %v3936, %v4146
        %v4275 = vadd.f32 %v3937, %v4147
        %v4276 = vadd.f32 %v3938, %v4148
        %v4277 = vadd.f32 %v3939, %v4149
        %v4278 = vadd.f32 %v3940, %v4150
        %v4279 = vadd.f32 %v3941, %v4151
        %v4280 = vadd.f32 %v3942, %v4152
        %v4281 = vadd.f32 %v3943, %v4153
        %v4282 = vadd.f32 %v3944, %v4154
        %v4283 = vadd.f32 %v3945, %v4155
        %v4284 = vadd.f32 %v3946, %v4156
        %v4285 = vadd.f32 %v3947, %v4157
        %v4286 = vadd.f32 %v3948, %v4158
        %v4287 = vadd.f32 %v3949, %v4159
        %v4288 = vadd.f32 %v3950, %v4160
        %v4289 = vadd.f32 %v3951, %v4161
        %v4290 = vadd.f32 %v3952, %v4162
        %v4291 = vadd.f32 %v3953, %v4163
        %v4292 = vadd.f32 %v3954, %v4164
        %v4293 = vadd.f32 %v3955, %v4165
        %v4294 = vadd.f32 %v3956, %v4166
        %v4295 = vadd.f32 %v3957, %v4167
        %v4296 = vadd.f32 %v3958, %v4168
        %v4297 = vadd.f32 %v3959, %v4169
        %v4298 = vadd.f32 %v3960, %v4170
        %v4299 = vadd.f32 %v3961, %v4171
        %v4300 = vadd.f32 %v3962, %v4172
        %v4301 = vadd.f32 %v3963, %v4173
        %v4302 = vadd.f32 %v3964, %v4174
        %v4303 = vadd.f32 %v3965, %v4175
        %v4304 = vadd.f32 %v3966, %v4176
        %v4305 = vadd.f32 %v3967, %v4177
        %v4306 = vadd.f32 %v3968, %v4178
        %v4307 = vadd.f32 %v3969, %v4179
        %v4308 = vadd.f32 %v3970, %v4180
        %v4309 = vadd.f32 %v3971, %v4181
        %v4310 = vadd.f32 %v3972, %v4182
        %v4311 = vadd.f32 %v3973, %v4183
        %v4312 = vadd.f32 %v3974, %v4184
        %v4313 = vadd.f32 %v3975, %v4185
        %v4314 = vadd.f32 %v3976, %v4186
        %v4315 = vadd.f32 %v3977, %v4187
        %v4316 = vadd.f32 %v3978, %v4188
        %v4317 = vadd.f32 %v3979, %v4189
        %v4318 = vadd.f32 %v3980, %v4190
        %v4319 = vadd.f32 %v3981, %v4191
        %v4320 = vadd.f32 %v3982, %v4192
        %v4321 = vadd.f32 %v3983, %v4193
        %v4322 = vadd.f32 %v3984, %v4194
        %v4323 = vadd.f32 %v3985, %v4195
        %v4324 = vadd.f32 %v3986, %v4196
        %v4325 = vadd.f32 %v3987, %v4197
        %v4326 = vadd.f32 %v3988, %v4198
        %v4327 = vadd.f32 %v3989, %v4199
        %v4328 = vadd.f32 %v3990, %v4200
        %v4329 = vadd.f32 %v3991, %v4201
        %v4330 = vadd.f32 %v3992, %v4202
        %v4331 = vadd.f32 %v3993, %v4203
        %v4332 = vadd.f32 %v3994, %v4204
        %v4333 = vadd.f32 %v3995, %v4205
        %v4334 = vadd.f32 %v3996, %v4206
        %v4335 = vadd.f32 %v3997, %v4207
        %v4336 = vadd.f32 %v3998, %v4208
        %v4337 = vadd.f32 %v3999, %v4209
        %v4338 = vadd.f32 %v4000, %v4210
        %v4339 = vadd.f32 %v4001, %v4211
        %v4340 = vadd.f32 %v4002, %v4212
        %v4341 = vadd.f32 %v4003, %v4213
        %v4342 = vadd.f32 %v4004, %v4214
        %v4343 = vadd.f32 %v4005, %v4215
        %v4344 = vadd.f32 %v4006, %v4216
        %v4345 = vadd.f32 %v4007, %v4217
        %v4346 = vadd.f32 %v4008, %v4218
        %v4347 = vadd.f32 %v4009, %v4219
        %v4348 = vadd.f32 %v4010, %v4220
        %v4349 = vadd.f32 %v4011, %v4221
        %v4350 = vadd.f32 %v4012, %v4222
        %v4351 = vadd.f32 %v4013, %v4223
        %v4354 = vlaneseq
        %v4355 = vshrl.u32 %v4354, 7
        %v4356 = vsub.s32 0, %v4355
        %v4357 = vrot.slane %v3464, %v4356
        %v4358 = vlaneseq
        %v4359 = vshrl.u32 %v4358, 7
        %v4360 = vsub.s32 1, %v4359
        %v4361 = vrot.slane %v3464, %v4360
        %v4362 = vlaneseq
        %v4363 = vshrl.u32 %v4362, 7
        %v4364 = vsub.s32 2, %v4363
        %v4365 = vrot.slane %v3464, %v4364
        %v4366 = vlaneseq
        %v4367 = vshrl.u32 %v4366, 7
        %v4368 = vsub.s32 3, %v4367
        %v4369 = vrot.slane %v3464, %v4368
        %v4370 = vlaneseq
        %v4371 = vshrl.u32 %v4370, 7
        %v4372 = vsub.s32 4, %v4371
        %v4373 = vrot.slane %v3464, %v4372
        %v4374 = vlaneseq
        %v4375 = vshrl.u32 %v4374, 7
        %v4376 = vsub.s32 5, %v4375
        %v4377 = vrot.slane %v3464, %v4376
        %v4378 = vlaneseq
        %v4379 = vshrl.u32 %v4378, 7
        %v4380 = vsub.s32 6, %v4379
        %v4381 = vrot.slane %v3464, %v4380
        %v4382 = vlaneseq
        %v4383 = vshrl.u32 %v4382, 7
        %v4384 = vsub.s32 7, %v4383
        %v4385 = vrot.slane %v3464, %v4384
        %v4386 = vlaneseq
        %v4387 = vshrl.u32 %v4386, 7
        %v4388 = vsub.s32 0, %v4387
        %v4389 = vrot.slane %v3465, %v4388
        %v4390 = vlaneseq
        %v4391 = vshrl.u32 %v4390, 7
        %v4392 = vsub.s32 1, %v4391
        %v4393 = vrot.slane %v3465, %v4392
        %v4394 = vlaneseq
        %v4395 = vshrl.u32 %v4394, 7
        %v4396 = vsub.s32 2, %v4395
        %v4397 = vrot.slane %v3465, %v4396
        %v4398 = vlaneseq
        %v4399 = vshrl.u32 %v4398, 7
        %v4400 = vsub.s32 3, %v4399
        %v4401 = vrot.slane %v3465, %v4400
        %v4402 = vlaneseq
        %v4403 = vshrl.u32 %v4402, 7
        %v4404 = vsub.s32 4, %v4403
        %v4405 = vrot.slane %v3465, %v4404
        %v4406 = vlaneseq
        %v4407 = vshrl.u32 %v4406, 7
        %v4408 = vsub.s32 5, %v4407
        %v4409 = vrot.slane %v3465, %v4408
        %v4410 = vlaneseq
        %v4411 = vshrl.u32 %v4410, 7
        %v4412 = vsub.s32 6, %v4411
        %v4413 = vrot.slane %v3465, %v4412
        %v4414 = vlaneseq
        %v4415 = vshrl.u32 %v4414, 7
        %v4416 = vsub.s32 7, %v4415
        %v4417 = vrot.slane %v3465, %v4416
        %v4434 = vmul.f32 %v4357, %v3319
        %v4435 = vmul.f32 %v4361, %v3320
        %v4436 = vmul.f32 %v4365, %v3321
        %v4437 = vmul.f32 %v4369, %v3322
        %v4438 = vmul.f32 %v4373, %v3323
        %v4439 = vmul.f32 %v4377, %v3324
        %v4440 = vmul.f32 %v4381, %v3325
        %v4441 = vmul.f32 %v4385, %v3326
        %v4442 = vmul.f32 %v4389, %v3327
        %v4443 = vmul.f32 %v4393, %v3328
        %v4444 = vmul.f32 %v4397, %v3329
        %v4445 = vmul.f32 %v4401, %v3330
        %v4446 = vmul.f32 %v4405, %v3331
        %v4447 = vmul.f32 %v4409, %v3332
        %v4448 = vmul.f32 %v4413, %v3333
        %v4449 = vmul.f32 %v4417, %v3334
        %v4450 = vmul.f32 %v4357, %v3335
        %v4451 = vmul.f32 %v4361, %v3336
        %v4452 = vmul.f32 %v4365, %v3337
        %v4453 = vmul.f32 %v4369, %v3338
        %v4454 = vmul.f32 %v4373, %v3339
        %v4455 = vmul.f32 %v4377, %v3340
        %v4456 = vmul.f32 %v4381, %v3341
        %v4457 = vmul.f32 %v4385, %v3342
        %v4458 = vmul.f32 %v4389, %v3343
        %v4459 = vmul.f32 %v4393, %v3344
        %v4460 = vmul.f32 %v4397, %v3345
        %v4461 = vmul.f32 %v4401, %v3346
        %v4462 = vmul.f32 %v4405, %v3347
        %v4463 = vmul.f32 %v4409, %v3348
        %v4464 = vmul.f32 %v4413, %v3349
        %v4465 = vmul.f32 %v4417, %v3350
        %v4466 = vmul.f32 %v4357, %v3351
        %v4467 = vmul.f32 %v4361, %v3352
        %v4468 = vmul.f32 %v4365, %v3353
        %v4469 = vmul.f32 %v4369, %v3354
        %v4470 = vmul.f32 %v4373, %v3355
        %v4471 = vmul.f32 %v4377, %v3356
        %v4472 = vmul.f32 %v4381, %v3357
        %v4473 = vmul.f32 %v4385, %v3358
        %v4474 = vmul.f32 %v4389, %v3359
        %v4475 = vmul.f32 %v4393, %v3360
        %v4476 = vmul.f32 %v4397, %v3361
        %v4477 = vmul.f32 %v4401, %v3362
        %v4478 = vmul.f32 %v4405, %v3363
        %v4479 = vmul.f32 %v4409, %v3364
        %v4480 = vmul.f32 %v4413, %v3365
        %v4481 = vmul.f32 %v4417, %v3366
        %v4482 = vmul.f32 %v4357, %v3367
        %v4483 = vmul.f32 %v4361, %v3368
        %v4484 = vmul.f32 %v4365, %v3369
        %v4485 = vmul.f32 %v4369, %v3370
        %v4486 = vmul.f32 %v4373, %v3371
        %v4487 = vmul.f32 %v4377, %v3372
        %v4488 = vmul.f32 %v4381, %v3373
        %v4489 = vmul.f32 %v4385, %v3374
        %v4490 = vmul.f32 %v4389, %v3375
        %v4491 = vmul.f32 %v4393, %v3376
        %v4492 = vmul.f32 %v4397, %v3377
        %v4493 = vmul.f32 %v4401, %v3378
        %v4494 = vmul.f32 %v4405, %v3379
        %v4495 = vmul.f32 %v4409, %v3380
        %v4496 = vmul.f32 %v4413, %v3381
        %v4497 = vmul.f32 %v4417, %v3382
        %v4498 = vmul.f32 %v4357, %v3383
        %v4499 = vmul.f32 %v4361, %v3384
        %v4500 = vmul.f32 %v4365, %v3385
        %v4501 = vmul.f32 %v4369, %v3386
        %v4502 = vmul.f32 %v4373, %v3387
        %v4503 = vmul.f32 %v4377, %v3388
        %v4504 = vmul.f32 %v4381, %v3389
        %v4505 = vmul.f32 %v4385, %v3390
        %v4506 = vmul.f32 %v4389, %v3391
        %v4507 = vmul.f32 %v4393, %v3392
        %v4508 = vmul.f32 %v4397, %v3393
        %v4509 = vmul.f32 %v4401, %v3394
        %v4510 = vmul.f32 %v4405, %v3395
        %v4511 = vmul.f32 %v4409, %v3396
        %v4512 = vmul.f32 %v4413, %v3397
        %v4513 = vmul.f32 %v4417, %v3398
        %v4514 = vmul.f32 %v4357, %v3399
        %v4515 = vmul.f32 %v4361, %v3400
        %v4516 = vmul.f32 %v4365, %v3401
        %v4517 = vmul.f32 %v4369, %v3402
        %v4518 = vmul.f32 %v4373, %v3403
        %v4519 = vmul.f32 %v4377, %v3404
        %v4520 = vmul.f32 %v4381, %v3405
        %v4521 = vmul.f32 %v4385, %v3406
        %v4522 = vmul.f32 %v4389, %v3407
        %v4523 = vmul.f32 %v4393, %v3408
        %v4524 = vmul.f32 %v4397, %v3409
        %v4525 = vmul.f32 %v4401, %v3410
        %v4526 = vmul.f32 %v4405, %v3411
        %v4527 = vmul.f32 %v4409, %v3412
        %v4528 = vmul.f32 %v4413, %v3413
        %v4529 = vmul.f32 %v4417, %v3414
        %v4530 = vmul.f32 %v4357, %v3415
        %v4531 = vmul.f32 %v4361, %v3416
        %v4532 = vmul.f32 %v4365, %v3417
        %v4533 = vmul.f32 %v4369, %v3418
        %v4534 = vmul.f32 %v4373, %v3419
        %v4535 = vmul.f32 %v4377, %v3420
        %v4536 = vmul.f32 %v4381, %v3421
        %v4537 = vmul.f32 %v4385, %v3422
        %v4538 = vmul.f32 %v4389, %v3423
        %v4539 = vmul.f32 %v4393, %v3424
        %v4540 = vmul.f32 %v4397, %v3425
        %v4541 = vmul.f32 %v4401, %v3426
        %v4542 = vmul.f32 %v4405, %v3427
        %v4543 = vmul.f32 %v4409, %v3428
        %v4544 = vmul.f32 %v4413, %v3429
        %v4545 = vmul.f32 %v4417, %v3430
        %v4546 = vmul.f32 %v4357, %v3431
        %v4547 = vmul.f32 %v4361, %v3432
        %v4548 = vmul.f32 %v4365, %v3433
        %v4549 = vmul.f32 %v4369, %v3434
        %v4550 = vmul.f32 %v4373, %v3435
        %v4551 = vmul.f32 %v4377, %v3436
        %v4552 = vmul.f32 %v4381, %v3437
        %v4553 = vmul.f32 %v4385, %v3438
        %v4554 = vmul.f32 %v4389, %v3439
        %v4555 = vmul.f32 %v4393, %v3440
        %v4556 = vmul.f32 %v4397, %v3441
        %v4557 = vmul.f32 %v4401, %v3442
        %v4558 = vmul.f32 %v4405, %v3443
        %v4559 = vmul.f32 %v4409, %v3444
        %v4560 = vmul.f32 %v4413, %v3445
        %v4561 = vmul.f32 %v4417, %v3446
        %v4562 = vadd.f32 %v4224, %v4434
        %v4563 = vadd.f32 %v4225, %v4435
        %v4564 = vadd.f32 %v4226, %v4436
        %v4565 = vadd.f32 %v4227, %v4437
        %v4566 = vadd.f32 %v4228, %v4438
        %v4567 = vadd.f32 %v4229, %v4439
        %v4568 = vadd.f32 %v4230, %v4440
        %v4569 = vadd.f32 %v4231, %v4441
        %v4570 = vadd.f32 %v4232, %v4442
        %v4571 = vadd.f32 %v4233, %v4443
        %v4572 = vadd.f32 %v4234, %v4444
        %v4573 = vadd.f32 %v4235, %v4445
        %v4574 = vadd.f32 %v4236, %v4446
        %v4575 = vadd.f32 %v4237, %v4447
        %v4576 = vadd.f32 %v4238, %v4448
        %v4577 = vadd.f32 %v4239, %v4449
        %v4578 = vadd.f32 %v4240, %v4450
        %v4579 = vadd.f32 %v4241, %v4451
        %v4580 = vadd.f32 %v4242, %v4452
        %v4581 = vadd.f32 %v4243, %v4453
        %v4582 = vadd.f32 %v4244, %v4454
        %v4583 = vadd.f32 %v4245, %v4455
        %v4584 = vadd.f32 %v4246, %v4456
        %v4585 = vadd.f32 %v4247, %v4457
        %v4586 = vadd.f32 %v4248, %v4458
        %v4587 = vadd.f32 %v4249, %v4459
        %v4588 = vadd.f32 %v4250, %v4460
        %v4589 = vadd.f32 %v4251, %v4461
        %v4590 = vadd.f32 %v4252, %v4462
        %v4591 = vadd.f32 %v4253, %v4463
        %v4592 = vadd.f32 %v4254, %v4464
        %v4593 = vadd.f32 %v4255, %v4465
        %v4594 = vadd.f32 %v4256, %v4466
        %v4595 = vadd.f32 %v4257, %v4467
        %v4596 = vadd.f32 %v4258, %v4468
        %v4597 = vadd.f32 %v4259, %v4469
        %v4598 = vadd.f32 %v4260, %v4470
        %v4599 = vadd.f32 %v4261, %v4471
        %v4600 = vadd.f32 %v4262, %v4472
        %v4601 = vadd.f32 %v4263, %v4473
        %v4602 = vadd.f32 %v4264, %v4474
        %v4603 = vadd.f32 %v4265, %v4475
        %v4604 = vadd.f32 %v4266, %v4476
        %v4605 = vadd.f32 %v4267, %v4477
        %v4606 = vadd.f32 %v4268, %v4478
        %v4607 = vadd.f32 %v4269, %v4479
        %v4608 = vadd.f32 %v4270, %v4480
        %v4609 = vadd.f32 %v4271, %v4481
        %v4610 = vadd.f32 %v4272, %v4482
        %v4611 = vadd.f32 %v4273, %v4483
        %v4612 = vadd.f32 %v4274, %v4484
        %v4613 = vadd.f32 %v4275, %v4485
        %v4614 = vadd.f32 %v4276, %v4486
        %v4615 = vadd.f32 %v4277, %v4487
        %v4616 = vadd.f32 %v4278, %v4488
        %v4617 = vadd.f32 %v4279, %v4489
        %v4618 = vadd.f32 %v4280, %v4490
        %v4619 = vadd.f32 %v4281, %v4491
        %v4620 = vadd.f32 %v4282, %v4492
        %v4621 = vadd.f32 %v4283, %v4493
        %v4622 = vadd.f32 %v4284, %v4494
        %v4623 = vadd.f32 %v4285, %v4495
        %v4624 = vadd.f32 %v4286, %v4496
        %v4625 = vadd.f32 %v4287, %v4497
        %v4626 = vadd.f32 %v4288, %v4498
        %v4627 = vadd.f32 %v4289, %v4499
        %v4628 = vadd.f32 %v4290, %v4500
        %v4629 = vadd.f32 %v4291, %v4501
        %v4630 = vadd.f32 %v4292, %v4502
        %v4631 = vadd.f32 %v4293, %v4503
        %v4632 = vadd.f32 %v4294, %v4504
        %v4633 = vadd.f32 %v4295, %v4505
        %v4634 = vadd.f32 %v4296, %v4506
        %v4635 = vadd.f32 %v4297, %v4507
        %v4636 = vadd.f32 %v4298, %v4508
        %v4637 = vadd.f32 %v4299, %v4509
        %v4638 = vadd.f32 %v4300, %v4510
        %v4639 = vadd.f32 %v4301, %v4511
        %v4640 = vadd.f32 %v4302, %v4512
        %v4641 = vadd.f32 %v4303, %v4513
        %v4642 = vadd.f32 %v4304, %v4514
        %v4643 = vadd.f32 %v4305, %v4515
        %v4644 = vadd.f32 %v4306, %v4516
        %v4645 = vadd.f32 %v4307, %v4517
        %v4646 = vadd.f32 %v4308, %v4518
        %v4647 = vadd.f32 %v4309, %v4519
        %v4648 = vadd.f32 %v4310, %v4520
        %v4649 = vadd.f32 %v4311, %v4521
        %v4650 = vadd.f32 %v4312, %v4522
        %v4651 = vadd.f32 %v4313, %v4523
        %v4652 = vadd.f32 %v4314, %v4524
        %v4653 = vadd.f32 %v4315, %v4525
        %v4654 = vadd.f32 %v4316, %v4526
        %v4655 = vadd.f32 %v4317, %v4527
        %v4656 = vadd.f32 %v4318, %v4528
        %v4657 = vadd.f32 %v4319, %v4529
        %v4658 = vadd.f32 %v4320, %v4530
        %v4659 = vadd.f32 %v4321, %v4531
        %v4660 = vadd.f32 %v4322, %v4532
        %v4661 = vadd.f32 %v4323, %v4533
        %v4662 = vadd.f32 %v4324, %v4534
        %v4663 = vadd.f32 %v4325, %v4535
        %v4664 = vadd.f32 %v4326, %v4536
        %v4665 = vadd.f32 %v4327, %v4537
        %v4666 = vadd.f32 %v4328, %v4538
        %v4667 = vadd.f32 %v4329, %v4539
        %v4668 = vadd.f32 %v4330, %v4540
        %v4669 = vadd.f32 %v4331, %v4541
        %v4670 = vadd.f32 %v4332, %v4542
        %v4671 = vadd.f32 %v4333, %v4543
        %v4672 = vadd.f32 %v4334, %v4544
        %v4673 = vadd.f32 %v4335, %v4545
        %v4674 = vadd.f32 %v4336, %v4546
        %v4675 = vadd.f32 %v4337, %v4547
        %v4676 = vadd.f32 %v4338, %v4548
        %v4677 = vadd.f32 %v4339, %v4549
        %v4678 = vadd.f32 %v4340, %v4550
        %v4679 = vadd.f32 %v4341, %v4551
        %v4680 = vadd.f32 %v4342, %v4552
        %v4681 = vadd.f32 %v4343, %v4553
        %v4682 = vadd.f32 %v4344, %v4554
        %v4683 = vadd.f32 %v4345, %v4555
        %v4684 = vadd.f32 %v4346, %v4556
        %v4685 = vadd.f32 %v4347, %v4557
        %v4686 = vadd.f32 %v4348, %v4558
        %v4687 = vadd.f32 %v4349, %v4559
        %v4688 = vadd.f32 %v4350, %v4560
        %v4689 = vadd.f32 %v4351, %v4561
        %v4690 = vld [vmem:[%s3] sm:$0xf]
        %v4691 = vpack.c.bf16 %v4578, %v4562
        %v4692 = vpack.c.bf16 %v4579, %v4563
        %v4693 = vpack.c.bf16 %v4580, %v4564
        %v4694 = vpack.c.bf16 %v4581, %v4565
        %v4695 = vpack.c.bf16 %v4582, %v4566
        %v4696 = vpack.c.bf16 %v4583, %v4567
        %v4697 = vpack.c.bf16 %v4584, %v4568
        %v4698 = vpack.c.bf16 %v4585, %v4569
        %v4699 = vpack.c.bf16 %v4586, %v4570
        %v4700 = vpack.c.bf16 %v4587, %v4571
        %v4701 = vpack.c.bf16 %v4588, %v4572
        %v4702 = vpack.c.bf16 %v4589, %v4573
        %v4703 = vpack.c.bf16 %v4590, %v4574
        %v4704 = vpack.c.bf16 %v4591, %v4575
        %v4705 = vpack.c.bf16 %v4592, %v4576
        %v4706 = vpack.c.bf16 %v4593, %v4577
        %v4707 = vpack.c.bf16 %v4610, %v4594
        %v4708 = vpack.c.bf16 %v4611, %v4595
        %v4709 = vpack.c.bf16 %v4612, %v4596
        %v4710 = vpack.c.bf16 %v4613, %v4597
        %v4711 = vpack.c.bf16 %v4614, %v4598
        %v4712 = vpack.c.bf16 %v4615, %v4599
        %v4713 = vpack.c.bf16 %v4616, %v4600
        %v4714 = vpack.c.bf16 %v4617, %v4601
        %v4715 = vpack.c.bf16 %v4618, %v4602
        %v4716 = vpack.c.bf16 %v4619, %v4603
        %v4717 = vpack.c.bf16 %v4620, %v4604
        %v4718 = vpack.c.bf16 %v4621, %v4605
        %v4719 = vpack.c.bf16 %v4622, %v4606
        %v4720 = vpack.c.bf16 %v4623, %v4607
        %v4721 = vpack.c.bf16 %v4624, %v4608
        %v4722 = vpack.c.bf16 %v4625, %v4609
        %v4723 = vpack.c.bf16 %v4642, %v4626
        %v4724 = vpack.c.bf16 %v4643, %v4627
        %v4725 = vpack.c.bf16 %v4644, %v4628
        %v4726 = vpack.c.bf16 %v4645, %v4629
        %v4727 = vpack.c.bf16 %v4646, %v4630
        %v4728 = vpack.c.bf16 %v4647, %v4631
        %v4729 = vpack.c.bf16 %v4648, %v4632
        %v4730 = vpack.c.bf16 %v4649, %v4633
        %v4731 = vpack.c.bf16 %v4650, %v4634
        %v4732 = vpack.c.bf16 %v4651, %v4635
        %v4733 = vpack.c.bf16 %v4652, %v4636
        %v4734 = vpack.c.bf16 %v4653, %v4637
        %v4735 = vpack.c.bf16 %v4654, %v4638
        %v4736 = vpack.c.bf16 %v4655, %v4639
        %v4737 = vpack.c.bf16 %v4656, %v4640
        %v4738 = vpack.c.bf16 %v4657, %v4641
        %v4739 = vpack.c.bf16 %v4674, %v4658
        %v4740 = vpack.c.bf16 %v4675, %v4659
        %v4741 = vpack.c.bf16 %v4676, %v4660
        %v4742 = vpack.c.bf16 %v4677, %v4661
        %v4743 = vpack.c.bf16 %v4678, %v4662
        %v4744 = vpack.c.bf16 %v4679, %v4663
        %v4745 = vpack.c.bf16 %v4680, %v4664
        %v4746 = vpack.c.bf16 %v4681, %v4665
        %v4747 = vpack.c.bf16 %v4682, %v4666
        %v4748 = vpack.c.bf16 %v4683, %v4667
        %v4749 = vpack.c.bf16 %v4684, %v4668
        %v4750 = vpack.c.bf16 %v4685, %v4669
        %v4751 = vpack.c.bf16 %v4686, %v4670
        %v4752 = vpack.c.bf16 %v4687, %v4671
        %v4753 = vpack.c.bf16 %v4688, %v4672
        %v4754 = vpack.c.bf16 %v4689, %v4673
        %vm4755 = vcmask 523264
        %v4757 = vsel %vm4755, %v4690, 0
        %4759 = vmatprep.subr.bf16.mxu0 %v4692
        %4760 = vmatpush1.bf16.msra.mxu0 %v4691
        %4761 = vmatprep.subr.bf16.mxu0 %v4708
        %4762 = vmatpush1.bf16.msra.mxu0 %v4707
        %4763 = vmatprep.subr.bf16.mxu0 %v4724
        %4764 = vmatpush1.bf16.msra.mxu0 %v4723
        %4765 = vmatprep.subr.bf16.mxu0 %v4740
        %4766 = vmatpush1.bf16.msra.mxu0 %v4739
        %4767 = vmatprep.subr.bf16.mxu0 0
        %4768 = vmatpush1.bf16.msra.mxu0 0
        %4769 = vmatprep.subr.bf16.mxu0 0
        %4770 = vmatpush1.bf16.msra.mxu0 0
        %4771 = vmatprep.subr.bf16.mxu0 0
        %4772 = vmatpush1.bf16.msra.mxu0 0
        %4773 = vmatprep.subr.bf16.mxu0 0
        %4774 = vmatpush1.bf16.msra.mxu0 0
        %4775 = vmatprep.subr.bf16.mxu0 0
        %4776 = vmatpush1.bf16.msra.mxu0 0
        %4777 = vmatprep.subr.bf16.mxu0 0
        %4778 = vmatpush1.bf16.msra.mxu0 0
        %4779 = vmatprep.subr.bf16.mxu0 0
        %4780 = vmatpush1.bf16.msra.mxu0 0
        %4781 = vmatprep.subr.bf16.mxu0 0
        %4782 = vmatpush1.bf16.msra.mxu0 0
        %4783 = vmatprep.subr.bf16.mxu0 0
        %4784 = vmatpush1.bf16.msra.mxu0 0
        %4785 = vmatprep.subr.bf16.mxu0 0
        %4786 = vmatpush1.bf16.msra.mxu0 0
        %4787 = vmatprep.subr.bf16.mxu0 0
        %4788 = vmatpush1.bf16.msra.mxu0 0
        %4789 = vmatprep.subr.bf16.mxu0 0
        %4790 = vmatpush1.bf16.msra.mxu0 0
        %4791 = vmatprep.mubr.bf16.mxu0 0
        %4792 = vmatmul.mubr.bf16.gmra.mrb[0].mxu0 %v4757
        %v4793 = vpop.f32.mrb[0].mxu0
        %v4794 = vadd.f32 0.0, %v4793
        %v4795 = vpop.f32.mrb[0].mxu0
        %v4796 = vadd.f32 0.0, %v4795
        %v4797 = vpop.f32.mrb[0].mxu0
        %v4798 = vpop.f32.mrb[0].mxu0
        %4799 = vdwg.mxu0
        %4800 = vmatprep.subr.bf16.mxu0 %v4694
        %4801 = vmatpush1.bf16.msra.mxu0 %v4693
        %4802 = vmatprep.subr.bf16.mxu0 %v4710
        %4803 = vmatpush1.bf16.msra.mxu0 %v4709
        %4804 = vmatprep.subr.bf16.mxu0 %v4726
        %4805 = vmatpush1.bf16.msra.mxu0 %v4725
        %4806 = vmatprep.subr.bf16.mxu0 %v4742
        %4807 = vmatpush1.bf16.msra.mxu0 %v4741
        %4808 = vmatprep.subr.bf16.mxu0 0
        %4809 = vmatpush1.bf16.msra.mxu0 0
        %4810 = vmatprep.subr.bf16.mxu0 0
        %4811 = vmatpush1.bf16.msra.mxu0 0
        %4812 = vmatprep.subr.bf16.mxu0 0
        %4813 = vmatpush1.bf16.msra.mxu0 0
        %4814 = vmatprep.subr.bf16.mxu0 0
        %4815 = vmatpush1.bf16.msra.mxu0 0
        %4816 = vmatprep.subr.bf16.mxu0 0
        %4817 = vmatpush1.bf16.msra.mxu0 0
        %4818 = vmatprep.subr.bf16.mxu0 0
        %4819 = vmatpush1.bf16.msra.mxu0 0
        %4820 = vmatprep.subr.bf16.mxu0 0
        %4821 = vmatpush1.bf16.msra.mxu0 0
        %4822 = vmatprep.subr.bf16.mxu0 0
        %4823 = vmatpush1.bf16.msra.mxu0 0
        %4824 = vmatprep.subr.bf16.mxu0 0
        %4825 = vmatpush1.bf16.msra.mxu0 0
        %4826 = vmatprep.subr.bf16.mxu0 0
        %4827 = vmatpush1.bf16.msra.mxu0 0
        %4828 = vmatprep.subr.bf16.mxu0 0
        %4829 = vmatpush1.bf16.msra.mxu0 0
        %4830 = vmatprep.subr.bf16.mxu0 0
        %4831 = vmatpush1.bf16.msra.mxu0 0
        %4832 = vmatprep.mubr.bf16.mxu0 0
        %4833 = vmatmul.mubr.bf16.gmra.mrb[0].mxu0 %v4757
        %v4834 = vpop.f32.mrb[0].mxu0
        %v4835 = vadd.f32 0.0, %v4834
        %v4836 = vpop.f32.mrb[0].mxu0
        %v4837 = vadd.f32 0.0, %v4836
        %v4838 = vpop.f32.mrb[0].mxu0
        %v4839 = vpop.f32.mrb[0].mxu0
        %4840 = vdwg.mxu0
        %4841 = vmatprep.subr.bf16.mxu0 %v4696
        %4842 = vmatpush1.bf16.msra.mxu0 %v4695
        %4843 = vmatprep.subr.bf16.mxu0 %v4712
        %4844 = vmatpush1.bf16.msra.mxu0 %v4711
        %4845 = vmatprep.subr.bf16.mxu0 %v4728
        %4846 = vmatpush1.bf16.msra.mxu0 %v4727
        %4847 = vmatprep.subr.bf16.mxu0 %v4744
        %4848 = vmatpush1.bf16.msra.mxu0 %v4743
        %4849 = vmatprep.subr.bf16.mxu0 0
        %4850 = vmatpush1.bf16.msra.mxu0 0
        %4851 = vmatprep.subr.bf16.mxu0 0
        %4852 = vmatpush1.bf16.msra.mxu0 0
        %4853 = vmatprep.subr.bf16.mxu0 0
        %4854 = vmatpush1.bf16.msra.mxu0 0
        %4855 = vmatprep.subr.bf16.mxu0 0
        %4856 = vmatpush1.bf16.msra.mxu0 0
        %4857 = vmatprep.subr.bf16.mxu0 0
        %4858 = vmatpush1.bf16.msra.mxu0 0
        %4859 = vmatprep.subr.bf16.mxu0 0
        %4860 = vmatpush1.bf16.msra.mxu0 0
        %4861 = vmatprep.subr.bf16.mxu0 0
        %4862 = vmatpush1.bf16.msra.mxu0 0
        %4863 = vmatprep.subr.bf16.mxu0 0
        %4864 = vmatpush1.bf16.msra.mxu0 0
        %4865 = vmatprep.subr.bf16.mxu0 0
        %4866 = vmatpush1.bf16.msra.mxu0 0
        %4867 = vmatprep.subr.bf16.mxu0 0
        %4868 = vmatpush1.bf16.msra.mxu0 0
        %4869 = vmatprep.subr.bf16.mxu0 0
        %4870 = vmatpush1.bf16.msra.mxu0 0
        %4871 = vmatprep.subr.bf16.mxu0 0
        %4872 = vmatpush1.bf16.msra.mxu0 0
        %4873 = vmatprep.mubr.bf16.mxu0 0
        %4874 = vmatmul.mubr.bf16.gmra.mrb[0].mxu0 %v4757
        %v4875 = vpop.f32.mrb[0].mxu0
        %v4876 = vadd.f32 0.0, %v4875
        %v4877 = vpop.f32.mrb[0].mxu0
        %v4878 = vadd.f32 0.0, %v4877
        %v4879 = vpop.f32.mrb[0].mxu0
        %v4880 = vpop.f32.mrb[0].mxu0
        %4881 = vdwg.mxu0
        %4882 = vmatprep.subr.bf16.mxu0 %v4698
        %4883 = vmatpush1.bf16.msra.mxu0 %v4697
        %4884 = vmatprep.subr.bf16.mxu0 %v4714
        %4885 = vmatpush1.bf16.msra.mxu0 %v4713
        %4886 = vmatprep.subr.bf16.mxu0 %v4730
        %4887 = vmatpush1.bf16.msra.mxu0 %v4729
        %4888 = vmatprep.subr.bf16.mxu0 %v4746
        %4889 = vmatpush1.bf16.msra.mxu0 %v4745
        %4890 = vmatprep.subr.bf16.mxu0 0
        %4891 = vmatpush1.bf16.msra.mxu0 0
        %4892 = vmatprep.subr.bf16.mxu0 0
        %4893 = vmatpush1.bf16.msra.mxu0 0
        %4894 = vmatprep.subr.bf16.mxu0 0
        %4895 = vmatpush1.bf16.msra.mxu0 0
        %4896 = vmatprep.subr.bf16.mxu0 0
        %4897 = vmatpush1.bf16.msra.mxu0 0
        %4898 = vmatprep.subr.bf16.mxu0 0
        %4899 = vmatpush1.bf16.msra.mxu0 0
        %4900 = vmatprep.subr.bf16.mxu0 0
        %4901 = vmatpush1.bf16.msra.mxu0 0
        %4902 = vmatprep.subr.bf16.mxu0 0
        %4903 = vmatpush1.bf16.msra.mxu0 0
        %4904 = vmatprep.subr.bf16.mxu0 0
        %4905 = vmatpush1.bf16.msra.mxu0 0
        %4906 = vmatprep.subr.bf16.mxu0 0
        %4907 = vmatpush1.bf16.msra.mxu0 0
        %4908 = vmatprep.subr.bf16.mxu0 0
        %4909 = vmatpush1.bf16.msra.mxu0 0
        %4910 = vmatprep.subr.bf16.mxu0 0
        %4911 = vmatpush1.bf16.msra.mxu0 0
        %4912 = vmatprep.subr.bf16.mxu0 0
        %4913 = vmatpush1.bf16.msra.mxu0 0
        %4914 = vmatprep.mubr.bf16.mxu0 0
        %4915 = vmatmul.mubr.bf16.gmra.mrb[0].mxu0 %v4757
        %v4916 = vpop.f32.mrb[0].mxu0
        %v4917 = vadd.f32 0.0, %v4916
        %v4918 = vpop.f32.mrb[0].mxu0
        %v4919 = vadd.f32 0.0, %v4918
        %v4920 = vpop.f32.mrb[0].mxu0
        %v4921 = vpop.f32.mrb[0].mxu0
        %4922 = vdwg.mxu0
        %4923 = vmatprep.subr.bf16.mxu0 %v4700
        %4924 = vmatpush1.bf16.msra.mxu0 %v4699
        %4925 = vmatprep.subr.bf16.mxu0 %v4716
        %4926 = vmatpush1.bf16.msra.mxu0 %v4715
        %4927 = vmatprep.subr.bf16.mxu0 %v4732
        %4928 = vmatpush1.bf16.msra.mxu0 %v4731
        %4929 = vmatprep.subr.bf16.mxu0 %v4748
        %4930 = vmatpush1.bf16.msra.mxu0 %v4747
        %4931 = vmatprep.subr.bf16.mxu0 0
        %4932 = vmatpush1.bf16.msra.mxu0 0
        %4933 = vmatprep.subr.bf16.mxu0 0
        %4934 = vmatpush1.bf16.msra.mxu0 0
        %4935 = vmatprep.subr.bf16.mxu0 0
        %4936 = vmatpush1.bf16.msra.mxu0 0
        %4937 = vmatprep.subr.bf16.mxu0 0
        %4938 = vmatpush1.bf16.msra.mxu0 0
        %4939 = vmatprep.subr.bf16.mxu0 0
        %4940 = vmatpush1.bf16.msra.mxu0 0
        %4941 = vmatprep.subr.bf16.mxu0 0
        %4942 = vmatpush1.bf16.msra.mxu0 0
        %4943 = vmatprep.subr.bf16.mxu0 0
        %4944 = vmatpush1.bf16.msra.mxu0 0
        %4945 = vmatprep.subr.bf16.mxu0 0
        %4946 = vmatpush1.bf16.msra.mxu0 0
        %4947 = vmatprep.subr.bf16.mxu0 0
        %4948 = vmatpush1.bf16.msra.mxu0 0
        %4949 = vmatprep.subr.bf16.mxu0 0
        %4950 = vmatpush1.bf16.msra.mxu0 0
        %4951 = vmatprep.subr.bf16.mxu0 0
        %4952 = vmatpush1.bf16.msra.mxu0 0
        %4953 = vmatprep.subr.bf16.mxu0 0
        %4954 = vmatpush1.bf16.msra.mxu0 0
        %4955 = vmatprep.mubr.bf16.mxu0 0
        %4956 = vmatmul.mubr.bf16.gmra.mrb[0].mxu0 %v4757
        %v4957 = vpop.f32.mrb[0].mxu0
        %v4958 = vadd.f32 0.0, %v4957
        %v4959 = vpop.f32.mrb[0].mxu0
        %v4960 = vadd.f32 0.0, %v4959
        %v4961 = vpop.f32.mrb[0].mxu0
        %v4962 = vpop.f32.mrb[0].mxu0
        %4963 = vdwg.mxu0
        %4964 = vmatprep.subr.bf16.mxu0 %v4702
        %4965 = vmatpush1.bf16.msra.mxu0 %v4701
        %4966 = vmatprep.subr.bf16.mxu0 %v4718
        %4967 = vmatpush1.bf16.msra.mxu0 %v4717
        %4968 = vmatprep.subr.bf16.mxu0 %v4734
        %4969 = vmatpush1.bf16.msra.mxu0 %v4733
        %4970 = vmatprep.subr.bf16.mxu0 %v4750
        %4971 = vmatpush1.bf16.msra.mxu0 %v4749
        %4972 = vmatprep.subr.bf16.mxu0 0
        %4973 = vmatpush1.bf16.msra.mxu0 0
        %4974 = vmatprep.subr.bf16.mxu0 0
        %4975 = vmatpush1.bf16.msra.mxu0 0
        %4976 = vmatprep.subr.bf16.mxu0 0
        %4977 = vmatpush1.bf16.msra.mxu0 0
        %4978 = vmatprep.subr.bf16.mxu0 0
        %4979 = vmatpush1.bf16.msra.mxu0 0
        %4980 = vmatprep.subr.bf16.mxu0 0
        %4981 = vmatpush1.bf16.msra.mxu0 0
        %4982 = vmatprep.subr.bf16.mxu0 0
        %4983 = vmatpush1.bf16.msra.mxu0 0
        %4984 = vmatprep.subr.bf16.mxu0 0
        %4985 = vmatpush1.bf16.msra.mxu0 0
        %4986 = vmatprep.subr.bf16.mxu0 0
        %4987 = vmatpush1.bf16.msra.mxu0 0
        %4988 = vmatprep.subr.bf16.mxu0 0
        %4989 = vmatpush1.bf16.msra.mxu0 0
        %4990 = vmatprep.subr.bf16.mxu0 0
        %4991 = vmatpush1.bf16.msra.mxu0 0
        %4992 = vmatprep.subr.bf16.mxu0 0
        %4993 = vmatpush1.bf16.msra.mxu0 0
        %4994 = vmatprep.subr.bf16.mxu0 0
        %4995 = vmatpush1.bf16.msra.mxu0 0
        %4996 = vmatprep.mubr.bf16.mxu0 0
        %4997 = vmatmul.mubr.bf16.gmra.mrb[0].mxu0 %v4757
        %v4998 = vpop.f32.mrb[0].mxu0
        %v4999 = vadd.f32 0.0, %v4998
        %v5000 = vpop.f32.mrb[0].mxu0
        %v5001 = vadd.f32 0.0, %v5000
        %v5002 = vpop.f32.mrb[0].mxu0
        %v5003 = vpop.f32.mrb[0].mxu0
        %5004 = vdwg.mxu0
        %5005 = vmatprep.subr.bf16.mxu0 %v4704
        %5006 = vmatpush1.bf16.msra.mxu0 %v4703
        %5007 = vmatprep.subr.bf16.mxu0 %v4720
        %5008 = vmatpush1.bf16.msra.mxu0 %v4719
        %5009 = vmatprep.subr.bf16.mxu0 %v4736
        %5010 = vmatpush1.bf16.msra.mxu0 %v4735
        %5011 = vmatprep.subr.bf16.mxu0 %v4752
        %5012 = vmatpush1.bf16.msra.mxu0 %v4751
        %5013 = vmatprep.subr.bf16.mxu0 0
        %5014 = vmatpush1.bf16.msra.mxu0 0
        %5015 = vmatprep.subr.bf16.mxu0 0
        %5016 = vmatpush1.bf16.msra.mxu0 0
        %5017 = vmatprep.subr.bf16.mxu0 0
        %5018 = vmatpush1.bf16.msra.mxu0 0
        %5019 = vmatprep.subr.bf16.mxu0 0
        %5020 = vmatpush1.bf16.msra.mxu0 0
        %5021 = vmatprep.subr.bf16.mxu0 0
        %5022 = vmatpush1.bf16.msra.mxu0 0
        %5023 = vmatprep.subr.bf16.mxu0 0
        %5024 = vmatpush1.bf16.msra.mxu0 0
        %5025 = vmatprep.subr.bf16.mxu0 0
        %5026 = vmatpush1.bf16.msra.mxu0 0
        %5027 = vmatprep.subr.bf16.mxu0 0
        %5028 = vmatpush1.bf16.msra.mxu0 0
        %5029 = vmatprep.subr.bf16.mxu0 0
        %5030 = vmatpush1.bf16.msra.mxu0 0
        %5031 = vmatprep.subr.bf16.mxu0 0
        %5032 = vmatpush1.bf16.msra.mxu0 0
        %5033 = vmatprep.subr.bf16.mxu0 0
        %5034 = vmatpush1.bf16.msra.mxu0 0
        %5035 = vmatprep.subr.bf16.mxu0 0
        %5036 = vmatpush1.bf16.msra.mxu0 0
        %5037 = vmatprep.mubr.bf16.mxu0 0
        %5038 = vmatmul.mubr.bf16.gmra.mrb[0].mxu0 %v4757
        %v5039 = vpop.f32.mrb[0].mxu0
        %v5040 = vadd.f32 0.0, %v5039
        %v5041 = vpop.f32.mrb[0].mxu0
        %v5042 = vadd.f32 0.0, %v5041
        %v5043 = vpop.f32.mrb[0].mxu0
        %v5044 = vpop.f32.mrb[0].mxu0
        %5045 = vdwg.mxu0
        %5046 = vmatprep.subr.bf16.mxu0 %v4706
        %5047 = vmatpush1.bf16.msra.mxu0 %v4705
        %5048 = vmatprep.subr.bf16.mxu0 %v4722
        %5049 = vmatpush1.bf16.msra.mxu0 %v4721
        %5050 = vmatprep.subr.bf16.mxu0 %v4738
        %5051 = vmatpush1.bf16.msra.mxu0 %v4737
        %5052 = vmatprep.subr.bf16.mxu0 %v4754
        %5053 = vmatpush1.bf16.msra.mxu0 %v4753
        %5054 = vmatprep.subr.bf16.mxu0 0
        %5055 = vmatpush1.bf16.msra.mxu0 0
        %5056 = vmatprep.subr.bf16.mxu0 0
        %5057 = vmatpush1.bf16.msra.mxu0 0
        %5058 = vmatprep.subr.bf16.mxu0 0
        %5059 = vmatpush1.bf16.msra.mxu0 0
        %5060 = vmatprep.subr.bf16.mxu0 0
        %5061 = vmatpush1.bf16.msra.mxu0 0
        %5062 = vmatprep.subr.bf16.mxu0 0
        %5063 = vmatpush1.bf16.msra.mxu0 0
        %5064 = vmatprep.subr.bf16.mxu0 0
        %5065 = vmatpush1.bf16.msra.mxu0 0
        %5066 = vmatprep.subr.bf16.mxu0 0
        %5067 = vmatpush1.bf16.msra.mxu0 0
        %5068 = vmatprep.subr.bf16.mxu0 0
        %5069 = vmatpush1.bf16.msra.mxu0 0
        %5070 = vmatprep.subr.bf16.mxu0 0
        %5071 = vmatpush1.bf16.msra.mxu0 0
        %5072 = vmatprep.subr.bf16.mxu0 0
        %5073 = vmatpush1.bf16.msra.mxu0 0
        %5074 = vmatprep.subr.bf16.mxu0 0
        %5075 = vmatpush1.bf16.msra.mxu0 0
        %5076 = vmatprep.subr.bf16.mxu0 0
        %5077 = vmatpush1.bf16.msra.mxu0 0
        %5078 = vmatprep.mubr.bf16.mxu0 0
        %5079 = vmatmul.mubr.bf16.gmra.mrb[0].mxu0 %v4757
        %v5080 = vpop.f32.mrb[0].mxu0
        %v5081 = vadd.f32 0.0, %v5080
        %v5082 = vpop.f32.mrb[0].mxu0
        %v5083 = vadd.f32 0.0, %v5082
        %v5084 = vpop.f32.mrb[0].mxu0
        %v5085 = vpop.f32.mrb[0].mxu0
        %5086 = vdwg.mxu0
        %5087 = vst [vmem:[%s485] sm:$0xff] %v4794
        %5088 = vst [vmem:[%s485 + $0x8] sm:$0xff] %v4796
        %5089 = vst [vmem:[%s485 + $0x10] sm:$0xff] %v4835
        %5090 = vst [vmem:[%s485 + $0x18] sm:$0xff] %v4837
        %5091 = vst [vmem:[%s485 + $0x20] sm:$0xff] %v4876
        %5092 = vst [vmem:[%s485 + $0x28] sm:$0xff] %v4878
        %5093 = vst [vmem:[%s485 + $0x30] sm:$0xff] %v4917
        %5094 = vst [vmem:[%s485 + $0x38] sm:$0xff] %v4919
        %5095 = vst [vmem:[%s485 + $0x40] sm:$0xff] %v4958
        %5096 = vst [vmem:[%s485 + $0x48] sm:$0xff] %v4960
        %5097 = vst [vmem:[%s485 + $0x50] sm:$0xff] %v4999
        %5098 = vst [vmem:[%s485 + $0x58] sm:$0xff] %v5001
        %5099 = vst [vmem:[%s485 + $0x60] sm:$0xff] %v5040
        %5100 = vst [vmem:[%s485 + $0x68] sm:$0xff] %v5042
        %5101 = vst [vmem:[%s485 + $0x70] sm:$0xff] %v5081
        %5102 = vst [vmem:[%s485 + $0x78] sm:$0xff] %v5083
        %s5103 = sand.u32 %s120, 1
        %s5104 = scalar_lea.sflag [#allocation4], %s5103
        %s5105 = sand.u32 %s120, 1
        %s5106 = smul.addr %s5105, 128
        %s5107 = scalar_lea.vmem [#allocation3], %s5106
        // Predicated region
        $region60: #{plane_forward.1} parent=54 // pred_check
          %p5108 = pneg %p130
        $region61: #{plane_forward.1} parent=54 // pred_check_branch
          %5110 = sbr.rel (%p5108) target = $region63
        $region62: #{plane_forward.1} parent=54 // pred_region
          %s5111 = smul.u32 16, %s18
          %s5113 = ssub.s32 2048, 2048
          %5114 = vsyncadd %s5104, %s5113
          %s5115 = smul.addr %s5111, 128
          %s5116 = scalar_lea.hbm %s4, %s5115
          %s5118 = sshll.u32 %s5107, 4
          %s5119 = int_to_ptr.vmem [resolvable:$true] %s5118
          %5121 = dma.vmem_to_hbm [thread:$0]  %s5119, 2048, %s5116, %s5104
        $region63: #{plane_forward.1} parent=54 // pred_fallthru
          _
      $region55: #{plane_forward.1} parent=5 // pred_fallthru
        _
      %p5122 = scmp.le.s32.totalorder 2, %s13
      // Predicated region
      $region64: #{plane_forward.1} parent=5 // pred_check
        %p5123 = pneg %p5122
      $region65: #{plane_forward.1} parent=5 // pred_check_branch
        %5125 = sbr.rel (%p5123) target = $region67
      $region66: #{plane_forward.1} parent=5 // pred_region
        %s5126 = ssub.s32 %s13, 2
        // Predicated region
        $region68: #{plane_forward.1} parent=66 // pred_check
          %p5127 = pneg %p136
        $region69: #{plane_forward.1} parent=66 // pred_check_branch
          %5129 = sbr.rel (%p5127) target = $region71
        $region70: #{plane_forward.1} parent=66 // pred_region
          %s5130 = sand.u32 %s121, 1
          %s5131 = scalar_lea.sflag [#allocation4], %s5130
          %s5132 = sand.u32 %s121, 1
          %s5133 = smul.addr %s5132, 128
          %s5134 = scalar_lea.vmem [#allocation3], %s5133
          %5135 = dma.done %s5131, 2048
        $region71: #{plane_forward.1} parent=66 // pred_fallthru
          _
      $region67: #{plane_forward.1} parent=5 // pred_fallthru
        _
    $region6: #{plane_forward.1} parent=1 // loop_footer
      %s17 = sadd.s32 1, %s13
    $region7: #{plane_forward.1} parent=1 // loop_footer_branch
      %12 = sbr.rel target = $region3
    $region8: #{plane_forward.1} parent=1 // loop_exit
      _
    %5136 = vsyncpa [#allocation4], 1
    %s5137 = scalar_lea.sflag [#allocation4], 1
    %5138 = vsyncpa %s5137, 1

</llo_original>
